<compile_context>
chip_gen: v7x
topology: tpu7x:2x2x1
jax: 0.10.0
libtpu: 0.0.40
codegen_flags: <defaults>
</compile_context>

<pallas_src>
import functools

import jax
import jax.numpy as jnp
from jax import lax
from jax.experimental import pallas as pl
from jax.experimental.pallas import tpu as pltpu


def _round_up(x, m):
    return (x + m - 1) // m * m


def _padded_vmem_bytes(rows, cols, dtype):
    """VMEM footprint of a 2-D tile including (sublane, lane) padding."""
    item = jnp.dtype(dtype).itemsize
    sub = 8 * (4 // item)                       # f32: 8, bf16: 16 sublanes per tile
    return _round_up(max(rows, 1), sub) * _round_up(max(cols, 1), 128) * item


def _vmem_limit_bytes(h_pad, w_pad, cin, oh, ow, ohw_pad, k_dim, c_pad):
    """Generation-aware scoped-VMEM request for both passes."""
    x_blk = h_pad * _padded_vmem_bytes(w_pad, cin, jnp.bfloat16)
    w_blk = _padded_vmem_bytes(k_dim, c_pad, jnp.bfloat16)          # resident, counted 2x
    y_blk = _padded_vmem_bytes(ohw_pad, c_pad, jnp.bfloat16)
    st_blk = _padded_vmem_bytes(2, c_pad, jnp.float32)
    patch = oh * _padded_vmem_bytes(ow, k_dim, jnp.bfloat16)        # scratch, single copy
    o_blk = _padded_vmem_bytes(c_pad, ohw_pad, jnp.float32)
    sc_blk = _padded_vmem_bytes(1, c_pad, jnp.float32)
    need1 = 2 * (x_blk + w_blk + y_blk + st_blk) + patch            # pass 1
    need2 = 2 * (y_blk + o_blk + 2 * sc_blk)                        # pass 2
    need = max(need1, need2)
    try:
        cap = pltpu.get_tpu_info().vmem_capacity_bytes              # 128 MiB v5e/v6e, 64 MiB v7x
    except Exception:
        cap = 64 * 2**20
    return int(min(max(16 * 2**20, 2 * need), (3 * cap) // 4))


# --------------------------------------------------------------------------- pass 1
def _conv_stats_kernel(x_ref, w_ref, y_ref, stats_ref, patch_ref, *,
                       kh, kw, cin, oh, ow, stride):
    """Direct conv for one image: in-VMEM im2col + per-output-row MXU GEMMs.

    Outputs: bf16 activation (1, OHW_pad, Cpad) and per-image f32 (1, 2, Cpad)
    [sum, sum-of-squares] partials (combined across images in the wrapper).
    """
    # Build the im2col patches for this image entirely in VMEM: kh*kw shifted
    # window copies of the bf16 input.  No reshape, no HBM materialization.
    for i in range(kh):
        for j in range(kw):
            if stride == 1:
                win = x_ref[0, i:i + oh, j:j + ow, :]
            else:  # general stride via strided window reads (not exercised by default)
                win = x_ref[0, pl.ds(i, oh, stride), pl.ds(j, ow, stride), :]
            patch_ref[:, :, (i * kw + j) * cin:(i * kw + j + 1) * cin] = win

    w = w_ref[...]                                   # (K, Cpad) bf16, reused for all rows
    c_pad = w_ref.shape[1]
    s1 = jnp.zeros((ow, c_pad), jnp.float32)
    s2 = jnp.zeros((ow, c_pad), jnp.float32)
    # TODO(synk): swap to lax.fori_loop for very large OH to bound compile time.
    for r in range(oh):
        # (OW, K) x (K, Cpad) on the MXU, f32 accumulation.
        yrow = jnp.dot(patch_ref[r], w, preferred_element_type=jnp.float32)
        y_ref[0, r * ow:(r + 1) * ow, :] = yrow.astype(y_ref.dtype)   # bf16 writeback
        s1 = s1 + yrow                               # stats from the f32 accumulator
        s2 = s2 + yrow * yrow

    ohw = oh * ow
    ohw_pad = y_ref.shape[1]
    if ohw_pad > ohw:                                # keep the alignment pad rows clean
        y_ref[0, ohw:ohw_pad, :] = jnp.zeros((ohw_pad - ohw, c_pad), y_ref.dtype)

    # One stacked (2, Cpad) store per image: no cross-step RMW, no masked sub-sublane
    # accumulation, and pass 1 stays fully "parallel" over the grid.
    stats_ref[0] = jnp.concatenate(
        [jnp.sum(s1, axis=0, keepdims=True), jnp.sum(s2, axis=0, keepdims=True)], axis=0)


# --------------------------------------------------------------------------- pass 2
def _bn_act_nchw_kernel(y_ref, scale_ref, shift_ref, o_ref, *, negative_slope, use_act):
    """Folded BN affine + LeakyReLU on one image, transposed in-kernel to NCHW."""
    y = y_ref[0].astype(jnp.float32)                 # single upcast from the bf16 intermediate
    y = y * scale_ref[...] + shift_ref[...]          # (1, Cpad) broadcast -> per-element FMA
    if use_act:
        y = jnp.where(y >= 0, y, negative_slope * y)
    o_ref[0] = y.T                                   # XLU transpose folds the NCHW epilogue


# ------------------------------------------------------------------------------ glue
def down_conv_block(x, weight, gamma, beta, *, stride=1, padding=0, eps=1e-5,
                    negative_slope=0.2, use_norm=True, use_act=True,
                    use_avgpool=False):
    """x: (N, Cin, H, W) f32; weight: (Cout, Cin, KH, KW). Returns NCHW f32."""
    n, cin, h, w_in = x.shape
    cout, cin_w, kh, kw = weight.shape
    assert cin == cin_w
    oh = (h + 2 * padding - kh) // stride + 1
    ow = (w_in + 2 * padding - kw) // stride + 1
    h_pad, w_pad = h + 2 * padding, w_in + 2 * padding
    k_dim = kh * kw * cin
    ohw = oh * ow
    ohw_pad = _round_up(ohw, 8)                      # sublane-aligned activation rows
    # Lane-dense output channels; full 256-wide MXU N on v6e/v7x when Cout > 128.
    c_pad = _round_up(cout, 256) if cout > 128 else 128

    # NCHW -> padded NHWC bf16 in one fused XLA pass (cast folded into the transpose).
    # TODO(synk): in a fused multi-layer pipeline keep NHWC bf16 end-to-end and drop this.
    x_nhwc = jnp.transpose(x, (0, 2, 3, 1))
    if padding:
        x_nhwc = jnp.pad(x_nhwc, ((0, 0), (padding, padding), (padding, padding), (0, 0)))
    x_nhwc = x_nhwc.astype(jnp.bfloat16)

    # Weight as (KH*KW*Cin, Cpad) bf16; column order matches the in-kernel patch layout.
    w2d = weight.transpose(2, 3, 1, 0).reshape(k_dim, cout)
    w2d = jnp.pad(w2d, ((0, 0), (0, c_pad - cout))).astype(jnp.bfloat16)

    vmem_limit = _vmem_limit_bytes(h_pad, w_pad, cin, oh, ow, ohw_pad, k_dim, c_pad)

    # ---- pass 1: direct conv (GEMM) + per-image batch-stat partials, megacore-shardable
    kern1 = functools.partial(_conv_stats_kernel, kh=kh, kw=kw, cin=cin,
                              oh=oh, ow=ow, stride=stride)
    y_bf16, stats = pl.pallas_call(
        kern1,
        out_shape=(jax.ShapeDtypeStruct((n, ohw_pad, c_pad), jnp.bfloat16),
                   jax.ShapeDtypeStruct((n, 2, c_pad), jnp.float32)),
        grid=(n,),
        in_specs=[pl.BlockSpec((1, h_pad, w_pad, cin), lambda b: (b, 0, 0, 0)),
                  pl.BlockSpec((k_dim, c_pad), lambda b: (0, 0))],
        out_specs=(pl.BlockSpec((1, ohw_pad, c_pad), lambda b: (b, 0, 0)),
                   pl.BlockSpec((1, 2, c_pad), lambda b: (b, 0, 0))),
        scratch_shapes=[pltpu.VMEM((oh, ow, k_dim), jnp.bfloat16)],
        compiler_params=pltpu.CompilerParams(
            dimension_semantics=("parallel",),
            vmem_limit_bytes=vmem_limit),
    )(x_nhwc, w2d)

    # Per-channel fold of the batch statistics into (scale, shift): O(C) work, done in XLA.
    # NOTE: E[y^2] - E[y]^2 in f32 over per-image partials; for extreme M consider a
    # Welford/centered second pass (documented correctness caveat).
    if use_norm:
        m_count = float(n * ohw)
        stot = jnp.sum(stats, axis=0)                # (2, Cpad)
        mean = stot[0] / m_count
        var = jnp.maximum(stot[1] / m_count - mean * mean, 0.0)
        g = jnp.pad(gamma.astype(jnp.float32), (0, c_pad - cout))
        bta = jnp.pad(beta.astype(jnp.float32), (0, c_pad - cout))
        scale = g * lax.rsqrt(var + eps)
        shift = bta - mean * scale
    else:
        scale = jnp.ones((c_pad,), jnp.float32)
        shift = jnp.zeros((c_pad,), jnp.float32)
    scale = scale.reshape(1, c_pad)
    shift = shift.reshape(1, c_pad)

    # ---- pass 2: fused BN affine + LeakyReLU + in-kernel NHWC->NCHW transpose
    kern2 = functools.partial(_bn_act_nchw_kernel, negative_slope=negative_slope,
                              use_act=use_act)
    out_pad = pl.pallas_call(
        kern2,
        out_shape=jax.ShapeDtypeStruct((n, c_pad, ohw_pad), jnp.float32),
        grid=(n,),
        in_specs=[pl.BlockSpec((1, ohw_pad, c_pad), lambda b: (b, 0, 0)),
                  pl.BlockSpec((1, c_pad), lambda b: (0, 0)),
                  pl.BlockSpec((1, c_pad), lambda b: (0, 0))],
        out_specs=pl.BlockSpec((1, c_pad, ohw_pad), lambda b: (b, 0, 0)),
        compiler_params=pltpu.CompilerParams(
            dimension_semantics=("parallel",),
            vmem_limit_bytes=vmem_limit),
    )(y_bf16, scale, shift)

    # Strip channel/row padding; the trailing reshape is layout-free.
    y = out_pad[:, :cout, :ohw].reshape(n, cout, oh, ow)

    if use_avgpool:
        # TODO(synk): AvgPool2d(2, stride=1) (off by default) kept in plain JAX.
        y = lax.reduce_window(y, 0.0, lax.add, (1, 1, 2, 2), (1, 1, 1, 1), 'VALID') / 4.0
    # TODO(synk): train-mode BatchNorm2d also updates running_mean/running_var; only
    # the batch-stat-normalized forward activation is produced here.
    return y


# ------------------------------------------------------------------------- reference
def _reference(x, weight, gamma, beta, *, stride=1, padding=0, eps=1e-5, slope=0.2):
    pad = [(padding, padding), (padding, padding)]
    y = lax.conv_general_dilated(x, weight, (stride, stride), pad,
                                 dimension_numbers=('NCHW', 'OIHW', 'NCHW'))
    mean = jnp.mean(y, axis=(0, 2, 3), keepdims=True)
    var = jnp.mean((y - mean) ** 2, axis=(0, 2, 3), keepdims=True)
    y = (y - mean) / jnp.sqrt(var + eps)
    y = y * gamma.reshape(1, -1, 1, 1) + beta.reshape(1, -1, 1, 1)
    return jnp.where(y >= 0, y, slope * y)


if __name__ == "__main__":
    key = jax.random.PRNGKey(0)
    kx, kw_, kg, kb = jax.random.split(key, 4)

    N, Cin, H, W = 2, 4, 16, 16
    Cout, K = 8, 3

    x = jax.random.normal(kx, (N, Cin, H, W), jnp.float32)
    fan_in = Cin * K * K
    bound = (1.0 / fan_in) ** 0.5
    weight = jax.random.uniform(kw_, (Cout, Cin, K, K), jnp.float32, -bound, bound)
    gamma = jax.random.uniform(kg, (Cout,), jnp.float32, 0.5, 1.5)
    beta = 0.1 * jax.random.normal(kb, (Cout,), jnp.float32)

    # Module defaults: stride=1, padding=0, BN + LeakyReLU(0.2).
    fwd = jax.jit(down_conv_block)
    y = jax.block_until_ready(fwd(x, weight, gamma, beta))
    y_ref = _reference(x, weight, gamma, beta)
    assert y.shape == (N, Cout, H - K + 1, W - K + 1), y.shape
    # bf16 MXU operands + bf16 inter-pass activation -> loosened tolerance.
    assert jnp.allclose(y, y_ref, rtol=2e-2, atol=2e-2), \
        float(jnp.max(jnp.abs(y - y_ref)))

    # padding=1 variant exercises the spatial-padding path.
    fwd_p1 = jax.jit(functools.partial(down_conv_block, padding=1))
    y2 = jax.block_until_ready(fwd_p1(x, weight, gamma, beta))
    y2_ref = _reference(x, weight, gamma, beta, padding=1)
    assert y2.shape == (N, Cout, H, W), y2.shape
    assert jnp.allclose(y2, y2_ref, rtol=2e-2, atol=2e-2), \
        float(jnp.max(jnp.abs(y2 - y2_ref)))

    print("KERNEL_OK")
</pallas_src>

<mosaic_0001>
module attributes {stable_mosaic.version = 11 : i64} {
  func.func @_bn_act_nchw_kernel(%arg0: i32, %arg1: memref<1x200x128xbf16, #tpu.memory_space<vmem>>, %arg2: memref<1x128xf32, #tpu.memory_space<vmem>>, %arg3: memref<1x128xf32, #tpu.memory_space<vmem>>, %arg4: memref<1x128x200xf32, #tpu.memory_space<vmem>>) attributes {dimension_semantics = [#tpu.dimension_semantics<parallel>], iteration_bounds = array<i64: 2>, scalar_prefetch = 0 : i64, scratch_operands = 0 : i64, tpu.core_type = #tpu.core_type<tc>, window_params = [{transform_indices = @transform_0, window_bounds = array<i64: 1, 200, 128>}, {pipeline_mode = #tpu.pipeline_mode<synchronous>, transform_indices = @transform_1, window_bounds = array<i64: 1, 128>}, {pipeline_mode = #tpu.pipeline_mode<synchronous>, transform_indices = @transform_2, window_bounds = array<i64: 1, 128>}, {transform_indices = @transform_3, window_bounds = array<i64: 1, 128, 200>}]} {
    %c0 = arith.constant 0 : index
    %c0_0 = arith.constant 0 : index
    %c0_1 = arith.constant 0 : index
    %0 = vector.load %arg1[%c0, %c0_0, %c0_1] : memref<1x200x128xbf16, #tpu.memory_space<vmem>>, vector<1x200x128xbf16>
    %1 = vector.shape_cast %0 : vector<1x200x128xbf16> to vector<200x128xbf16>
    %2 = arith.extf %1 : vector<200x128xbf16> to vector<200x128xf32>
    %c0_2 = arith.constant 0 : index
    %c0_3 = arith.constant 0 : index
    %3 = vector.load %arg2[%c0_2, %c0_3] : memref<1x128xf32, #tpu.memory_space<vmem>>, vector<1x128xf32>
    %4 = vector.broadcast %3 : vector<1x128xf32> to vector<200x128xf32>
    %5 = arith.mulf %2, %4 : vector<200x128xf32>
    %c0_4 = arith.constant 0 : index
    %c0_5 = arith.constant 0 : index
    %6 = vector.load %arg3[%c0_4, %c0_5] : memref<1x128xf32, #tpu.memory_space<vmem>>, vector<1x128xf32>
    %7 = vector.broadcast %6 : vector<1x128xf32> to vector<200x128xf32>
    %8 = arith.addf %5, %7 : vector<200x128xf32>
    %cst = arith.constant 0.000000e+00 : f32
    %9 = vector.broadcast %cst : f32 to vector<200x128xf32>
    %10 = arith.cmpf oge, %8, %9 : vector<200x128xf32>
    %cst_6 = arith.constant 2.000000e-01 : f32
    %11 = vector.broadcast %cst_6 : f32 to vector<200x128xf32>
    %12 = arith.mulf %11, %8 : vector<200x128xf32>
    %13 = arith.select %10, %8, %12 : vector<200x128xi1>, vector<200x128xf32>
    %14 = tpu.transpose %13, [1, 0] : vector<200x128xf32> -> vector<128x200xf32>
    %c0_7 = arith.constant 0 : index
    %c0_8 = arith.constant 0 : index
    %c0_9 = arith.constant 0 : index
    %15 = vector.load %arg4[%c0_7, %c0_8, %c0_9] : memref<1x128x200xf32, #tpu.memory_space<vmem>>, vector<1x128x200xf32>
    %16 = vector.shape_cast %15 : vector<1x128x200xf32> to vector<128x200xf32>
    %17 = vector.shape_cast %14 : vector<128x200xf32> to vector<1x128x200xf32>
    tpu.vector_store %arg4[%c0_7, %c0_8, %c0_9], %17 {strides = array<i32>} : memref<1x128x200xf32, #tpu.memory_space<vmem>>, vector<1x128x200xf32>,
    return
  }
  func.func @transform_0(%arg0: i32) -> (i32, i32, i32) {
    %c0_i32 = arith.constant 0 : i32
    %c0_i32_0 = arith.constant 0 : i32
    %c0_i32_1 = arith.constant 0 : i32
    return %arg0, %c0_i32, %c0_i32_0 : i32, i32, i32
  }
  func.func @transform_1(%arg0: i32) -> (i32, i32) {
    %c0_i32 = arith.constant 0 : i32
    %c0_i32_0 = arith.constant 0 : i32
    %c0_i32_1 = arith.constant 0 : i32
    return %c0_i32, %c0_i32_0 : i32, i32
  }
  func.func @transform_2(%arg0: i32) -> (i32, i32) {
    %c0_i32 = arith.constant 0 : i32
    %c0_i32_0 = arith.constant 0 : i32
    %c0_i32_1 = arith.constant 0 : i32
    return %c0_i32, %c0_i32_0 : i32, i32
  }
  func.func @transform_3(%arg0: i32) -> (i32, i32, i32) {
    %c0_i32 = arith.constant 0 : i32
    %c0_i32_0 = arith.constant 0 : i32
    %c0_i32_1 = arith.constant 0 : i32
    return %arg0, %c0_i32, %c0_i32_0 : i32, i32, i32
  }
}

module attributes {stable_mosaic.version = 11 : i64} {
  func.func @_conv_stats_kernel(%arg0: i32, %arg1: memref<1x16x16x4xbf16, #tpu.memory_space<vmem>>, %arg2: memref<36x128xbf16, #tpu.memory_space<vmem>>, %arg3: memref<1x200x128xbf16, #tpu.memory_space<vmem>>, %arg4: memref<1x2x128xf32, #tpu.memory_space<vmem>>, %arg5: memref<14x14x36xbf16, #tpu.memory_space<vmem>>) attributes {dimension_semantics = [#tpu.dimension_semantics<parallel>], iteration_bounds = array<i64: 2>, scalar_prefetch = 0 : i64, scratch_operands = 1 : i64, tpu.core_type = #tpu.core_type<tc>, window_params = [{transform_indices = @transform_0, window_bounds = array<i64: 1, 16, 16, 4>}, {pipeline_mode = #tpu.pipeline_mode<synchronous>, transform_indices = @transform_1, window_bounds = array<i64: 36, 128>}, {transform_indices = @transform_2, window_bounds = array<i64: 1, 200, 128>}, {transform_indices = @transform_3, window_bounds = array<i64: 1, 2, 128>}]} {
    %c0 = arith.constant 0 : index
    %c0_0 = arith.constant 0 : index
    %c0_1 = arith.constant 0 : index
    %c0_2 = arith.constant 0 : index
    %0 = vector.load %arg1[%c0, %c0_0, %c0_1, %c0_2] : memref<1x16x16x4xbf16, #tpu.memory_space<vmem>>, vector<1x14x14x4xbf16>
    %1 = vector.shape_cast %0 : vector<1x14x14x4xbf16> to vector<14x14x4xbf16>
    %c0_3 = arith.constant 0 : index
    %c0_4 = arith.constant 0 : index
    %c0_5 = arith.constant 0 : index
    %2 = vector.load %arg5[%c0_3, %c0_4, %c0_5] : memref<14x14x36xbf16, #tpu.memory_space<vmem>>, vector<14x14x4xbf16>
    tpu.vector_store %arg5[%c0_3, %c0_4, %c0_5], %1 {strides = array<i32>} : memref<14x14x36xbf16, #tpu.memory_space<vmem>>, vector<14x14x4xbf16>,
    %c0_6 = arith.constant 0 : index
    %c0_7 = arith.constant 0 : index
    %c1 = arith.constant 1 : index
    %c0_8 = arith.constant 0 : index
    %3 = vector.load %arg1[%c0_6, %c0_7, %c1, %c0_8] : memref<1x16x16x4xbf16, #tpu.memory_space<vmem>>, vector<1x14x14x4xbf16>
    %4 = vector.shape_cast %3 : vector<1x14x14x4xbf16> to vector<14x14x4xbf16>
    %c0_9 = arith.constant 0 : index
    %c0_10 = arith.constant 0 : index
    %c4 = arith.constant 4 : index
    %5 = vector.load %arg5[%c0_9, %c0_10, %c4] : memref<14x14x36xbf16, #tpu.memory_space<vmem>>, vector<14x14x4xbf16>
    tpu.vector_store %arg5[%c0_9, %c0_10, %c4], %4 {strides = array<i32>} : memref<14x14x36xbf16, #tpu.memory_space<vmem>>, vector<14x14x4xbf16>,
    %c0_11 = arith.constant 0 : index
    %c0_12 = arith.constant 0 : index
    %c2 = arith.constant 2 : index
    %c0_13 = arith.constant 0 : index
    %6 = vector.load %arg1[%c0_11, %c0_12, %c2, %c0_13] : memref<1x16x16x4xbf16, #tpu.memory_space<vmem>>, vector<1x14x14x4xbf16>
    %7 = vector.shape_cast %6 : vector<1x14x14x4xbf16> to vector<14x14x4xbf16>
    %c0_14 = arith.constant 0 : index
    %c0_15 = arith.constant 0 : index
    %c8 = arith.constant 8 : index
    %8 = vector.load %arg5[%c0_14, %c0_15, %c8] : memref<14x14x36xbf16, #tpu.memory_space<vmem>>, vector<14x14x4xbf16>
    tpu.vector_store %arg5[%c0_14, %c0_15, %c8], %7 {strides = array<i32>} : memref<14x14x36xbf16, #tpu.memory_space<vmem>>, vector<14x14x4xbf16>,
    %c0_16 = arith.constant 0 : index
    %c1_17 = arith.constant 1 : index
    %c0_18 = arith.constant 0 : index
    %c0_19 = arith.constant 0 : index
    %9 = vector.load %arg1[%c0_16, %c1_17, %c0_18, %c0_19] : memref<1x16x16x4xbf16, #tpu.memory_space<vmem>>, vector<1x14x14x4xbf16>
    %10 = vector.shape_cast %9 : vector<1x14x14x4xbf16> to vector<14x14x4xbf16>
    %c0_20 = arith.constant 0 : index
    %c0_21 = arith.constant 0 : index
    %c12 = arith.constant 12 : index
    %11 = vector.load %arg5[%c0_20, %c0_21, %c12] : memref<14x14x36xbf16, #tpu.memory_space<vmem>>, vector<14x14x4xbf16>
    tpu.vector_store %arg5[%c0_20, %c0_21, %c12], %10 {strides = array<i32>} : memref<14x14x36xbf16, #tpu.memory_space<vmem>>, vector<14x14x4xbf16>,
    %c0_22 = arith.constant 0 : index
    %c1_23 = arith.constant 1 : index
    %c1_24 = arith.constant 1 : index
    %c0_25 = arith.constant 0 : index
    %12 = vector.load %arg1[%c0_22, %c1_23, %c1_24, %c0_25] : memref<1x16x16x4xbf16, #tpu.memory_space<vmem>>, vector<1x14x14x4xbf16>
    %13 = vector.shape_cast %12 : vector<1x14x14x4xbf16> to vector<14x14x4xbf16>
    %c0_26 = arith.constant 0 : index
    %c0_27 = arith.constant 0 : index
    %c16 = arith.constant 16 : index
    %14 = vector.load %arg5[%c0_26, %c0_27, %c16] : memref<14x14x36xbf16, #tpu.memory_space<vmem>>, vector<14x14x4xbf16>
    tpu.vector_store %arg5[%c0_26, %c0_27, %c16], %13 {strides = array<i32>} : memref<14x14x36xbf16, #tpu.memory_space<vmem>>, vector<14x14x4xbf16>,
    %c0_28 = arith.constant 0 : index
    %c1_29 = arith.constant 1 : index
    %c2_30 = arith.constant 2 : index
    %c0_31 = arith.constant 0 : index
    %15 = vector.load %arg1[%c0_28, %c1_29, %c2_30, %c0_31] : memref<1x16x16x4xbf16, #tpu.memory_space<vmem>>, vector<1x14x14x4xbf16>
    %16 = vector.shape_cast %15 : vector<1x14x14x4xbf16> to vector<14x14x4xbf16>
    %c0_32 = arith.constant 0 : index
    %c0_33 = arith.constant 0 : index
    %c20 = arith.constant 20 : index
    %17 = vector.load %arg5[%c0_32, %c0_33, %c20] : memref<14x14x36xbf16, #tpu.memory_space<vmem>>, vector<14x14x4xbf16>
    tpu.vector_store %arg5[%c0_32, %c0_33, %c20], %16 {strides = array<i32>} : memref<14x14x36xbf16, #tpu.memory_space<vmem>>, vector<14x14x4xbf16>,
    %c0_34 = arith.constant 0 : index
    %c2_35 = arith.constant 2 : index
    %c0_36 = arith.constant 0 : index
    %c0_37 = arith.constant 0 : index
    %18 = vector.load %arg1[%c0_34, %c2_35, %c0_36, %c0_37] : memref<1x16x16x4xbf16, #tpu.memory_space<vmem>>, vector<1x14x14x4xbf16>
    %19 = vector.shape_cast %18 : vector<1x14x14x4xbf16> to vector<14x14x4xbf16>
    %c0_38 = arith.constant 0 : index
    %c0_39 = arith.constant 0 : index
    %c24 = arith.constant 24 : index
    %20 = vector.load %arg5[%c0_38, %c0_39, %c24] : memref<14x14x36xbf16, #tpu.memory_space<vmem>>, vector<14x14x4xbf16>
    tpu.vector_store %arg5[%c0_38, %c0_39, %c24], %19 {strides = array<i32>} : memref<14x14x36xbf16, #tpu.memory_space<vmem>>, vector<14x14x4xbf16>,
    %c0_40 = arith.constant 0 : index
    %c2_41 = arith.constant 2 : index
    %c1_42 = arith.constant 1 : index
    %c0_43 = arith.constant 0 : index
    %21 = vector.load %arg1[%c0_40, %c2_41, %c1_42, %c0_43] : memref<1x16x16x4xbf16, #tpu.memory_space<vmem>>, vector<1x14x14x4xbf16>
    %22 = vector.shape_cast %21 : vector<1x14x14x4xbf16> to vector<14x14x4xbf16>
    %c0_44 = arith.constant 0 : index
    %c0_45 = arith.constant 0 : index
    %c28 = arith.constant 28 : index
    %23 = vector.load %arg5[%c0_44, %c0_45, %c28] : memref<14x14x36xbf16, #tpu.memory_space<vmem>>, vector<14x14x4xbf16>
    tpu.vector_store %arg5[%c0_44, %c0_45, %c28], %22 {strides = array<i32>} : memref<14x14x36xbf16, #tpu.memory_space<vmem>>, vector<14x14x4xbf16>,
    %c0_46 = arith.constant 0 : index
    %c2_47 = arith.constant 2 : index
    %c2_48 = arith.constant 2 : index
    %c0_49 = arith.constant 0 : index
    %24 = vector.load %arg1[%c0_46, %c2_47, %c2_48, %c0_49] : memref<1x16x16x4xbf16, #tpu.memory_space<vmem>>, vector<1x14x14x4xbf16>
    %25 = vector.shape_cast %24 : vector<1x14x14x4xbf16> to vector<14x14x4xbf16>
    %c0_50 = arith.constant 0 : index
    %c0_51 = arith.constant 0 : index
    %c32 = arith.constant 32 : index
    %26 = vector.load %arg5[%c0_50, %c0_51, %c32] : memref<14x14x36xbf16, #tpu.memory_space<vmem>>, vector<14x14x4xbf16>
    tpu.vector_store %arg5[%c0_50, %c0_51, %c32], %25 {strides = array<i32>} : memref<14x14x36xbf16, #tpu.memory_space<vmem>>, vector<14x14x4xbf16>,
    %c0_52 = arith.constant 0 : index
    %c0_53 = arith.constant 0 : index
    %27 = vector.load %arg2[%c0_52, %c0_53] : memref<36x128xbf16, #tpu.memory_space<vmem>>, vector<36x128xbf16>
    %cst = arith.constant 0.000000e+00 : f32
    %28 = vector.broadcast %cst : f32 to vector<14x128xf32>
    %cst_54 = arith.constant 0.000000e+00 : f32
    %29 = vector.broadcast %cst_54 : f32 to vector<14x128xf32>
    %c0_55 = arith.constant 0 : index
    %c0_56 = arith.constant 0 : index
    %c0_57 = arith.constant 0 : index
    %30 = vector.load %arg5[%c0_55, %c0_56, %c0_57] : memref<14x14x36xbf16, #tpu.memory_space<vmem>>, vector<1x14x36xbf16>
    %31 = vector.shape_cast %30 : vector<1x14x36xbf16> to vector<14x36xbf16>
    %cst_58 = arith.constant dense<0.000000e+00> : vector<14x128xf32>
    %32 = tpu.matmul %31, %27, %cst_58 {dimension_numbers = #tpu.dot_dimension_numbers<[1], [0], [0], [1], [0, 0, 1, 1], [], []>} : vector<14x36xbf16>, vector<36x128xbf16>, vector<14x128xf32> -> vector<14x128xf32>
    %33 = arith.truncf %32 : vector<14x128xf32> to vector<14x128xbf16>
    %c0_59 = arith.constant 0 : index
    %c0_60 = arith.constant 0 : index
    %c0_61 = arith.constant 0 : index
    %34 = vector.load %arg3[%c0_59, %c0_60, %c0_61] : memref<1x200x128xbf16, #tpu.memory_space<vmem>>, vector<1x14x128xbf16>
    %35 = vector.shape_cast %34 : vector<1x14x128xbf16> to vector<14x128xbf16>
    %36 = vector.shape_cast %33 : vector<14x128xbf16> to vector<1x14x128xbf16>
    tpu.vector_store %arg3[%c0_59, %c0_60, %c0_61], %36 {strides = array<i32>} : memref<1x200x128xbf16, #tpu.memory_space<vmem>>, vector<1x14x128xbf16>,
    %37 = arith.addf %28, %32 : vector<14x128xf32>
    %38 = arith.mulf %32, %32 : vector<14x128xf32>
    %39 = arith.addf %29, %38 : vector<14x128xf32>
    %c1_62 = arith.constant 1 : index
    %c0_63 = arith.constant 0 : index
    %c0_64 = arith.constant 0 : index
    %40 = vector.load %arg5[%c1_62, %c0_63, %c0_64] : memref<14x14x36xbf16, #tpu.memory_space<vmem>>, vector<1x14x36xbf16>
    %41 = vector.shape_cast %40 : vector<1x14x36xbf16> to vector<14x36xbf16>
    %cst_65 = arith.constant dense<0.000000e+00> : vector<14x128xf32>
    %42 = tpu.matmul %41, %27, %cst_65 {dimension_numbers = #tpu.dot_dimension_numbers<[1], [0], [0], [1], [0, 0, 1, 1], [], []>} : vector<14x36xbf16>, vector<36x128xbf16>, vector<14x128xf32> -> vector<14x128xf32>
    %43 = arith.truncf %42 : vector<14x128xf32> to vector<14x128xbf16>
    %c0_66 = arith.constant 0 : index
    %c14 = arith.constant 14 : index
    %c0_67 = arith.constant 0 : index
    %44 = vector.load %arg3[%c0_66, %c14, %c0_67] : memref<1x200x128xbf16, #tpu.memory_space<vmem>>, vector<1x14x128xbf16>
    %45 = vector.shape_cast %44 : vector<1x14x128xbf16> to vector<14x128xbf16>
    %46 = vector.shape_cast %43 : vector<14x128xbf16> to vector<1x14x128xbf16>
    tpu.vector_store %arg3[%c0_66, %c14, %c0_67], %46 {strides = array<i32>} : memref<1x200x128xbf16, #tpu.memory_space<vmem>>, vector<1x14x128xbf16>,
    %47 = arith.addf %37, %42 : vector<14x128xf32>
    %48 = arith.mulf %42, %42 : vector<14x128xf32>
    %49 = arith.addf %39, %48 : vector<14x128xf32>
    %c2_68 = arith.constant 2 : index
    %c0_69 = arith.constant 0 : index
    %c0_70 = arith.constant 0 : index
    %50 = vector.load %arg5[%c2_68, %c0_69, %c0_70] : memref<14x14x36xbf16, #tpu.memory_space<vmem>>, vector<1x14x36xbf16>
    %51 = vector.shape_cast %50 : vector<1x14x36xbf16> to vector<14x36xbf16>
    %cst_71 = arith.constant dense<0.000000e+00> : vector<14x128xf32>
    %52 = tpu.matmul %51, %27, %cst_71 {dimension_numbers = #tpu.dot_dimension_numbers<[1], [0], [0], [1], [0, 0, 1, 1], [], []>} : vector<14x36xbf16>, vector<36x128xbf16>, vector<14x128xf32> -> vector<14x128xf32>
    %53 = arith.truncf %52 : vector<14x128xf32> to vector<14x128xbf16>
    %c0_72 = arith.constant 0 : index
    %c28_73 = arith.constant 28 : index
    %c0_74 = arith.constant 0 : index
    %54 = vector.load %arg3[%c0_72, %c28_73, %c0_74] : memref<1x200x128xbf16, #tpu.memory_space<vmem>>, vector<1x14x128xbf16>
    %55 = vector.shape_cast %54 : vector<1x14x128xbf16> to vector<14x128xbf16>
    %56 = vector.shape_cast %53 : vector<14x128xbf16> to vector<1x14x128xbf16>
    tpu.vector_store %arg3[%c0_72, %c28_73, %c0_74], %56 {strides = array<i32>} : memref<1x200x128xbf16, #tpu.memory_space<vmem>>, vector<1x14x128xbf16>,
    %57 = arith.addf %47, %52 : vector<14x128xf32>
    %58 = arith.mulf %52, %52 : vector<14x128xf32>
    %59 = arith.addf %49, %58 : vector<14x128xf32>
    %c3 = arith.constant 3 : index
    %c0_75 = arith.constant 0 : index
    %c0_76 = arith.constant 0 : index
    %60 = vector.load %arg5[%c3, %c0_75, %c0_76] : memref<14x14x36xbf16, #tpu.memory_space<vmem>>, vector<1x14x36xbf16>
    %61 = vector.shape_cast %60 : vector<1x14x36xbf16> to vector<14x36xbf16>
    %cst_77 = arith.constant dense<0.000000e+00> : vector<14x128xf32>
    %62 = tpu.matmul %61, %27, %cst_77 {dimension_numbers = #tpu.dot_dimension_numbers<[1], [0], [0], [1], [0, 0, 1, 1], [], []>} : vector<14x36xbf16>, vector<36x128xbf16>, vector<14x128xf32> -> vector<14x128xf32>
    %63 = arith.truncf %62 : vector<14x128xf32> to vector<14x128xbf16>
    %c0_78 = arith.constant 0 : index
    %c42 = arith.constant 42 : index
    %c0_79 = arith.constant 0 : index
    %64 = vector.load %arg3[%c0_78, %c42, %c0_79] : memref<1x200x128xbf16, #tpu.memory_space<vmem>>, vector<1x14x128xbf16>
    %65 = vector.shape_cast %64 : vector<1x14x128xbf16> to vector<14x128xbf16>
    %66 = vector.shape_cast %63 : vector<14x128xbf16> to vector<1x14x128xbf16>
    tpu.vector_store %arg3[%c0_78, %c42, %c0_79], %66 {strides = array<i32>} : memref<1x200x128xbf16, #tpu.memory_space<vmem>>, vector<1x14x128xbf16>,
    %67 = arith.addf %57, %62 : vector<14x128xf32>
    %68 = arith.mulf %62, %62 : vector<14x128xf32>
    %69 = arith.addf %59, %68 : vector<14x128xf32>
    %c4_80 = arith.constant 4 : index
    %c0_81 = arith.constant 0 : index
    %c0_82 = arith.constant 0 : index
    %70 = vector.load %arg5[%c4_80, %c0_81, %c0_82] : memref<14x14x36xbf16, #tpu.memory_space<vmem>>, vector<1x14x36xbf16>
    %71 = vector.shape_cast %70 : vector<1x14x36xbf16> to vector<14x36xbf16>
    %cst_83 = arith.constant dense<0.000000e+00> : vector<14x128xf32>
    %72 = tpu.matmul %71, %27, %cst_83 {dimension_numbers = #tpu.dot_dimension_numbers<[1], [0], [0], [1], [0, 0, 1, 1], [], []>} : vector<14x36xbf16>, vector<36x128xbf16>, vector<14x128xf32> -> vector<14x128xf32>
    %73 = arith.truncf %72 : vector<14x128xf32> to vector<14x128xbf16>
    %c0_84 = arith.constant 0 : index
    %c56 = arith.constant 56 : index
    %c0_85 = arith.constant 0 : index
    %74 = vector.load %arg3[%c0_84, %c56, %c0_85] : memref<1x200x128xbf16, #tpu.memory_space<vmem>>, vector<1x14x128xbf16>
    %75 = vector.shape_cast %74 : vector<1x14x128xbf16> to vector<14x128xbf16>
    %76 = vector.shape_cast %73 : vector<14x128xbf16> to vector<1x14x128xbf16>
    tpu.vector_store %arg3[%c0_84, %c56, %c0_85], %76 {strides = array<i32>} : memref<1x200x128xbf16, #tpu.memory_space<vmem>>, vector<1x14x128xbf16>,
    %77 = arith.addf %67, %72 : vector<14x128xf32>
    %78 = arith.mulf %72, %72 : vector<14x128xf32>
    %79 = arith.addf %69, %78 : vector<14x128xf32>
    %c5 = arith.constant 5 : index
    %c0_86 = arith.constant 0 : index
    %c0_87 = arith.constant 0 : index
    %80 = vector.load %arg5[%c5, %c0_86, %c0_87] : memref<14x14x36xbf16, #tpu.memory_space<vmem>>, vector<1x14x36xbf16>
    %81 = vector.shape_cast %80 : vector<1x14x36xbf16> to vector<14x36xbf16>
    %cst_88 = arith.constant dense<0.000000e+00> : vector<14x128xf32>
    %82 = tpu.matmul %81, %27, %cst_88 {dimension_numbers = #tpu.dot_dimension_numbers<[1], [0], [0], [1], [0, 0, 1, 1], [], []>} : vector<14x36xbf16>, vector<36x128xbf16>, vector<14x128xf32> -> vector<14x128xf32>
    %83 = arith.truncf %82 : vector<14x128xf32> to vector<14x128xbf16>
    %c0_89 = arith.constant 0 : index
    %c70 = arith.constant 70 : index
    %c0_90 = arith.constant 0 : index
    %84 = vector.load %arg3[%c0_89, %c70, %c0_90] : memref<1x200x128xbf16, #tpu.memory_space<vmem>>, vector<1x14x128xbf16>
    %85 = vector.shape_cast %84 : vector<1x14x128xbf16> to vector<14x128xbf16>
    %86 = vector.shape_cast %83 : vector<14x128xbf16> to vector<1x14x128xbf16>
    tpu.vector_store %arg3[%c0_89, %c70, %c0_90], %86 {strides = array<i32>} : memref<1x200x128xbf16, #tpu.memory_space<vmem>>, vector<1x14x128xbf16>,
    %87 = arith.addf %77, %82 : vector<14x128xf32>
    %88 = arith.mulf %82, %82 : vector<14x128xf32>
    %89 = arith.addf %79, %88 : vector<14x128xf32>
    %c6 = arith.constant 6 : index
    %c0_91 = arith.constant 0 : index
    %c0_92 = arith.constant 0 : index
    %90 = vector.load %arg5[%c6, %c0_91, %c0_92] : memref<14x14x36xbf16, #tpu.memory_space<vmem>>, vector<1x14x36xbf16>
    %91 = vector.shape_cast %90 : vector<1x14x36xbf16> to vector<14x36xbf16>
    %cst_93 = arith.constant dense<0.000000e+00> : vector<14x128xf32>
    %92 = tpu.matmul %91, %27, %cst_93 {dimension_numbers = #tpu.dot_dimension_numbers<[1], [0], [0], [1], [0, 0, 1, 1], [], []>} : vector<14x36xbf16>, vector<36x128xbf16>, vector<14x128xf32> -> vector<14x128xf32>
    %93 = arith.truncf %92 : vector<14x128xf32> to vector<14x128xbf16>
    %c0_94 = arith.constant 0 : index
    %c84 = arith.constant 84 : index
    %c0_95 = arith.constant 0 : index
    %94 = vector.load %arg3[%c0_94, %c84, %c0_95] : memref<1x200x128xbf16, #tpu.memory_space<vmem>>, vector<1x14x128xbf16>
    %95 = vector.shape_cast %94 : vector<1x14x128xbf16> to vector<14x128xbf16>
    %96 = vector.shape_cast %93 : vector<14x128xbf16> to vector<1x14x128xbf16>
    tpu.vector_store %arg3[%c0_94, %c84, %c0_95], %96 {strides = array<i32>} : memref<1x200x128xbf16, #tpu.memory_space<vmem>>, vector<1x14x128xbf16>,
    %97 = arith.addf %87, %92 : vector<14x128xf32>
    %98 = arith.mulf %92, %92 : vector<14x128xf32>
    %99 = arith.addf %89, %98 : vector<14x128xf32>
    %c7 = arith.constant 7 : index
    %c0_96 = arith.constant 0 : index
    %c0_97 = arith.constant 0 : index
    %100 = vector.load %arg5[%c7, %c0_96, %c0_97] : memref<14x14x36xbf16, #tpu.memory_space<vmem>>, vector<1x14x36xbf16>
    %101 = vector.shape_cast %100 : vector<1x14x36xbf16> to vector<14x36xbf16>
    %cst_98 = arith.constant dense<0.000000e+00> : vector<14x128xf32>
    %102 = tpu.matmul %101, %27, %cst_98 {dimension_numbers = #tpu.dot_dimension_numbers<[1], [0], [0], [1], [0, 0, 1, 1], [], []>} : vector<14x36xbf16>, vector<36x128xbf16>, vector<14x128xf32> -> vector<14x128xf32>
    %103 = arith.truncf %102 : vector<14x128xf32> to vector<14x128xbf16>
    %c0_99 = arith.constant 0 : index
    %c98 = arith.constant 98 : index
    %c0_100 = arith.constant 0 : index
    %104 = vector.load %arg3[%c0_99, %c98, %c0_100] : memref<1x200x128xbf16, #tpu.memory_space<vmem>>, vector<1x14x128xbf16>
    %105 = vector.shape_cast %104 : vector<1x14x128xbf16> to vector<14x128xbf16>
    %106 = vector.shape_cast %103 : vector<14x128xbf16> to vector<1x14x128xbf16>
    tpu.vector_store %arg3[%c0_99, %c98, %c0_100], %106 {strides = array<i32>} : memref<1x200x128xbf16, #tpu.memory_space<vmem>>, vector<1x14x128xbf16>,
    %107 = arith.addf %97, %102 : vector<14x128xf32>
    %108 = arith.mulf %102, %102 : vector<14x128xf32>
    %109 = arith.addf %99, %108 : vector<14x128xf32>
    %c8_101 = arith.constant 8 : index
    %c0_102 = arith.constant 0 : index
    %c0_103 = arith.constant 0 : index
    %110 = vector.load %arg5[%c8_101, %c0_102, %c0_103] : memref<14x14x36xbf16, #tpu.memory_space<vmem>>, vector<1x14x36xbf16>
    %111 = vector.shape_cast %110 : vector<1x14x36xbf16> to vector<14x36xbf16>
    %cst_104 = arith.constant dense<0.000000e+00> : vector<14x128xf32>
    %112 = tpu.matmul %111, %27, %cst_104 {dimension_numbers = #tpu.dot_dimension_numbers<[1], [0], [0], [1], [0, 0, 1, 1], [], []>} : vector<14x36xbf16>, vector<36x128xbf16>, vector<14x128xf32> -> vector<14x128xf32>
    %113 = arith.truncf %112 : vector<14x128xf32> to vector<14x128xbf16>
    %c0_105 = arith.constant 0 : index
    %c112 = arith.constant 112 : index
    %c0_106 = arith.constant 0 : index
    %114 = vector.load %arg3[%c0_105, %c112, %c0_106] : memref<1x200x128xbf16, #tpu.memory_space<vmem>>, vector<1x14x128xbf16>
    %115 = vector.shape_cast %114 : vector<1x14x128xbf16> to vector<14x128xbf16>
    %116 = vector.shape_cast %113 : vector<14x128xbf16> to vector<1x14x128xbf16>
    tpu.vector_store %arg3[%c0_105, %c112, %c0_106], %116 {strides = array<i32>} : memref<1x200x128xbf16, #tpu.memory_space<vmem>>, vector<1x14x128xbf16>,
    %117 = arith.addf %107, %112 : vector<14x128xf32>
    %118 = arith.mulf %112, %112 : vector<14x128xf32>
    %119 = arith.addf %109, %118 : vector<14x128xf32>
    %c9 = arith.constant 9 : index
    %c0_107 = arith.constant 0 : index
    %c0_108 = arith.constant 0 : index
    %120 = vector.load %arg5[%c9, %c0_107, %c0_108] : memref<14x14x36xbf16, #tpu.memory_space<vmem>>, vector<1x14x36xbf16>
    %121 = vector.shape_cast %120 : vector<1x14x36xbf16> to vector<14x36xbf16>
    %cst_109 = arith.constant dense<0.000000e+00> : vector<14x128xf32>
    %122 = tpu.matmul %121, %27, %cst_109 {dimension_numbers = #tpu.dot_dimension_numbers<[1], [0], [0], [1], [0, 0, 1, 1], [], []>} : vector<14x36xbf16>, vector<36x128xbf16>, vector<14x128xf32> -> vector<14x128xf32>
    %123 = arith.truncf %122 : vector<14x128xf32> to vector<14x128xbf16>
    %c0_110 = arith.constant 0 : index
    %c126 = arith.constant 126 : index
    %c0_111 = arith.constant 0 : index
    %124 = vector.load %arg3[%c0_110, %c126, %c0_111] : memref<1x200x128xbf16, #tpu.memory_space<vmem>>, vector<1x14x128xbf16>
    %125 = vector.shape_cast %124 : vector<1x14x128xbf16> to vector<14x128xbf16>
    %126 = vector.shape_cast %123 : vector<14x128xbf16> to vector<1x14x128xbf16>
    tpu.vector_store %arg3[%c0_110, %c126, %c0_111], %126 {strides = array<i32>} : memref<1x200x128xbf16, #tpu.memory_space<vmem>>, vector<1x14x128xbf16>,
    %127 = arith.addf %117, %122 : vector<14x128xf32>
    %128 = arith.mulf %122, %122 : vector<14x128xf32>
    %129 = arith.addf %119, %128 : vector<14x128xf32>
    %c10 = arith.constant 10 : index
    %c0_112 = arith.constant 0 : index
    %c0_113 = arith.constant 0 : index
    %130 = vector.load %arg5[%c10, %c0_112, %c0_113] : memref<14x14x36xbf16, #tpu.memory_space<vmem>>, vector<1x14x36xbf16>
    %131 = vector.shape_cast %130 : vector<1x14x36xbf16> to vector<14x36xbf16>
    %cst_114 = arith.constant dense<0.000000e+00> : vector<14x128xf32>
    %132 = tpu.matmul %131, %27, %cst_114 {dimension_numbers = #tpu.dot_dimension_numbers<[1], [0], [0], [1], [0, 0, 1, 1], [], []>} : vector<14x36xbf16>, vector<36x128xbf16>, vector<14x128xf32> -> vector<14x128xf32>
    %133 = arith.truncf %132 : vector<14x128xf32> to vector<14x128xbf16>
    %c0_115 = arith.constant 0 : index
    %c140 = arith.constant 140 : index
    %c0_116 = arith.constant 0 : index
    %134 = vector.load %arg3[%c0_115, %c140, %c0_116] : memref<1x200x128xbf16, #tpu.memory_space<vmem>>, vector<1x14x128xbf16>
    %135 = vector.shape_cast %134 : vector<1x14x128xbf16> to vector<14x128xbf16>
    %136 = vector.shape_cast %133 : vector<14x128xbf16> to vector<1x14x128xbf16>
    tpu.vector_store %arg3[%c0_115, %c140, %c0_116], %136 {strides = array<i32>} : memref<1x200x128xbf16, #tpu.memory_space<vmem>>, vector<1x14x128xbf16>,
    %137 = arith.addf %127, %132 : vector<14x128xf32>
    %138 = arith.mulf %132, %132 : vector<14x128xf32>
    %139 = arith.addf %129, %138 : vector<14x128xf32>
    %c11 = arith.constant 11 : index
    %c0_117 = arith.constant 0 : index
    %c0_118 = arith.constant 0 : index
    %140 = vector.load %arg5[%c11, %c0_117, %c0_118] : memref<14x14x36xbf16, #tpu.memory_space<vmem>>, vector<1x14x36xbf16>
    %141 = vector.shape_cast %140 : vector<1x14x36xbf16> to vector<14x36xbf16>
    %cst_119 = arith.constant dense<0.000000e+00> : vector<14x128xf32>
    %142 = tpu.matmul %141, %27, %cst_119 {dimension_numbers = #tpu.dot_dimension_numbers<[1], [0], [0], [1], [0, 0, 1, 1], [], []>} : vector<14x36xbf16>, vector<36x128xbf16>, vector<14x128xf32> -> vector<14x128xf32>
    %143 = arith.truncf %142 : vector<14x128xf32> to vector<14x128xbf16>
    %c0_120 = arith.constant 0 : index
    %c154 = arith.constant 154 : index
    %c0_121 = arith.constant 0 : index
    %144 = vector.load %arg3[%c0_120, %c154, %c0_121] : memref<1x200x128xbf16, #tpu.memory_space<vmem>>, vector<1x14x128xbf16>
    %145 = vector.shape_cast %144 : vector<1x14x128xbf16> to vector<14x128xbf16>
    %146 = vector.shape_cast %143 : vector<14x128xbf16> to vector<1x14x128xbf16>
    tpu.vector_store %arg3[%c0_120, %c154, %c0_121], %146 {strides = array<i32>} : memref<1x200x128xbf16, #tpu.memory_space<vmem>>, vector<1x14x128xbf16>,
    %147 = arith.addf %137, %142 : vector<14x128xf32>
    %148 = arith.mulf %142, %142 : vector<14x128xf32>
    %149 = arith.addf %139, %148 : vector<14x128xf32>
    %c12_122 = arith.constant 12 : index
    %c0_123 = arith.constant 0 : index
    %c0_124 = arith.constant 0 : index
    %150 = vector.load %arg5[%c12_122, %c0_123, %c0_124] : memref<14x14x36xbf16, #tpu.memory_space<vmem>>, vector<1x14x36xbf16>
    %151 = vector.shape_cast %150 : vector<1x14x36xbf16> to vector<14x36xbf16>
    %cst_125 = arith.constant dense<0.000000e+00> : vector<14x128xf32>
    %152 = tpu.matmul %151, %27, %cst_125 {dimension_numbers = #tpu.dot_dimension_numbers<[1], [0], [0], [1], [0, 0, 1, 1], [], []>} : vector<14x36xbf16>, vector<36x128xbf16>, vector<14x128xf32> -> vector<14x128xf32>
    %153 = arith.truncf %152 : vector<14x128xf32> to vector<14x128xbf16>
    %c0_126 = arith.constant 0 : index
    %c168 = arith.constant 168 : index
    %c0_127 = arith.constant 0 : index
    %154 = vector.load %arg3[%c0_126, %c168, %c0_127] : memref<1x200x128xbf16, #tpu.memory_space<vmem>>, vector<1x14x128xbf16>
    %155 = vector.shape_cast %154 : vector<1x14x128xbf16> to vector<14x128xbf16>
    %156 = vector.shape_cast %153 : vector<14x128xbf16> to vector<1x14x128xbf16>
    tpu.vector_store %arg3[%c0_126, %c168, %c0_127], %156 {strides = array<i32>} : memref<1x200x128xbf16, #tpu.memory_space<vmem>>, vector<1x14x128xbf16>,
    %157 = arith.addf %147, %152 : vector<14x128xf32>
    %158 = arith.mulf %152, %152 : vector<14x128xf32>
    %159 = arith.addf %149, %158 : vector<14x128xf32>
    %c13 = arith.constant 13 : index
    %c0_128 = arith.constant 0 : index
    %c0_129 = arith.constant 0 : index
    %160 = vector.load %arg5[%c13, %c0_128, %c0_129] : memref<14x14x36xbf16, #tpu.memory_space<vmem>>, vector<1x14x36xbf16>
    %161 = vector.shape_cast %160 : vector<1x14x36xbf16> to vector<14x36xbf16>
    %cst_130 = arith.constant dense<0.000000e+00> : vector<14x128xf32>
    %162 = tpu.matmul %161, %27, %cst_130 {dimension_numbers = #tpu.dot_dimension_numbers<[1], [0], [0], [1], [0, 0, 1, 1], [], []>} : vector<14x36xbf16>, vector<36x128xbf16>, vector<14x128xf32> -> vector<14x128xf32>
    %163 = arith.truncf %162 : vector<14x128xf32> to vector<14x128xbf16>
    %c0_131 = arith.constant 0 : index
    %c182 = arith.constant 182 : index
    %c0_132 = arith.constant 0 : index
    %164 = vector.load %arg3[%c0_131, %c182, %c0_132] : memref<1x200x128xbf16, #tpu.memory_space<vmem>>, vector<1x14x128xbf16>
    %165 = vector.shape_cast %164 : vector<1x14x128xbf16> to vector<14x128xbf16>
    %166 = vector.shape_cast %163 : vector<14x128xbf16> to vector<1x14x128xbf16>
    tpu.vector_store %arg3[%c0_131, %c182, %c0_132], %166 {strides = array<i32>} : memref<1x200x128xbf16, #tpu.memory_space<vmem>>, vector<1x14x128xbf16>,
    %167 = arith.addf %157, %162 : vector<14x128xf32>
    %168 = arith.mulf %162, %162 : vector<14x128xf32>
    %169 = arith.addf %159, %168 : vector<14x128xf32>
    %cst_133 = arith.constant 0.000000e+00 : bf16
    %170 = vector.broadcast %cst_133 : bf16 to vector<4x128xbf16>
    %c0_134 = arith.constant 0 : index
    %c196 = arith.constant 196 : index
    %c0_135 = arith.constant 0 : index
    %171 = vector.load %arg3[%c0_134, %c196, %c0_135] : memref<1x200x128xbf16, #tpu.memory_space<vmem>>, vector<1x4x128xbf16>
    %172 = vector.shape_cast %171 : vector<1x4x128xbf16> to vector<4x128xbf16>
    %173 = vector.shape_cast %170 : vector<4x128xbf16> to vector<1x4x128xbf16>
    tpu.vector_store %arg3[%c0_134, %c196, %c0_135], %173 {strides = array<i32>} : memref<1x200x128xbf16, #tpu.memory_space<vmem>>, vector<1x4x128xbf16>,
    %cst_136 = arith.constant dense<0.000000e+00> : vector<128xf32>
    %174 = vector.multi_reduction <add>, %167, %cst_136 [0] : vector<14x128xf32> to vector<128xf32>
    %175 = vector.shape_cast %174 : vector<128xf32> to vector<1x128xf32>
    %cst_137 = arith.constant dense<0.000000e+00> : vector<128xf32>
    %176 = vector.multi_reduction <add>, %169, %cst_137 [0] : vector<14x128xf32> to vector<128xf32>
    %177 = vector.shape_cast %176 : vector<128xf32> to vector<1x128xf32>
    %178 = tpu.concatenate %175, %177 in 0 : vector<1x128xf32>, vector<1x128xf32> -> vector<2x128xf32>
    %c0_138 = arith.constant 0 : index
    %c0_139 = arith.constant 0 : index
    %c0_140 = arith.constant 0 : index
    %179 = vector.load %arg4[%c0_138, %c0_139, %c0_140] : memref<1x2x128xf32, #tpu.memory_space<vmem>>, vector<1x2x128xf32>
    %180 = vector.shape_cast %179 : vector<1x2x128xf32> to vector<2x128xf32>
    %181 = vector.shape_cast %178 : vector<2x128xf32> to vector<1x2x128xf32>
    tpu.vector_store %arg4[%c0_138, %c0_139, %c0_140], %181 {strides = array<i32>} : memref<1x2x128xf32, #tpu.memory_space<vmem>>, vector<1x2x128xf32>,
    return
  }
  func.func @transform_0(%arg0: i32) -> (i32, i32, i32, i32) {
    %c0_i32 = arith.constant 0 : i32
    %c0_i32_0 = arith.constant 0 : i32
    %c0_i32_1 = arith.constant 0 : i32
    %c0_i32_2 = arith.constant 0 : i32
    return %arg0, %c0_i32, %c0_i32_0, %c0_i32_1 : i32, i32, i32, i32
  }
  func.func @transform_1(%arg0: i32) -> (i32, i32) {
    %c0_i32 = arith.constant 0 : i32
    %c0_i32_0 = arith.constant 0 : i32
    %c0_i32_1 = arith.constant 0 : i32
    return %c0_i32, %c0_i32_0 : i32, i32
  }
  func.func @transform_2(%arg0: i32) -> (i32, i32, i32) {
    %c0_i32 = arith.constant 0 : i32
    %c0_i32_0 = arith.constant 0 : i32
    %c0_i32_1 = arith.constant 0 : i32
    return %arg0, %c0_i32, %c0_i32_0 : i32, i32, i32
  }
  func.func @transform_3(%arg0: i32) -> (i32, i32, i32) {
    %c0_i32 = arith.constant 0 : i32
    %c0_i32_0 = arith.constant 0 : i32
    %c0_i32_1 = arith.constant 0 : i32
    return %arg0, %c0_i32, %c0_i32_0 : i32, i32, i32
  }
}

</mosaic_0001>

<llo_original>
// kernel: down_conv_block.3
$region0: #{down_conv_block.3}
  #allocation0 [shape = 'u32[]', space=smem, size = 0x4, offset = 0x4, fixed_abs, tag = 'smem constant byte address 0x4 - core index']
  #allocation1 [shape = 'u32[144,128]{1,0:T(1,128)}', space=vmem, size = 0x12000, scoped, tag = 'internal scratch']
  %s0 = inlined_call_operand.vmem [shape: bf16[2,200,128], index: 0, kind: input, shape index: {}]
  %s1 = inlined_call_operand.vmem [shape: f32[1,128], index: 1, kind: input, shape index: {}]
  %s2 = inlined_call_operand.vmem [shape: f32[1,128], index: 2, kind: input, shape index: {}]
  %s3 = inlined_call_operand.vmem [shape: f32[2,128,200], index: 3, kind: output, shape index: {}]
  %s4 = sld [smem:[#allocation0]]
  $region45: #{down_conv_block.3} parent=0
    _
  %s6 = ssub.s32 1, %s4
  %s7 = scalar_select 0, %s6, %s4
  loop: start=0, step=1, limit=4
  $region2: #{down_conv_block.3} parent=0 // loop_pre_header
    _
  $region3: #{down_conv_block.3} parent=0 // loop_header
    %s9 = sphi 0, %s13
    %p10 = scmp.ge.s32.totalorder %s9, 4
    %s19 = sphi 0, %s21
    %s22 = sphi 0, %s19
    %s23 = sphi 0, %s22
    %s39 = sphi 0, %s23
    %s43 = sphi 0, %s43
    %s45 = sphi 0, %s43
    %s46 = sphi 0, %s45
    %s60 = sphi 0, %s46
    %s64 = sphi 0, %s64
    %s66 = sphi 0, %s64
    %s67 = sphi 0, %s66
    %s81 = sphi 0, %s67
    %s87 = sphi 0, %s89
    %s90 = sphi 0, %s87
    %s91 = sphi 0, %s90
    %s107 = sphi 0, %s91
  $region4: #{down_conv_block.3} parent=0 // loop_header_branch
    %12 = sbr.rel (%p10) target = $region8
  $region5: #{down_conv_block.3} parent=0 // loop_body
    %s14 = ssub.s32 %s9, 1
    %s15 = ssub.s32 %s9, 2
    %s16 = sadd.s32 %s9, 1
    %s17 = ssub.s32 %s9, %s16
    %p18 = scmp.eq.s32.totalorder %s17, 0
    %s20 = sadd.s32 %s19, 1
    %s21 = scalar_select %p18, %s19, %s20
    %p24 = pneg %p18
    %p25 = scmp.eq.s32.totalorder %s9, 1
    %p26 = por %p24, %p25
    %p27 = scmp.ne.s32.totalorder %s19, %s22
    %p28 = scmp.eq.s32.totalorder %s9, 0
    %p29 = por %p27, %p28
    %p30 = scmp.ne.s32.totalorder %s19, %s22
    %p31 = scmp.eq.s32.totalorder %s14, 1
    %p32 = por %p30, %p31
    %p33 = scmp.ne.s32.totalorder %s22, %s23
    %p34 = scmp.eq.s32.totalorder %s14, 0
    %p35 = por %p33, %p34
    %p36 = scmp.ne.s32.totalorder %s22, %s23
    %p37 = scmp.eq.s32.totalorder %s15, 1
    %p38 = por %p36, %p37
    %p40 = scmp.ne.s32.totalorder %s23, %s39
    %p41 = scmp.eq.s32.totalorder %s15, 0
    %p42 = por %p40, %p41
    %s44 = sadd.s32 %s43, 1
    %p47 = scmp.eq.s32.totalorder %s9, 1
    %p48 = scmp.ne.s32.totalorder %s43, %s45
    %p49 = scmp.eq.s32.totalorder %s9, 0
    %p50 = por %p48, %p49
    %p51 = scmp.ne.s32.totalorder %s43, %s45
    %p52 = scmp.eq.s32.totalorder %s14, 1
    %p53 = por %p51, %p52
    %p54 = scmp.ne.s32.totalorder %s45, %s46
    %p55 = scmp.eq.s32.totalorder %s14, 0
    %p56 = por %p54, %p55
    %p57 = scmp.ne.s32.totalorder %s45, %s46
    %p58 = scmp.eq.s32.totalorder %s15, 1
    %p59 = por %p57, %p58
    %p61 = scmp.ne.s32.totalorder %s46, %s60
    %p62 = scmp.eq.s32.totalorder %s15, 0
    %p63 = por %p61, %p62
    %s65 = sadd.s32 %s64, 1
    %p68 = scmp.eq.s32.totalorder %s9, 1
    %p69 = scmp.ne.s32.totalorder %s64, %s66
    %p70 = scmp.eq.s32.totalorder %s9, 0
    %p71 = por %p69, %p70
    %p72 = scmp.ne.s32.totalorder %s64, %s66
    %p73 = scmp.eq.s32.totalorder %s14, 1
    %p74 = por %p72, %p73
    %p75 = scmp.ne.s32.totalorder %s66, %s67
    %p76 = scmp.eq.s32.totalorder %s14, 0
    %p77 = por %p75, %p76
    %p78 = scmp.ne.s32.totalorder %s66, %s67
    %p79 = scmp.eq.s32.totalorder %s15, 1
    %p80 = por %p78, %p79
    %p82 = scmp.ne.s32.totalorder %s67, %s81
    %p83 = scmp.eq.s32.totalorder %s15, 0
    %p84 = por %p82, %p83
    %s85 = ssub.s32 %s9, %s16
    %p86 = scmp.eq.s32.totalorder %s85, 0
    %s88 = sadd.s32 %s87, 1
    %s89 = scalar_select %p86, %s87, %s88
    %p92 = pneg %p86
    %p93 = scmp.eq.s32.totalorder %s9, 1
    %p94 = por %p92, %p93
    %p95 = scmp.ne.s32.totalorder %s87, %s90
    %p96 = scmp.eq.s32.totalorder %s9, 0
    %p97 = por %p95, %p96
    %p98 = scmp.ne.s32.totalorder %s87, %s90
    %p99 = scmp.eq.s32.totalorder %s14, 1
    %p100 = por %p98, %p99
    %p101 = scmp.ne.s32.totalorder %s90, %s91
    %p102 = scmp.eq.s32.totalorder %s14, 0
    %p103 = por %p101, %p102
    %p104 = scmp.ne.s32.totalorder %s90, %s91
    %p105 = scmp.eq.s32.totalorder %s15, 1
    %p106 = por %p104, %p105
    %p108 = scmp.ne.s32.totalorder %s91, %s107
    %p109 = scmp.eq.s32.totalorder %s15, 0
    %p110 = por %p108, %p109
    %p111 = scmp.le.s32.totalorder 1, %s9
    %p112 = scmp.lt.s32.totalorder %s9, 3
    %p113 = pnand %p111, %p112
    %p114 = pneg %p113
    // Predicated region
    $region9: #{down_conv_block.3} parent=5 // pred_check
      _
    $region10: #{down_conv_block.3} parent=5 // pred_check_branch
      %116 = sbr.rel (%p113) target = $region12
    $region11: #{down_conv_block.3} parent=5 // pred_region
      %s117 = ssub.s32 %s9, 1
      // Predicated region
      $region13: #{down_conv_block.3} parent=11 // pred_check
        %p118 = pneg %p56
      $region14: #{down_conv_block.3} parent=11 // pred_check_branch
        %120 = sbr.rel (%p118) target = $region16
      $region15: #{down_conv_block.3} parent=11 // pred_region
        _
      $region16: #{down_conv_block.3} parent=11 // pred_fallthru
        _
      // Predicated region
      $region17: #{down_conv_block.3} parent=11 // pred_check
        %p121 = pneg %p77
      $region18: #{down_conv_block.3} parent=11 // pred_check_branch
        %123 = sbr.rel (%p121) target = $region20
      $region19: #{down_conv_block.3} parent=11 // pred_region
        _
      $region20: #{down_conv_block.3} parent=11 // pred_fallthru
        _
    $region12: #{down_conv_block.3} parent=5 // pred_fallthru
      _
    %p124 = scmp.lt.s32.totalorder %s9, 2
    // Predicated region
    $region21: #{down_conv_block.3} parent=5 // pred_check
      %p125 = pneg %p124
    $region22: #{down_conv_block.3} parent=5 // pred_check_branch
      %127 = sbr.rel (%p125) target = $region24
    $region23: #{down_conv_block.3} parent=5 // pred_region
      // Predicated region
      $region25: #{down_conv_block.3} parent=23 // pred_check
        %p128 = pneg %p29
      $region26: #{down_conv_block.3} parent=23 // pred_check_branch
        %130 = sbr.rel (%p128) target = $region28
      $region27: #{down_conv_block.3} parent=23 // pred_region
        %p131 = scmp.lt.s32.totalorder %s9, 1
        %s132 = scalar_select %p131, %s9, 1
        %s133 = smul.addr %s132, 25
        %s134 = smul.addr %s133, 4
        %s135 = scalar_lea.vmem %s0, %s134
      $region28: #{down_conv_block.3} parent=23 // pred_fallthru
        _
    $region24: #{down_conv_block.3} parent=5 // pred_fallthru
      _
    %p136 = scmp.le.s32.totalorder 1, %s9
    %p137 = scmp.lt.s32.totalorder %s9, 3
    %p138 = pnand %p136, %p137
    %p139 = pneg %p138
    // Predicated region
    $region29: #{down_conv_block.3} parent=5 // pred_check
      _
    $region30: #{down_conv_block.3} parent=5 // pred_check_branch
      %141 = sbr.rel (%p138) target = $region32
    $region31: #{down_conv_block.3} parent=5 // pred_region
      %s142 = ssub.s32 %s9, 1
      %p143 = scmp.lt.s32.totalorder %s14, 1
      %s144 = scalar_select %p143, %s14, 1
      %s145 = smul.addr %s144, 25
      %s146 = smul.addr %s145, 4
      %s147 = scalar_lea.vmem %s0, %s146
      %p148 = pneg %p35
      %p149 = pneg %p32
      %p150 = pneg %p56
      %p151 = pneg %p53
      %p152 = pneg %p77
      %p153 = pneg %p74
      %p154 = pneg %p103
      %p155 = pneg %p100
      %p156 = scmp.lt.s32.totalorder %s14, 1
      %s157 = scalar_select %p156, %s14, 1
      %s158 = smul.addr %s157, 32
      %s159 = smul.addr %s158, 8
      %s160 = scalar_lea.vmem %s3, %s159
      %p161 = scmp.lt.s32.totalorder %s14, 1
      %s162 = scalar_select %p161, %s14, 1
      %s163 = smul.addr %s162, 25
      %s164 = smul.addr %s163, 4
      %s165 = scalar_lea.vmem %s0, %s164
      %p166 = scmp.lt.s32.totalorder %s14, 1
      %s167 = scalar_select %p166, %s14, 1
      %s168 = smul.addr %s167, 32
      %s169 = smul.addr %s168, 8
      %s170 = scalar_lea.vmem %s3, %s169
      %v171 = vld [vmem:[%s165] sm:$0xf]
      %v172 = vld [vmem:[%s165 + $0x4] sm:$0xf]
      %v173 = vld [vmem:[%s165 + $0x8] sm:$0xf]
      %v174 = vld [vmem:[%s165 + $0xc] sm:$0xf]
      %v175 = vld [vmem:[%s165 + $0x10] sm:$0xf]
      %v176 = vld [vmem:[%s165 + $0x14] sm:$0xf]
      %v177 = vld [vmem:[%s165 + $0x18] sm:$0xf]
      %v178 = vld [vmem:[%s165 + $0x1c] sm:$0xf]
      %v179 = vld [vmem:[%s165 + $0x20] sm:$0xf]
      %v180 = vld [vmem:[%s165 + $0x24] sm:$0xf]
      %v181 = vld [vmem:[%s165 + $0x28] sm:$0xf]
      %v182 = vld [vmem:[%s165 + $0x2c] sm:$0xf]
      %v183 = vld [vmem:[%s165 + $0x30] sm:$0xf]
      %v184 = vld [vmem:[%s165 + $0x34] sm:$0xf]
      %v185 = vld [vmem:[%s165 + $0x38] sm:$0xf]
      %v186 = vld [vmem:[%s165 + $0x3c] sm:$0xf]
      %v187 = vld [vmem:[%s165 + $0x40] sm:$0xf]
      %v188 = vld [vmem:[%s165 + $0x44] sm:$0xf]
      %v189 = vld [vmem:[%s165 + $0x48] sm:$0xf]
      %v190 = vld [vmem:[%s165 + $0x4c] sm:$0xf]
      %v191 = vld [vmem:[%s165 + $0x50] sm:$0xf]
      %v192 = vld [vmem:[%s165 + $0x54] sm:$0xf]
      %v193 = vld [vmem:[%s165 + $0x58] sm:$0xf]
      %v194 = vld [vmem:[%s165 + $0x5c] sm:$0xf]
      %v195 = vld [vmem:[%s165 + $0x60] sm:$0xf]
      %v196 = vunpack.c.l.bf16 %v171
      %v197 = vunpack.c.l.bf16 %v172
      %v198 = vunpack.c.l.bf16 %v173
      %v199 = vunpack.c.l.bf16 %v174
      %v200 = vunpack.c.l.bf16 %v175
      %v201 = vunpack.c.l.bf16 %v176
      %v202 = vunpack.c.l.bf16 %v177
      %v203 = vunpack.c.l.bf16 %v178
      %v204 = vunpack.c.l.bf16 %v179
      %v205 = vunpack.c.l.bf16 %v180
      %v206 = vunpack.c.l.bf16 %v181
      %v207 = vunpack.c.l.bf16 %v182
      %v208 = vunpack.c.l.bf16 %v183
      %v209 = vunpack.c.l.bf16 %v184
      %v210 = vunpack.c.l.bf16 %v185
      %v211 = vunpack.c.l.bf16 %v186
      %v212 = vunpack.c.l.bf16 %v187
      %v213 = vunpack.c.l.bf16 %v188
      %v214 = vunpack.c.l.bf16 %v189
      %v215 = vunpack.c.l.bf16 %v190
      %v216 = vunpack.c.l.bf16 %v191
      %v217 = vunpack.c.l.bf16 %v192
      %v218 = vunpack.c.l.bf16 %v193
      %v219 = vunpack.c.l.bf16 %v194
      %v220 = vunpack.c.l.bf16 %v195
      %v221 = vld [vmem:[%s1] sm:$0x1]
      %v223 = vlaneseq
      %v224 = vshrl.u32 %v223, 7
      %v225 = vsub.s32 0, %v224
      %v226 = vrot.slane %v221, %v225
      %v228 = vmul.f32 %v196, %v226
      %v229 = vmul.f32 %v197, %v226
      %v230 = vmul.f32 %v198, %v226
      %v231 = vmul.f32 %v199, %v226
      %v232 = vmul.f32 %v200, %v226
      %v233 = vmul.f32 %v201, %v226
      %v234 = vmul.f32 %v202, %v226
      %v235 = vmul.f32 %v203, %v226
      %v236 = vmul.f32 %v204, %v226
      %v237 = vmul.f32 %v205, %v226
      %v238 = vmul.f32 %v206, %v226
      %v239 = vmul.f32 %v207, %v226
      %v240 = vmul.f32 %v208, %v226
      %v241 = vmul.f32 %v209, %v226
      %v242 = vmul.f32 %v210, %v226
      %v243 = vmul.f32 %v211, %v226
      %v244 = vmul.f32 %v212, %v226
      %v245 = vmul.f32 %v213, %v226
      %v246 = vmul.f32 %v214, %v226
      %v247 = vmul.f32 %v215, %v226
      %v248 = vmul.f32 %v216, %v226
      %v249 = vmul.f32 %v217, %v226
      %v250 = vmul.f32 %v218, %v226
      %v251 = vmul.f32 %v219, %v226
      %v252 = vmul.f32 %v220, %v226
      %v253 = vld [vmem:[%s2] sm:$0x1]
      %v255 = vlaneseq
      %v256 = vshrl.u32 %v255, 7
      %v257 = vsub.s32 0, %v256
      %v258 = vrot.slane %v253, %v257
      %v260 = vadd.f32 %v228, %v258
      %v261 = vadd.f32 %v229, %v258
      %v262 = vadd.f32 %v230, %v258
      %v263 = vadd.f32 %v231, %v258
      %v264 = vadd.f32 %v232, %v258
      %v265 = vadd.f32 %v233, %v258
      %v266 = vadd.f32 %v234, %v258
      %v267 = vadd.f32 %v235, %v258
      %v268 = vadd.f32 %v236, %v258
      %v269 = vadd.f32 %v237, %v258
      %v270 = vadd.f32 %v238, %v258
      %v271 = vadd.f32 %v239, %v258
      %v272 = vadd.f32 %v240, %v258
      %v273 = vadd.f32 %v241, %v258
      %v274 = vadd.f32 %v242, %v258
      %v275 = vadd.f32 %v243, %v258
      %v276 = vadd.f32 %v244, %v258
      %v277 = vadd.f32 %v245, %v258
      %v278 = vadd.f32 %v246, %v258
      %v279 = vadd.f32 %v247, %v258
      %v280 = vadd.f32 %v248, %v258
      %v281 = vadd.f32 %v249, %v258
      %v282 = vadd.f32 %v250, %v258
      %v283 = vadd.f32 %v251, %v258
      %v284 = vadd.f32 %v252, %v258
      %vm285 = vcmp.ge.f32.partialorder %v260, 0.0
      %vm286 = vcmp.ge.f32.partialorder %v261, 0.0
      %vm287 = vcmp.ge.f32.partialorder %v262, 0.0
      %vm288 = vcmp.ge.f32.partialorder %v263, 0.0
      %vm289 = vcmp.ge.f32.partialorder %v264, 0.0
      %vm290 = vcmp.ge.f32.partialorder %v265, 0.0
      %vm291 = vcmp.ge.f32.partialorder %v266, 0.0
      %vm292 = vcmp.ge.f32.partialorder %v267, 0.0
      %vm293 = vcmp.ge.f32.partialorder %v268, 0.0
      %vm294 = vcmp.ge.f32.partialorder %v269, 0.0
      %vm295 = vcmp.ge.f32.partialorder %v270, 0.0
      %vm296 = vcmp.ge.f32.partialorder %v271, 0.0
      %vm297 = vcmp.ge.f32.partialorder %v272, 0.0
      %vm298 = vcmp.ge.f32.partialorder %v273, 0.0
      %vm299 = vcmp.ge.f32.partialorder %v274, 0.0
      %vm300 = vcmp.ge.f32.partialorder %v275, 0.0
      %vm301 = vcmp.ge.f32.partialorder %v276, 0.0
      %vm302 = vcmp.ge.f32.partialorder %v277, 0.0
      %vm303 = vcmp.ge.f32.partialorder %v278, 0.0
      %vm304 = vcmp.ge.f32.partialorder %v279, 0.0
      %vm305 = vcmp.ge.f32.partialorder %v280, 0.0
      %vm306 = vcmp.ge.f32.partialorder %v281, 0.0
      %vm307 = vcmp.ge.f32.partialorder %v282, 0.0
      %vm308 = vcmp.ge.f32.partialorder %v283, 0.0
      %vm309 = vcmp.ge.f32.partialorder %v284, 0.0
      %v310 = vmul.f32 %v260, 0.2
      %v311 = vmul.f32 %v261, 0.2
      %v312 = vmul.f32 %v262, 0.2
      %v313 = vmul.f32 %v263, 0.2
      %v314 = vmul.f32 %v264, 0.2
      %v315 = vmul.f32 %v265, 0.2
      %v316 = vmul.f32 %v266, 0.2
      %v317 = vmul.f32 %v267, 0.2
      %v318 = vmul.f32 %v268, 0.2
      %v319 = vmul.f32 %v269, 0.2
      %v320 = vmul.f32 %v270, 0.2
      %v321 = vmul.f32 %v271, 0.2
      %v322 = vmul.f32 %v272, 0.2
      %v323 = vmul.f32 %v273, 0.2
      %v324 = vmul.f32 %v274, 0.2
      %v325 = vmul.f32 %v275, 0.2
      %v326 = vmul.f32 %v276, 0.2
      %v327 = vmul.f32 %v277, 0.2
      %v328 = vmul.f32 %v278, 0.2
      %v329 = vmul.f32 %v279, 0.2
      %v330 = vmul.f32 %v280, 0.2
      %v331 = vmul.f32 %v281, 0.2
      %v332 = vmul.f32 %v282, 0.2
      %v333 = vmul.f32 %v283, 0.2
      %v334 = vmul.f32 %v284, 0.2
      %v335 = vsel %vm285, %v260, %v310
      %v336 = vsel %vm286, %v261, %v311
      %v337 = vsel %vm287, %v262, %v312
      %v338 = vsel %vm288, %v263, %v313
      %v339 = vsel %vm289, %v264, %v314
      %v340 = vsel %vm290, %v265, %v315
      %v341 = vsel %vm291, %v266, %v316
      %v342 = vsel %vm292, %v267, %v317
      %v343 = vsel %vm293, %v268, %v318
      %v344 = vsel %vm294, %v269, %v319
      %v345 = vsel %vm295, %v270, %v320
      %v346 = vsel %vm296, %v271, %v321
      %v347 = vsel %vm297, %v272, %v322
      %v348 = vsel %vm298, %v273, %v323
      %v349 = vsel %vm299, %v274, %v324
      %v350 = vsel %vm300, %v275, %v325
      %v351 = vsel %vm301, %v276, %v326
      %v352 = vsel %vm302, %v277, %v327
      %v353 = vsel %vm303, %v278, %v328
      %v354 = vsel %vm304, %v279, %v329
      %v355 = vsel %vm305, %v280, %v330
      %v356 = vsel %vm306, %v281, %v331
      %v357 = vsel %vm307, %v282, %v332
      %v358 = vsel %vm308, %v283, %v333
      %v359 = vsel %vm309, %v284, %v334
      %360 = vxpose.xlu0.b32.start [1/16] %v335, 128
      %361 = vxpose.xlu0.b32.cont [2/16] %v336, 128
      %362 = vxpose.xlu0.b32.cont [3/16] %v337, 128
      %363 = vxpose.xlu0.b32.cont [4/16] %v338, 128
      %364 = vxpose.xlu0.b32.cont [5/16] %v339, 128
      %365 = vxpose.xlu0.b32.cont [6/16] %v340, 128
      %366 = vxpose.xlu0.b32.cont [7/16] %v341, 128
      %367 = vxpose.xlu0.b32.cont [8/16] %v342, 128
      %368 = vxpose.xlu0.b32.cont [9/16] %v343, 128
      %369 = vxpose.xlu0.b32.cont [10/16] %v344, 128
      %370 = vxpose.xlu0.b32.cont [11/16] %v345, 128
      %371 = vxpose.xlu0.b32.cont [12/16] %v346, 128
      %372 = vxpose.xlu0.b32.cont [13/16] %v347, 128
      %373 = vxpose.xlu0.b32.cont [14/16] %v348, 128
      %374 = vxpose.xlu0.b32.cont [15/16] %v349, 128
      %375 = vxpose.xlu0.b32.end [16/16] %v350, 128
      %v376 = vpop.trf.xlu0
      %v377 = vpop.trf.xlu0
      %v378 = vpop.trf.xlu0
      %v379 = vpop.trf.xlu0
      %v380 = vpop.trf.xlu0
      %v381 = vpop.trf.xlu0
      %v382 = vpop.trf.xlu0
      %v383 = vpop.trf.xlu0
      %v384 = vpop.trf.xlu0
      %v385 = vpop.trf.xlu0
      %v386 = vpop.trf.xlu0
      %v387 = vpop.trf.xlu0
      %v388 = vpop.trf.xlu0
      %v389 = vpop.trf.xlu0
      %v390 = vpop.trf.xlu0
      %v391 = vpop.trf.xlu0
      %392 = vxpose.xlu0.b32.start [1/16] %v351, 128
      %393 = vxpose.xlu0.b32.cont [2/16] %v352, 128
      %394 = vxpose.xlu0.b32.cont [3/16] %v353, 128
      %395 = vxpose.xlu0.b32.cont [4/16] %v354, 128
      %396 = vxpose.xlu0.b32.cont [5/16] %v355, 128
      %397 = vxpose.xlu0.b32.cont [6/16] %v356, 128
      %398 = vxpose.xlu0.b32.cont [7/16] %v357, 128
      %399 = vxpose.xlu0.b32.cont [8/16] %v358, 128
      %400 = vxpose.xlu0.b32.cont [9/16] %v359, 128
      %401 = vxpose.xlu0.b32.cont [10/16] 0.0, 128
      %402 = vxpose.xlu0.b32.cont [11/16] 0.0, 128
      %403 = vxpose.xlu0.b32.cont [12/16] 0.0, 128
      %404 = vxpose.xlu0.b32.cont [13/16] 0.0, 128
      %405 = vxpose.xlu0.b32.cont [14/16] 0.0, 128
      %406 = vxpose.xlu0.b32.cont [15/16] 0.0, 128
      %407 = vxpose.xlu0.b32.end [16/16] 0.0, 128
      %v408 = vpop.trf.xlu0
      %v409 = vpop.trf.xlu0
      %v410 = vpop.trf.xlu0
      %v411 = vpop.trf.xlu0
      %v412 = vpop.trf.xlu0
      %v413 = vpop.trf.xlu0
      %v414 = vpop.trf.xlu0
      %v415 = vpop.trf.xlu0
      %v416 = vpop.trf.xlu0
      %v417 = vpop.trf.xlu0
      %v418 = vpop.trf.xlu0
      %v419 = vpop.trf.xlu0
      %v420 = vpop.trf.xlu0
      %v421 = vpop.trf.xlu0
      %v422 = vpop.trf.xlu0
      %v423 = vpop.trf.xlu0
      %424 = vst [vmem:[%s170] sm:$0xff] %v376
      %vm425 = vcmask 588800
      %426 = vst.msk [vmem:[%s170 + $0x8] sm:$0xff] %vm425, %v408
      %427 = vst [vmem:[%s170 + $0x10] sm:$0xff] %v377
      %428 = vst.msk [vmem:[%s170 + $0x18] sm:$0xff] %vm425, %v409
      %429 = vst [vmem:[%s170 + $0x20] sm:$0xff] %v378
      %430 = vst.msk [vmem:[%s170 + $0x28] sm:$0xff] %vm425, %v410
      %431 = vst [vmem:[%s170 + $0x30] sm:$0xff] %v379
      %432 = vst.msk [vmem:[%s170 + $0x38] sm:$0xff] %vm425, %v411
      %433 = vst [vmem:[%s170 + $0x40] sm:$0xff] %v380
      %434 = vst.msk [vmem:[%s170 + $0x48] sm:$0xff] %vm425, %v412
      %435 = vst [vmem:[%s170 + $0x50] sm:$0xff] %v381
      %436 = vst.msk [vmem:[%s170 + $0x58] sm:$0xff] %vm425, %v413
      %437 = vst [vmem:[%s170 + $0x60] sm:$0xff] %v382
      %438 = vst.msk [vmem:[%s170 + $0x68] sm:$0xff] %vm425, %v414
      %439 = vst [vmem:[%s170 + $0x70] sm:$0xff] %v383
      %440 = vst.msk [vmem:[%s170 + $0x78] sm:$0xff] %vm425, %v415
      %441 = vst [vmem:[%s170 + $0x80] sm:$0xff] %v384
      %442 = vst.msk [vmem:[%s170 + $0x88] sm:$0xff] %vm425, %v416
      %443 = vst [vmem:[%s170 + $0x90] sm:$0xff] %v385
      %444 = vst.msk [vmem:[%s170 + $0x98] sm:$0xff] %vm425, %v417
      %445 = vst [vmem:[%s170 + $0xa0] sm:$0xff] %v386
      %446 = vst.msk [vmem:[%s170 + $0xa8] sm:$0xff] %vm425, %v418
      %447 = vst [vmem:[%s170 + $0xb0] sm:$0xff] %v387
      %448 = vst.msk [vmem:[%s170 + $0xb8] sm:$0xff] %vm425, %v419
      %449 = vst [vmem:[%s170 + $0xc0] sm:$0xff] %v388
      %450 = vst.msk [vmem:[%s170 + $0xc8] sm:$0xff] %vm425, %v420
      %451 = vst [vmem:[%s170 + $0xd0] sm:$0xff] %v389
      %452 = vst.msk [vmem:[%s170 + $0xd8] sm:$0xff] %vm425, %v421
      %453 = vst [vmem:[%s170 + $0xe0] sm:$0xff] %v390
      %454 = vst.msk [vmem:[%s170 + $0xe8] sm:$0xff] %vm425, %v422
      %455 = vst [vmem:[%s170 + $0xf0] sm:$0xff] %v391
      %456 = vst.msk [vmem:[%s170 + $0xf8] sm:$0xff] %vm425, %v423
      %p457 = scmp.lt.s32.totalorder %s14, 1
      %s458 = scalar_select %p457, %s14, 1
      %s459 = smul.addr %s458, 32
      %s460 = smul.addr %s459, 8
      %s461 = scalar_lea.vmem %s3, %s460
      // Predicated region
      $region33: #{down_conv_block.3} parent=31 // pred_check
        %p462 = pneg %p100
      $region34: #{down_conv_block.3} parent=31 // pred_check_branch
        %464 = sbr.rel (%p462) target = $region36
      $region35: #{down_conv_block.3} parent=31 // pred_region
        _
      $region36: #{down_conv_block.3} parent=31 // pred_fallthru
        _
    $region32: #{down_conv_block.3} parent=5 // pred_fallthru
      _
    %p465 = scmp.le.s32.totalorder 2, %s9
    // Predicated region
    $region37: #{down_conv_block.3} parent=5 // pred_check
      %p466 = pneg %p465
    $region38: #{down_conv_block.3} parent=5 // pred_check_branch
      %468 = sbr.rel (%p466) target = $region40
    $region39: #{down_conv_block.3} parent=5 // pred_region
      %s469 = ssub.s32 %s9, 2
      // Predicated region
      $region41: #{down_conv_block.3} parent=39 // pred_check
        %p470 = pneg %p106
      $region42: #{down_conv_block.3} parent=39 // pred_check_branch
        %472 = sbr.rel (%p470) target = $region44
      $region43: #{down_conv_block.3} parent=39 // pred_region
        %p473 = scmp.lt.s32.totalorder %s15, 1
        %s474 = scalar_select %p473, %s15, 1
        %s475 = smul.addr %s474, 32
        %s476 = smul.addr %s475, 8
        %s477 = scalar_lea.vmem %s3, %s476
      $region44: #{down_conv_block.3} parent=39 // pred_fallthru
        _
    $region40: #{down_conv_block.3} parent=5 // pred_fallthru
      _
  $region6: #{down_conv_block.3} parent=0 // loop_footer
    %s13 = sadd.s32 1, %s9
  $region7: #{down_conv_block.3} parent=0 // loop_footer_branch
    %8 = sbr.rel target = $region3
  $region8: #{down_conv_block.3} parent=0 // loop_exit
    _

// kernel: down_conv_block.2
$region0: #{down_conv_block.2}
  #allocation0 [shape = 'u32[]', space=smem, size = 0x4, offset = 0x4, fixed_abs, tag = 'smem constant byte address 0x4 - core index']
  #allocation1 [shape = 'u32[144,128]{1,0:T(1,128)}', space=vmem, size = 0x12000, scoped, tag = 'internal scratch']
  #allocation2 [shape = 'bf16[14,14,36]{2,1,0:T(8,128)(2,1)}', space=vmem, size = 0xe000, scoped, tag = 'scratch operand']
  %s0 = inlined_call_operand.vmem [shape: bf16[2,16,16,4], index: 0, kind: input, shape index: {}]
  %s1 = inlined_call_operand.vmem [shape: bf16[36,128], index: 1, kind: input, shape index: {}]
  %s2 = inlined_call_operand.vmem [shape: bf16[2,200,128], index: 2, kind: output, shape index: {0}]
  %s3 = inlined_call_operand.vmem [shape: f32[2,2,128], index: 3, kind: output, shape index: {1}]
  %4 = xla_tuple %s2, %s3
  %s5 = sld [smem:[#allocation0]]
  $region49: #{down_conv_block.2} parent=0
    _
  %s7 = ssub.s32 1, %s5
  %s8 = scalar_select 0, %s7, %s5
  loop: start=0, step=1, limit=4
  $region2: #{down_conv_block.2} parent=0 // loop_pre_header
    _
  $region3: #{down_conv_block.2} parent=0 // loop_header
    %s10 = sphi 0, %s14
    %p11 = scmp.ge.s32.totalorder %s10, 4
    %s20 = sphi 0, %s22
    %s23 = sphi 0, %s20
    %s24 = sphi 0, %s23
    %s40 = sphi 0, %s24
    %s44 = sphi 0, %s44
    %s46 = sphi 0, %s44
    %s47 = sphi 0, %s46
    %s61 = sphi 0, %s47
    %s67 = sphi 0, %s69
    %s70 = sphi 0, %s67
    %s71 = sphi 0, %s70
    %s87 = sphi 0, %s71
    %s93 = sphi 0, %s95
    %s96 = sphi 0, %s93
    %s97 = sphi 0, %s96
    %s113 = sphi 0, %s97
  $region4: #{down_conv_block.2} parent=0 // loop_header_branch
    %13 = sbr.rel (%p11) target = $region8
  $region5: #{down_conv_block.2} parent=0 // loop_body
    %s15 = ssub.s32 %s10, 1
    %s16 = ssub.s32 %s10, 2
    %s17 = sadd.s32 %s10, 1
    %s18 = ssub.s32 %s10, %s17
    %p19 = scmp.eq.s32.totalorder %s18, 0
    %s21 = sadd.s32 %s20, 1
    %s22 = scalar_select %p19, %s20, %s21
    %p25 = pneg %p19
    %p26 = scmp.eq.s32.totalorder %s10, 1
    %p27 = por %p25, %p26
    %p28 = scmp.ne.s32.totalorder %s20, %s23
    %p29 = scmp.eq.s32.totalorder %s10, 0
    %p30 = por %p28, %p29
    %p31 = scmp.ne.s32.totalorder %s20, %s23
    %p32 = scmp.eq.s32.totalorder %s15, 1
    %p33 = por %p31, %p32
    %p34 = scmp.ne.s32.totalorder %s23, %s24
    %p35 = scmp.eq.s32.totalorder %s15, 0
    %p36 = por %p34, %p35
    %p37 = scmp.ne.s32.totalorder %s23, %s24
    %p38 = scmp.eq.s32.totalorder %s16, 1
    %p39 = por %p37, %p38
    %p41 = scmp.ne.s32.totalorder %s24, %s40
    %p42 = scmp.eq.s32.totalorder %s16, 0
    %p43 = por %p41, %p42
    %s45 = sadd.s32 %s44, 1
    %p48 = scmp.eq.s32.totalorder %s10, 1
    %p49 = scmp.ne.s32.totalorder %s44, %s46
    %p50 = scmp.eq.s32.totalorder %s10, 0
    %p51 = por %p49, %p50
    %p52 = scmp.ne.s32.totalorder %s44, %s46
    %p53 = scmp.eq.s32.totalorder %s15, 1
    %p54 = por %p52, %p53
    %p55 = scmp.ne.s32.totalorder %s46, %s47
    %p56 = scmp.eq.s32.totalorder %s15, 0
    %p57 = por %p55, %p56
    %p58 = scmp.ne.s32.totalorder %s46, %s47
    %p59 = scmp.eq.s32.totalorder %s16, 1
    %p60 = por %p58, %p59
    %p62 = scmp.ne.s32.totalorder %s47, %s61
    %p63 = scmp.eq.s32.totalorder %s16, 0
    %p64 = por %p62, %p63
    %s65 = ssub.s32 %s10, %s17
    %p66 = scmp.eq.s32.totalorder %s65, 0
    %s68 = sadd.s32 %s67, 1
    %s69 = scalar_select %p66, %s67, %s68
    %p72 = pneg %p66
    %p73 = scmp.eq.s32.totalorder %s10, 1
    %p74 = por %p72, %p73
    %p75 = scmp.ne.s32.totalorder %s67, %s70
    %p76 = scmp.eq.s32.totalorder %s10, 0
    %p77 = por %p75, %p76
    %p78 = scmp.ne.s32.totalorder %s67, %s70
    %p79 = scmp.eq.s32.totalorder %s15, 1
    %p80 = por %p78, %p79
    %p81 = scmp.ne.s32.totalorder %s70, %s71
    %p82 = scmp.eq.s32.totalorder %s15, 0
    %p83 = por %p81, %p82
    %p84 = scmp.ne.s32.totalorder %s70, %s71
    %p85 = scmp.eq.s32.totalorder %s16, 1
    %p86 = por %p84, %p85
    %p88 = scmp.ne.s32.totalorder %s71, %s87
    %p89 = scmp.eq.s32.totalorder %s16, 0
    %p90 = por %p88, %p89
    %s91 = ssub.s32 %s10, %s17
    %p92 = scmp.eq.s32.totalorder %s91, 0
    %s94 = sadd.s32 %s93, 1
    %s95 = scalar_select %p92, %s93, %s94
    %p98 = pneg %p92
    %p99 = scmp.eq.s32.totalorder %s10, 1
    %p100 = por %p98, %p99
    %p101 = scmp.ne.s32.totalorder %s93, %s96
    %p102 = scmp.eq.s32.totalorder %s10, 0
    %p103 = por %p101, %p102
    %p104 = scmp.ne.s32.totalorder %s93, %s96
    %p105 = scmp.eq.s32.totalorder %s15, 1
    %p106 = por %p104, %p105
    %p107 = scmp.ne.s32.totalorder %s96, %s97
    %p108 = scmp.eq.s32.totalorder %s15, 0
    %p109 = por %p107, %p108
    %p110 = scmp.ne.s32.totalorder %s96, %s97
    %p111 = scmp.eq.s32.totalorder %s16, 1
    %p112 = por %p110, %p111
    %p114 = scmp.ne.s32.totalorder %s97, %s113
    %p115 = scmp.eq.s32.totalorder %s16, 0
    %p116 = por %p114, %p115
    %p117 = scmp.le.s32.totalorder 1, %s10
    %p118 = scmp.lt.s32.totalorder %s10, 3
    %p119 = pnand %p117, %p118
    %p120 = pneg %p119
    // Predicated region
    $region9: #{down_conv_block.2} parent=5 // pred_check
      _
    $region10: #{down_conv_block.2} parent=5 // pred_check_branch
      %122 = sbr.rel (%p119) target = $region12
    $region11: #{down_conv_block.2} parent=5 // pred_region
      %s123 = ssub.s32 %s10, 1
      // Predicated region
      $region13: #{down_conv_block.2} parent=11 // pred_check
        %p124 = pneg %p57
      $region14: #{down_conv_block.2} parent=11 // pred_check_branch
        %126 = sbr.rel (%p124) target = $region16
      $region15: #{down_conv_block.2} parent=11 // pred_region
        _
      $region16: #{down_conv_block.2} parent=11 // pred_fallthru
        _
    $region12: #{down_conv_block.2} parent=5 // pred_fallthru
      _
    %p127 = scmp.lt.s32.totalorder %s10, 2
    // Predicated region
    $region17: #{down_conv_block.2} parent=5 // pred_check
      %p128 = pneg %p127
    $region18: #{down_conv_block.2} parent=5 // pred_check_branch
      %130 = sbr.rel (%p128) target = $region20
    $region19: #{down_conv_block.2} parent=5 // pred_region
      // Predicated region
      $region21: #{down_conv_block.2} parent=19 // pred_check
        %p131 = pneg %p30
      $region22: #{down_conv_block.2} parent=19 // pred_check_branch
        %133 = sbr.rel (%p131) target = $region24
      $region23: #{down_conv_block.2} parent=19 // pred_region
        %p134 = scmp.lt.s32.totalorder %s10, 1
        %s135 = scalar_select %p134, %s10, 1
        %s136 = smul.addr %s135, 32
        %s137 = smul.addr %s136, 4
        %s138 = scalar_lea.vmem %s0, %s137
      $region24: #{down_conv_block.2} parent=19 // pred_fallthru
        _
    $region20: #{down_conv_block.2} parent=5 // pred_fallthru
      _
    %p139 = scmp.le.s32.totalorder 1, %s10
    %p140 = scmp.lt.s32.totalorder %s10, 3
    %p141 = pnand %p139, %p140
    %p142 = pneg %p141
    // Predicated region
    $region25: #{down_conv_block.2} parent=5 // pred_check
      _
    $region26: #{down_conv_block.2} parent=5 // pred_check_branch
      %144 = sbr.rel (%p141) target = $region28
    $region27: #{down_conv_block.2} parent=5 // pred_region
      %s145 = ssub.s32 %s10, 1
      %p146 = scmp.lt.s32.totalorder %s15, 1
      %s147 = scalar_select %p146, %s15, 1
      %s148 = smul.addr %s147, 32
      %s149 = smul.addr %s148, 4
      %s150 = scalar_lea.vmem %s0, %s149
      %p151 = pneg %p36
      %p152 = pneg %p33
      %p153 = pneg %p57
      %p154 = pneg %p54
      %p155 = pneg %p83
      %p156 = pneg %p80
      %p157 = scmp.lt.s32.totalorder %s15, 1
      %s158 = scalar_select %p157, %s15, 1
      %s159 = smul.addr %s158, 25
      %s160 = smul.addr %s159, 4
      %s161 = scalar_lea.vmem %s2, %s160
      %p162 = pneg %p109
      %p163 = pneg %p106
      %p164 = scmp.lt.s32.totalorder %s15, 1
      %s165 = scalar_select %p164, %s15, 1
      %s166 = smul.addr %s165, 2
      %s167 = scalar_lea.vmem %s3, %s166
      %p168 = scmp.lt.s32.totalorder %s15, 1
      %s169 = scalar_select %p168, %s15, 1
      %s170 = smul.addr %s169, 32
      %s171 = smul.addr %s170, 4
      %s172 = scalar_lea.vmem %s0, %s171
      %p173 = scmp.lt.s32.totalorder %s15, 1
      %s174 = scalar_select %p173, %s15, 1
      %s175 = smul.addr %s174, 25
      %s176 = smul.addr %s175, 4
      %s177 = scalar_lea.vmem %s2, %s176
      %p178 = scmp.lt.s32.totalorder %s15, 1
      %s179 = scalar_select %p178, %s15, 1
      %s180 = smul.addr %s179, 2
      %s181 = scalar_lea.vmem %s3, %s180
      %v183 = vld [vmem:[%s172] sm:$0xf]
      %v184 = vld [vmem:[%s172 + $0x4] sm:$0x7]
      %v185 = vld [vmem:[%s172 + $0x8] sm:$0xf]
      %v186 = vld [vmem:[%s172 + $0xc] sm:$0x7]
      %v187 = vld [vmem:[%s172 + $0x10] sm:$0xf]
      %v188 = vld [vmem:[%s172 + $0x14] sm:$0x7]
      %v189 = vld [vmem:[%s172 + $0x18] sm:$0xf]
      %v190 = vld [vmem:[%s172 + $0x1c] sm:$0x7]
      %v191 = vld [vmem:[%s172 + $0x20] sm:$0xf]
      %v192 = vld [vmem:[%s172 + $0x24] sm:$0x7]
      %v193 = vld [vmem:[%s172 + $0x28] sm:$0xf]
      %v194 = vld [vmem:[%s172 + $0x2c] sm:$0x7]
      %v195 = vld [vmem:[%s172 + $0x30] sm:$0xf]
      %v196 = vld [vmem:[%s172 + $0x34] sm:$0x7]
      %v197 = vld [vmem:[%s172 + $0x38] sm:$0xf]
      %v198 = vld [vmem:[%s172 + $0x3c] sm:$0x7]
      %v199 = vld [vmem:[%s172 + $0x40] sm:$0xf]
      %v200 = vld [vmem:[%s172 + $0x44] sm:$0x7]
      %v201 = vld [vmem:[%s172 + $0x48] sm:$0xf]
      %v202 = vld [vmem:[%s172 + $0x4c] sm:$0x7]
      %v203 = vld [vmem:[%s172 + $0x50] sm:$0xf]
      %v204 = vld [vmem:[%s172 + $0x54] sm:$0x7]
      %v205 = vld [vmem:[%s172 + $0x58] sm:$0xf]
      %v206 = vld [vmem:[%s172 + $0x5c] sm:$0x7]
      %v207 = vld [vmem:[%s172 + $0x60] sm:$0xf]
      %v208 = vld [vmem:[%s172 + $0x64] sm:$0x7]
      %v209 = vld [vmem:[%s172 + $0x68] sm:$0xf]
      %v210 = vld [vmem:[%s172 + $0x6c] sm:$0x7]
      %vm211 = vcmask 27648
      %212 = vst.msk [vmem:[#allocation2] sm:$0xf] %vm211, %v183
      %vm213 = vcmask 26624
      %214 = vst.msk [vmem:[#allocation2 + $0x4] sm:$0x7] %vm213, %v184
      %215 = vst.msk [vmem:[#allocation2 + $0x8] sm:$0xf] %vm211, %v185
      %216 = vst.msk [vmem:[#allocation2 + $0xc] sm:$0x7] %vm213, %v186
      %217 = vst.msk [vmem:[#allocation2 + $0x10] sm:$0xf] %vm211, %v187
      %218 = vst.msk [vmem:[#allocation2 + $0x14] sm:$0x7] %vm213, %v188
      %219 = vst.msk [vmem:[#allocation2 + $0x18] sm:$0xf] %vm211, %v189
      %220 = vst.msk [vmem:[#allocation2 + $0x1c] sm:$0x7] %vm213, %v190
      %221 = vst.msk [vmem:[#allocation2 + $0x20] sm:$0xf] %vm211, %v191
      %222 = vst.msk [vmem:[#allocation2 + $0x24] sm:$0x7] %vm213, %v192
      %223 = vst.msk [vmem:[#allocation2 + $0x28] sm:$0xf] %vm211, %v193
      %224 = vst.msk [vmem:[#allocation2 + $0x2c] sm:$0x7] %vm213, %v194
      %225 = vst.msk [vmem:[#allocation2 + $0x30] sm:$0xf] %vm211, %v195
      %226 = vst.msk [vmem:[#allocation2 + $0x34] sm:$0x7] %vm213, %v196
      %227 = vst.msk [vmem:[#allocation2 + $0x38] sm:$0xf] %vm211, %v197
      %228 = vst.msk [vmem:[#allocation2 + $0x3c] sm:$0x7] %vm213, %v198
      %229 = vst.msk [vmem:[#allocation2 + $0x40] sm:$0xf] %vm211, %v199
      %230 = vst.msk [vmem:[#allocation2 + $0x44] sm:$0x7] %vm213, %v200
      %231 = vst.msk [vmem:[#allocation2 + $0x48] sm:$0xf] %vm211, %v201
      %232 = vst.msk [vmem:[#allocation2 + $0x4c] sm:$0x7] %vm213, %v202
      %233 = vst.msk [vmem:[#allocation2 + $0x50] sm:$0xf] %vm211, %v203
      %234 = vst.msk [vmem:[#allocation2 + $0x54] sm:$0x7] %vm213, %v204
      %235 = vst.msk [vmem:[#allocation2 + $0x58] sm:$0xf] %vm211, %v205
      %236 = vst.msk [vmem:[#allocation2 + $0x5c] sm:$0x7] %vm213, %v206
      %237 = vst.msk [vmem:[#allocation2 + $0x60] sm:$0xf] %vm211, %v207
      %238 = vst.msk [vmem:[#allocation2 + $0x64] sm:$0x7] %vm213, %v208
      %239 = vst.msk [vmem:[#allocation2 + $0x68] sm:$0xf] %vm211, %v209
      %240 = vst.msk [vmem:[#allocation2 + $0x6c] sm:$0x7] %vm213, %v210
      %v241 = vld [vmem:[%s172] sm:$0xf]
      %v242 = vld [vmem:[%s172 + $0x4] sm:$0xf]
      %v243 = vld [vmem:[%s172 + $0x8] sm:$0xf]
      %v244 = vld [vmem:[%s172 + $0xc] sm:$0xf]
      %v245 = vld [vmem:[%s172 + $0x10] sm:$0xf]
      %v246 = vld [vmem:[%s172 + $0x14] sm:$0xf]
      %v247 = vld [vmem:[%s172 + $0x18] sm:$0xf]
      %v248 = vld [vmem:[%s172 + $0x1c] sm:$0xf]
      %v249 = vld [vmem:[%s172 + $0x20] sm:$0xf]
      %v250 = vld [vmem:[%s172 + $0x24] sm:$0xf]
      %v251 = vld [vmem:[%s172 + $0x28] sm:$0xf]
      %v252 = vld [vmem:[%s172 + $0x2c] sm:$0xf]
      %v253 = vld [vmem:[%s172 + $0x30] sm:$0xf]
      %v254 = vld [vmem:[%s172 + $0x34] sm:$0xf]
      %v255 = vld [vmem:[%s172 + $0x38] sm:$0xf]
      %v256 = vld [vmem:[%s172 + $0x3c] sm:$0xf]
      %v257 = vld [vmem:[%s172 + $0x40] sm:$0xf]
      %v258 = vld [vmem:[%s172 + $0x44] sm:$0xf]
      %v259 = vld [vmem:[%s172 + $0x48] sm:$0xf]
      %v260 = vld [vmem:[%s172 + $0x4c] sm:$0xf]
      %v261 = vld [vmem:[%s172 + $0x50] sm:$0xf]
      %v262 = vld [vmem:[%s172 + $0x54] sm:$0xf]
      %v263 = vld [vmem:[%s172 + $0x58] sm:$0xf]
      %v264 = vld [vmem:[%s172 + $0x5c] sm:$0xf]
      %v265 = vld [vmem:[%s172 + $0x60] sm:$0xf]
      %v266 = vld [vmem:[%s172 + $0x64] sm:$0xf]
      %v267 = vld [vmem:[%s172 + $0x68] sm:$0xf]
      %v268 = vld [vmem:[%s172 + $0x6c] sm:$0xf]
      %vm269 = vsmask.f32 3328
      %vm270 = vsmask.f32 7440
      %vm271 = vmor %vm269, %vm270
      %v273 = vshrl.u32 %v241, 16
      %v275 = vrot.slane %v273, 4
      %v276 = vshll.u32 %v241, 16
      %v278 = vrot.slane %v276, 5
      %v279 = vor.u32 %v275, %v278
      %v280 = vrot.slane %v279, 4
      %v282 = vshll.u32 %v242, 16
      %v284 = vrot.slane %v282, 5
      %v285 = vsel %vm271, %v280, %v284
      %v286 = vshrl.u32 %v242, 16
      %v288 = vrot.slane %v286, 4
      %v289 = vor.u32 %v288, %v284
      %v290 = vrot.slane %v289, 4
      %v292 = vshrl.u32 %v243, 16
      %v294 = vrot.slane %v292, 4
      %v295 = vshll.u32 %v243, 16
      %v297 = vrot.slane %v295, 5
      %v298 = vor.u32 %v294, %v297
      %v299 = vrot.slane %v298, 4
      %v301 = vshll.u32 %v244, 16
      %v303 = vrot.slane %v301, 5
      %v304 = vsel %vm271, %v299, %v303
      %v305 = vshrl.u32 %v244, 16
      %v307 = vrot.slane %v305, 4
      %v308 = vor.u32 %v307, %v303
      %v309 = vrot.slane %v308, 4
      %v311 = vshrl.u32 %v245, 16
      %v313 = vrot.slane %v311, 4
      %v314 = vshll.u32 %v245, 16
      %v316 = vrot.slane %v314, 5
      %v317 = vor.u32 %v313, %v316
      %v318 = vrot.slane %v317, 4
      %v320 = vshll.u32 %v246, 16
      %v322 = vrot.slane %v320, 5
      %v323 = vsel %vm271, %v318, %v322
      %v324 = vshrl.u32 %v246, 16
      %v326 = vrot.slane %v324, 4
      %v327 = vor.u32 %v326, %v322
      %v328 = vrot.slane %v327, 4
      %v330 = vshrl.u32 %v247, 16
      %v332 = vrot.slane %v330, 4
      %v333 = vshll.u32 %v247, 16
      %v335 = vrot.slane %v333, 5
      %v336 = vor.u32 %v332, %v335
      %v337 = vrot.slane %v336, 4
      %v339 = vshll.u32 %v248, 16
      %v341 = vrot.slane %v339, 5
      %v342 = vsel %vm271, %v337, %v341
      %v343 = vshrl.u32 %v248, 16
      %v345 = vrot.slane %v343, 4
      %v346 = vor.u32 %v345, %v341
      %v347 = vrot.slane %v346, 4
      %v349 = vshrl.u32 %v249, 16
      %v351 = vrot.slane %v349, 4
      %v352 = vshll.u32 %v249, 16
      %v354 = vrot.slane %v352, 5
      %v355 = vor.u32 %v351, %v354
      %v356 = vrot.slane %v355, 4
      %v358 = vshll.u32 %v250, 16
      %v360 = vrot.slane %v358, 5
      %v361 = vsel %vm271, %v356, %v360
      %v362 = vshrl.u32 %v250, 16
      %v364 = vrot.slane %v362, 4
      %v365 = vor.u32 %v364, %v360
      %v366 = vrot.slane %v365, 4
      %v368 = vshrl.u32 %v251, 16
      %v370 = vrot.slane %v368, 4
      %v371 = vshll.u32 %v251, 16
      %v373 = vrot.slane %v371, 5
      %v374 = vor.u32 %v370, %v373
      %v375 = vrot.slane %v374, 4
      %v377 = vshll.u32 %v252, 16
      %v379 = vrot.slane %v377, 5
      %v380 = vsel %vm271, %v375, %v379
      %v381 = vshrl.u32 %v252, 16
      %v383 = vrot.slane %v381, 4
      %v384 = vor.u32 %v383, %v379
      %v385 = vrot.slane %v384, 4
      %v387 = vshrl.u32 %v253, 16
      %v389 = vrot.slane %v387, 4
      %v390 = vshll.u32 %v253, 16
      %v392 = vrot.slane %v390, 5
      %v393 = vor.u32 %v389, %v392
      %v394 = vrot.slane %v393, 4
      %v396 = vshll.u32 %v254, 16
      %v398 = vrot.slane %v396, 5
      %v399 = vsel %vm271, %v394, %v398
      %v400 = vshrl.u32 %v254, 16
      %v402 = vrot.slane %v400, 4
      %v403 = vor.u32 %v402, %v398
      %v404 = vrot.slane %v403, 4
      %v406 = vshrl.u32 %v255, 16
      %v408 = vrot.slane %v406, 4
      %v409 = vshll.u32 %v255, 16
      %v411 = vrot.slane %v409, 5
      %v412 = vor.u32 %v408, %v411
      %v413 = vrot.slane %v412, 4
      %v415 = vshll.u32 %v256, 16
      %v417 = vrot.slane %v415, 5
      %v418 = vsel %vm271, %v413, %v417
      %v419 = vshrl.u32 %v256, 16
      %v421 = vrot.slane %v419, 4
      %v422 = vor.u32 %v421, %v417
      %v423 = vrot.slane %v422, 4
      %v425 = vshrl.u32 %v257, 16
      %v427 = vrot.slane %v425, 4
      %v428 = vshll.u32 %v257, 16
      %v430 = vrot.slane %v428, 5
      %v431 = vor.u32 %v427, %v430
      %v432 = vrot.slane %v431, 4
      %v434 = vshll.u32 %v258, 16
      %v436 = vrot.slane %v434, 5
      %v437 = vsel %vm271, %v432, %v436
      %v438 = vshrl.u32 %v258, 16
      %v440 = vrot.slane %v438, 4
      %v441 = vor.u32 %v440, %v436
      %v442 = vrot.slane %v441, 4
      %v444 = vshrl.u32 %v259, 16
      %v446 = vrot.slane %v444, 4
      %v447 = vshll.u32 %v259, 16
      %v449 = vrot.slane %v447, 5
      %v450 = vor.u32 %v446, %v449
      %v451 = vrot.slane %v450, 4
      %v453 = vshll.u32 %v260, 16
      %v455 = vrot.slane %v453, 5
      %v456 = vsel %vm271, %v451, %v455
      %v457 = vshrl.u32 %v260, 16
      %v459 = vrot.slane %v457, 4
      %v460 = vor.u32 %v459, %v455
      %v461 = vrot.slane %v460, 4
      %v463 = vshrl.u32 %v261, 16
      %v465 = vrot.slane %v463, 4
      %v466 = vshll.u32 %v261, 16
      %v468 = vrot.slane %v466, 5
      %v469 = vor.u32 %v465, %v468
      %v470 = vrot.slane %v469, 4
      %v472 = vshll.u32 %v262, 16
      %v474 = vrot.slane %v472, 5
      %v475 = vsel %vm271, %v470, %v474
      %v476 = vshrl.u32 %v262, 16
      %v478 = vrot.slane %v476, 4
      %v479 = vor.u32 %v478, %v474
      %v480 = vrot.slane %v479, 4
      %v482 = vshrl.u32 %v263, 16
      %v484 = vrot.slane %v482, 4
      %v485 = vshll.u32 %v263, 16
      %v487 = vrot.slane %v485, 5
      %v488 = vor.u32 %v484, %v487
      %v489 = vrot.slane %v488, 4
      %v491 = vshll.u32 %v264, 16
      %v493 = vrot.slane %v491, 5
      %v494 = vsel %vm271, %v489, %v493
      %v495 = vshrl.u32 %v264, 16
      %v497 = vrot.slane %v495, 4
      %v498 = vor.u32 %v497, %v493
      %v499 = vrot.slane %v498, 4
      %v501 = vshrl.u32 %v265, 16
      %v503 = vrot.slane %v501, 4
      %v504 = vshll.u32 %v265, 16
      %v506 = vrot.slane %v504, 5
      %v507 = vor.u32 %v503, %v506
      %v508 = vrot.slane %v507, 4
      %v510 = vshll.u32 %v266, 16
      %v512 = vrot.slane %v510, 5
      %v513 = vsel %vm271, %v508, %v512
      %v514 = vshrl.u32 %v266, 16
      %v516 = vrot.slane %v514, 4
      %v517 = vor.u32 %v516, %v512
      %v518 = vrot.slane %v517, 4
      %v520 = vshrl.u32 %v267, 16
      %v522 = vrot.slane %v520, 4
      %v523 = vshll.u32 %v267, 16
      %v525 = vrot.slane %v523, 5
      %v526 = vor.u32 %v522, %v525
      %v527 = vrot.slane %v526, 4
      %v529 = vshll.u32 %v268, 16
      %v531 = vrot.slane %v529, 5
      %v532 = vsel %vm271, %v527, %v531
      %v533 = vshrl.u32 %v268, 16
      %v535 = vrot.slane %v533, 4
      %v536 = vor.u32 %v535, %v531
      %v537 = vrot.slane %v536, 4
      %538 = vrot.lane.b32.xlu0 %v285, 4
      %v539 = vpop.permute.xlu0 %538
      %540 = vrot.lane.b32.xlu0 %v290, 4
      %v541 = vpop.permute.xlu0 %540
      %542 = vrot.lane.b32.xlu0 %v304, 4
      %v543 = vpop.permute.xlu0 %542
      %544 = vrot.lane.b32.xlu0 %v309, 4
      %v545 = vpop.permute.xlu0 %544
      %546 = vrot.lane.b32.xlu0 %v323, 4
      %v547 = vpop.permute.xlu0 %546
      %548 = vrot.lane.b32.xlu0 %v328, 4
      %v549 = vpop.permute.xlu0 %548
      %550 = vrot.lane.b32.xlu0 %v342, 4
      %v551 = vpop.permute.xlu0 %550
      %552 = vrot.lane.b32.xlu0 %v347, 4
      %v553 = vpop.permute.xlu0 %552
      %554 = vrot.lane.b32.xlu0 %v361, 4
      %v555 = vpop.permute.xlu0 %554
      %556 = vrot.lane.b32.xlu0 %v366, 4
      %v557 = vpop.permute.xlu0 %556
      %558 = vrot.lane.b32.xlu0 %v380, 4
      %v559 = vpop.permute.xlu0 %558
      %560 = vrot.lane.b32.xlu0 %v385, 4
      %v561 = vpop.permute.xlu0 %560
      %562 = vrot.lane.b32.xlu0 %v399, 4
      %v563 = vpop.permute.xlu0 %562
      %564 = vrot.lane.b32.xlu0 %v404, 4
      %v565 = vpop.permute.xlu0 %564
      %566 = vrot.lane.b32.xlu0 %v418, 4
      %v567 = vpop.permute.xlu0 %566
      %568 = vrot.lane.b32.xlu0 %v423, 4
      %v569 = vpop.permute.xlu0 %568
      %570 = vrot.lane.b32.xlu0 %v437, 4
      %v571 = vpop.permute.xlu0 %570
      %572 = vrot.lane.b32.xlu0 %v442, 4
      %v573 = vpop.permute.xlu0 %572
      %574 = vrot.lane.b32.xlu0 %v456, 4
      %v575 = vpop.permute.xlu0 %574
      %576 = vrot.lane.b32.xlu0 %v461, 4
      %v577 = vpop.permute.xlu0 %576
      %578 = vrot.lane.b32.xlu0 %v475, 4
      %v579 = vpop.permute.xlu0 %578
      %580 = vrot.lane.b32.xlu0 %v480, 4
      %v581 = vpop.permute.xlu0 %580
      %582 = vrot.lane.b32.xlu0 %v494, 4
      %v583 = vpop.permute.xlu0 %582
      %584 = vrot.lane.b32.xlu0 %v499, 4
      %v585 = vpop.permute.xlu0 %584
      %586 = vrot.lane.b32.xlu0 %v513, 4
      %v587 = vpop.permute.xlu0 %586
      %588 = vrot.lane.b32.xlu0 %v518, 4
      %v589 = vpop.permute.xlu0 %588
      %590 = vrot.lane.b32.xlu0 %v532, 4
      %v591 = vpop.permute.xlu0 %590
      %592 = vrot.lane.b32.xlu0 %v537, 4
      %v593 = vpop.permute.xlu0 %592
      %vm622 = vcmask 60448
      %623 = vst.msk [vmem:[#allocation2] sm:$0xf] %vm622, %v539
      %vm624 = vcmask 59424
      %625 = vst.msk [vmem:[#allocation2 + $0x4] sm:$0x7] %vm624, %v541
      %626 = vst.msk [vmem:[#allocation2 + $0x8] sm:$0xf] %vm622, %v543
      %627 = vst.msk [vmem:[#allocation2 + $0xc] sm:$0x7] %vm624, %v545
      %628 = vst.msk [vmem:[#allocation2 + $0x10] sm:$0xf] %vm622, %v547
      %629 = vst.msk [vmem:[#allocation2 + $0x14] sm:$0x7] %vm624, %v549
      %630 = vst.msk [vmem:[#allocation2 + $0x18] sm:$0xf] %vm622, %v551
      %631 = vst.msk [vmem:[#allocation2 + $0x1c] sm:$0x7] %vm624, %v553
      %632 = vst.msk [vmem:[#allocation2 + $0x20] sm:$0xf] %vm622, %v555
      %633 = vst.msk [vmem:[#allocation2 + $0x24] sm:$0x7] %vm624, %v557
      %634 = vst.msk [vmem:[#allocation2 + $0x28] sm:$0xf] %vm622, %v559
      %635 = vst.msk [vmem:[#allocation2 + $0x2c] sm:$0x7] %vm624, %v561
      %636 = vst.msk [vmem:[#allocation2 + $0x30] sm:$0xf] %vm622, %v563
      %637 = vst.msk [vmem:[#allocation2 + $0x34] sm:$0x7] %vm624, %v565
      %638 = vst.msk [vmem:[#allocation2 + $0x38] sm:$0xf] %vm622, %v567
      %639 = vst.msk [vmem:[#allocation2 + $0x3c] sm:$0x7] %vm624, %v569
      %640 = vst.msk [vmem:[#allocation2 + $0x40] sm:$0xf] %vm622, %v571
      %641 = vst.msk [vmem:[#allocation2 + $0x44] sm:$0x7] %vm624, %v573
      %642 = vst.msk [vmem:[#allocation2 + $0x48] sm:$0xf] %vm622, %v575
      %643 = vst.msk [vmem:[#allocation2 + $0x4c] sm:$0x7] %vm624, %v577
      %644 = vst.msk [vmem:[#allocation2 + $0x50] sm:$0xf] %vm622, %v579
      %645 = vst.msk [vmem:[#allocation2 + $0x54] sm:$0x7] %vm624, %v581
      %646 = vst.msk [vmem:[#allocation2 + $0x58] sm:$0xf] %vm622, %v583
      %647 = vst.msk [vmem:[#allocation2 + $0x5c] sm:$0x7] %vm624, %v585
      %648 = vst.msk [vmem:[#allocation2 + $0x60] sm:$0xf] %vm622, %v587
      %649 = vst.msk [vmem:[#allocation2 + $0x64] sm:$0x7] %vm624, %v589
      %650 = vst.msk [vmem:[#allocation2 + $0x68] sm:$0xf] %vm622, %v591
      %651 = vst.msk [vmem:[#allocation2 + $0x6c] sm:$0x7] %vm624, %v593
      %v652 = vld [vmem:[%s172] sm:$0xe]
      %v653 = vld [vmem:[%s172 + $0x4] sm:$0xf]
      %v654 = vld [vmem:[%s172 + $0x8] sm:$0xe]
      %v655 = vld [vmem:[%s172 + $0xc] sm:$0xf]
      %v656 = vld [vmem:[%s172 + $0x10] sm:$0xe]
      %v657 = vld [vmem:[%s172 + $0x14] sm:$0xf]
      %v658 = vld [vmem:[%s172 + $0x18] sm:$0xe]
      %v659 = vld [vmem:[%s172 + $0x1c] sm:$0xf]
      %v660 = vld [vmem:[%s172 + $0x20] sm:$0xe]
      %v661 = vld [vmem:[%s172 + $0x24] sm:$0xf]
      %v662 = vld [vmem:[%s172 + $0x28] sm:$0xe]
      %v663 = vld [vmem:[%s172 + $0x2c] sm:$0xf]
      %v664 = vld [vmem:[%s172 + $0x30] sm:$0xe]
      %v665 = vld [vmem:[%s172 + $0x34] sm:$0xf]
      %v666 = vld [vmem:[%s172 + $0x38] sm:$0xe]
      %v667 = vld [vmem:[%s172 + $0x3c] sm:$0xf]
      %v668 = vld [vmem:[%s172 + $0x40] sm:$0xe]
      %v669 = vld [vmem:[%s172 + $0x44] sm:$0xf]
      %v670 = vld [vmem:[%s172 + $0x48] sm:$0xe]
      %v671 = vld [vmem:[%s172 + $0x4c] sm:$0xf]
      %v672 = vld [vmem:[%s172 + $0x50] sm:$0xe]
      %v673 = vld [vmem:[%s172 + $0x54] sm:$0xf]
      %v674 = vld [vmem:[%s172 + $0x58] sm:$0xe]
      %v675 = vld [vmem:[%s172 + $0x5c] sm:$0xf]
      %v676 = vld [vmem:[%s172 + $0x60] sm:$0xe]
      %v677 = vld [vmem:[%s172 + $0x64] sm:$0xf]
      %v678 = vld [vmem:[%s172 + $0x68] sm:$0xe]
      %v679 = vld [vmem:[%s172 + $0x6c] sm:$0xf]
      %vm708 = vcmask 1042432
      %vm709 = vcmask 1046532
      %vm710 = vmor %vm708, %vm709
      %v711 = vrot.slane %v652, 5
      %v712 = vrot.slane %v711, 4
      %v713 = vrot.slane %v653, 5
      %v714 = vsel %vm710, %v712, %v713
      %v715 = vrot.slane %v713, 4
      %v716 = vrot.slane %v654, 5
      %v717 = vrot.slane %v716, 4
      %v718 = vrot.slane %v655, 5
      %v719 = vsel %vm710, %v717, %v718
      %v720 = vrot.slane %v718, 4
      %v721 = vrot.slane %v656, 5
      %v722 = vrot.slane %v721, 4
      %v723 = vrot.slane %v657, 5
      %v724 = vsel %vm710, %v722, %v723
      %v725 = vrot.slane %v723, 4
      %v726 = vrot.slane %v658, 5
      %v727 = vrot.slane %v726, 4
      %v728 = vrot.slane %v659, 5
      %v729 = vsel %vm710, %v727, %v728
      %v730 = vrot.slane %v728, 4
      %v731 = vrot.slane %v660, 5
      %v732 = vrot.slane %v731, 4
      %v733 = vrot.slane %v661, 5
      %v734 = vsel %vm710, %v732, %v733
      %v735 = vrot.slane %v733, 4
      %v736 = vrot.slane %v662, 5
      %v737 = vrot.slane %v736, 4
      %v738 = vrot.slane %v663, 5
      %v739 = vsel %vm710, %v737, %v738
      %v740 = vrot.slane %v738, 4
      %v741 = vrot.slane %v664, 5
      %v742 = vrot.slane %v741, 4
      %v743 = vrot.slane %v665, 5
      %v744 = vsel %vm710, %v742, %v743
      %v745 = vrot.slane %v743, 4
      %v746 = vrot.slane %v666, 5
      %v747 = vrot.slane %v746, 4
      %v748 = vrot.slane %v667, 5
      %v749 = vsel %vm710, %v747, %v748
      %v750 = vrot.slane %v748, 4
      %v751 = vrot.slane %v668, 5
      %v752 = vrot.slane %v751, 4
      %v753 = vrot.slane %v669, 5
      %v754 = vsel %vm710, %v752, %v753
      %v755 = vrot.slane %v753, 4
      %v756 = vrot.slane %v670, 5
      %v757 = vrot.slane %v756, 4
      %v758 = vrot.slane %v671, 5
      %v759 = vsel %vm710, %v757, %v758
      %v760 = vrot.slane %v758, 4
      %v761 = vrot.slane %v672, 5
      %v762 = vrot.slane %v761, 4
      %v763 = vrot.slane %v673, 5
      %v764 = vsel %vm710, %v762, %v763
      %v765 = vrot.slane %v763, 4
      %v766 = vrot.slane %v674, 5
      %v767 = vrot.slane %v766, 4
      %v768 = vrot.slane %v675, 5
      %v769 = vsel %vm710, %v767, %v768
      %v770 = vrot.slane %v768, 4
      %v771 = vrot.slane %v676, 5
      %v772 = vrot.slane %v771, 4
      %v773 = vrot.slane %v677, 5
      %v774 = vsel %vm710, %v772, %v773
      %v775 = vrot.slane %v773, 4
      %v776 = vrot.slane %v678, 5
      %v777 = vrot.slane %v776, 4
      %v778 = vrot.slane %v679, 5
      %v779 = vsel %vm710, %v777, %v778
      %v780 = vrot.slane %v778, 4
      %781 = vrot.lane.b32.xlu0 %v714, 8
      %v782 = vpop.permute.xlu0 %781
      %783 = vrot.lane.b32.xlu0 %v715, 8
      %v784 = vpop.permute.xlu0 %783
      %785 = vrot.lane.b32.xlu0 %v719, 8
      %v786 = vpop.permute.xlu0 %785
      %787 = vrot.lane.b32.xlu0 %v720, 8
      %v788 = vpop.permute.xlu0 %787
      %789 = vrot.lane.b32.xlu0 %v724, 8
      %v790 = vpop.permute.xlu0 %789
      %791 = vrot.lane.b32.xlu0 %v725, 8
      %v792 = vpop.permute.xlu0 %791
      %793 = vrot.lane.b32.xlu0 %v729, 8
      %v794 = vpop.permute.xlu0 %793
      %795 = vrot.lane.b32.xlu0 %v730, 8
      %v796 = vpop.permute.xlu0 %795
      %797 = vrot.lane.b32.xlu0 %v734, 8
      %v798 = vpop.permute.xlu0 %797
      %799 = vrot.lane.b32.xlu0 %v735, 8
      %v800 = vpop.permute.xlu0 %799
      %801 = vrot.lane.b32.xlu0 %v739, 8
      %v802 = vpop.permute.xlu0 %801
      %803 = vrot.lane.b32.xlu0 %v740, 8
      %v804 = vpop.permute.xlu0 %803
      %805 = vrot.lane.b32.xlu0 %v744, 8
      %v806 = vpop.permute.xlu0 %805
      %807 = vrot.lane.b32.xlu0 %v745, 8
      %v808 = vpop.permute.xlu0 %807
      %809 = vrot.lane.b32.xlu0 %v749, 8
      %v810 = vpop.permute.xlu0 %809
      %811 = vrot.lane.b32.xlu0 %v750, 8
      %v812 = vpop.permute.xlu0 %811
      %813 = vrot.lane.b32.xlu0 %v754, 8
      %v814 = vpop.permute.xlu0 %813
      %815 = vrot.lane.b32.xlu0 %v755, 8
      %v816 = vpop.permute.xlu0 %815
      %817 = vrot.lane.b32.xlu0 %v759, 8
      %v818 = vpop.permute.xlu0 %817
      %819 = vrot.lane.b32.xlu0 %v760, 8
      %v820 = vpop.permute.xlu0 %819
      %821 = vrot.lane.b32.xlu0 %v764, 8
      %v822 = vpop.permute.xlu0 %821
      %823 = vrot.lane.b32.xlu0 %v765, 8
      %v824 = vpop.permute.xlu0 %823
      %825 = vrot.lane.b32.xlu0 %v769, 8
      %v826 = vpop.permute.xlu0 %825
      %827 = vrot.lane.b32.xlu0 %v770, 8
      %v828 = vpop.permute.xlu0 %827
      %829 = vrot.lane.b32.xlu0 %v774, 8
      %v830 = vpop.permute.xlu0 %829
      %831 = vrot.lane.b32.xlu0 %v775, 8
      %v832 = vpop.permute.xlu0 %831
      %833 = vrot.lane.b32.xlu0 %v779, 8
      %v834 = vpop.permute.xlu0 %833
      %835 = vrot.lane.b32.xlu0 %v780, 8
      %v836 = vpop.permute.xlu0 %835
      %vm865 = vcmask 93248
      %866 = vst.msk [vmem:[#allocation2] sm:$0xf] %vm865, %v782
      %vm867 = vcmask 92224
      %868 = vst.msk [vmem:[#allocation2 + $0x4] sm:$0x7] %vm867, %v784
      %869 = vst.msk [vmem:[#allocation2 + $0x8] sm:$0xf] %vm865, %v786
      %870 = vst.msk [vmem:[#allocation2 + $0xc] sm:$0x7] %vm867, %v788
      %871 = vst.msk [vmem:[#allocation2 + $0x10] sm:$0xf] %vm865, %v790
      %872 = vst.msk [vmem:[#allocation2 + $0x14] sm:$0x7] %vm867, %v792
      %873 = vst.msk [vmem:[#allocation2 + $0x18] sm:$0xf] %vm865, %v794
      %874 = vst.msk [vmem:[#allocation2 + $0x1c] sm:$0x7] %vm867, %v796
      %875 = vst.msk [vmem:[#allocation2 + $0x20] sm:$0xf] %vm865, %v798
      %876 = vst.msk [vmem:[#allocation2 + $0x24] sm:$0x7] %vm867, %v800
      %877 = vst.msk [vmem:[#allocation2 + $0x28] sm:$0xf] %vm865, %v802
      %878 = vst.msk [vmem:[#allocation2 + $0x2c] sm:$0x7] %vm867, %v804
      %879 = vst.msk [vmem:[#allocation2 + $0x30] sm:$0xf] %vm865, %v806
      %880 = vst.msk [vmem:[#allocation2 + $0x34] sm:$0x7] %vm867, %v808
      %881 = vst.msk [vmem:[#allocation2 + $0x38] sm:$0xf] %vm865, %v810
      %882 = vst.msk [vmem:[#allocation2 + $0x3c] sm:$0x7] %vm867, %v812
      %883 = vst.msk [vmem:[#allocation2 + $0x40] sm:$0xf] %vm865, %v814
      %884 = vst.msk [vmem:[#allocation2 + $0x44] sm:$0x7] %vm867, %v816
      %885 = vst.msk [vmem:[#allocation2 + $0x48] sm:$0xf] %vm865, %v818
      %886 = vst.msk [vmem:[#allocation2 + $0x4c] sm:$0x7] %vm867, %v820
      %887 = vst.msk [vmem:[#allocation2 + $0x50] sm:$0xf] %vm865, %v822
      %888 = vst.msk [vmem:[#allocation2 + $0x54] sm:$0x7] %vm867, %v824
      %889 = vst.msk [vmem:[#allocation2 + $0x58] sm:$0xf] %vm865, %v826
      %890 = vst.msk [vmem:[#allocation2 + $0x5c] sm:$0x7] %vm867, %v828
      %891 = vst.msk [vmem:[#allocation2 + $0x60] sm:$0xf] %vm865, %v830
      %892 = vst.msk [vmem:[#allocation2 + $0x64] sm:$0x7] %vm867, %v832
      %893 = vst.msk [vmem:[#allocation2 + $0x68] sm:$0xf] %vm865, %v834
      %894 = vst.msk [vmem:[#allocation2 + $0x6c] sm:$0x7] %vm867, %v836
      %s895 = scalar_lea.vmem %s172, 8
      %v896 = vld [vmem:[%s895] sm:$0xf]
      %v897 = vld [vmem:[%s895 + $0x4] sm:$0x7]
      %v898 = vld [vmem:[%s895 + $0x8] sm:$0xf]
      %v899 = vld [vmem:[%s895 + $0xc] sm:$0x7]
      %v900 = vld [vmem:[%s895 + $0x10] sm:$0xf]
      %v901 = vld [vmem:[%s895 + $0x14] sm:$0x7]
      %v902 = vld [vmem:[%s895 + $0x18] sm:$0xf]
      %v903 = vld [vmem:[%s895 + $0x1c] sm:$0x7]
      %v904 = vld [vmem:[%s895 + $0x20] sm:$0xf]
      %v905 = vld [vmem:[%s895 + $0x24] sm:$0x7]
      %v906 = vld [vmem:[%s895 + $0x28] sm:$0xf]
      %v907 = vld [vmem:[%s895 + $0x2c] sm:$0x7]
      %v908 = vld [vmem:[%s895 + $0x30] sm:$0xf]
      %v909 = vld [vmem:[%s895 + $0x34] sm:$0x7]
      %v910 = vld [vmem:[%s895 + $0x38] sm:$0xf]
      %v911 = vld [vmem:[%s895 + $0x3c] sm:$0x7]
      %v912 = vld [vmem:[%s895 + $0x40] sm:$0xf]
      %v913 = vld [vmem:[%s895 + $0x44] sm:$0x7]
      %v914 = vld [vmem:[%s895 + $0x48] sm:$0xf]
      %v915 = vld [vmem:[%s895 + $0x4c] sm:$0x7]
      %v916 = vld [vmem:[%s895 + $0x50] sm:$0xf]
      %v917 = vld [vmem:[%s895 + $0x54] sm:$0x7]
      %v918 = vld [vmem:[%s895 + $0x58] sm:$0xf]
      %v919 = vld [vmem:[%s895 + $0x5c] sm:$0x7]
      %v920 = vld [vmem:[%s895 + $0x60] sm:$0xf]
      %v921 = vld [vmem:[%s895 + $0x64] sm:$0x7]
      %v922 = vld [vmem:[%s895 + $0x68] sm:$0xf]
      %v923 = vld [vmem:[%s895 + $0x6c] sm:$0x7]
      %952 = vrot.lane.b32.xlu0 %v896, 12
      %v953 = vpop.permute.xlu0 %952
      %954 = vrot.lane.b32.xlu0 %v897, 12
      %v955 = vpop.permute.xlu0 %954
      %956 = vrot.lane.b32.xlu0 %v898, 12
      %v957 = vpop.permute.xlu0 %956
      %958 = vrot.lane.b32.xlu0 %v899, 12
      %v959 = vpop.permute.xlu0 %958
      %960 = vrot.lane.b32.xlu0 %v900, 12
      %v961 = vpop.permute.xlu0 %960
      %962 = vrot.lane.b32.xlu0 %v901, 12
      %v963 = vpop.permute.xlu0 %962
      %964 = vrot.lane.b32.xlu0 %v902, 12
      %v965 = vpop.permute.xlu0 %964
      %966 = vrot.lane.b32.xlu0 %v903, 12
      %v967 = vpop.permute.xlu0 %966
      %968 = vrot.lane.b32.xlu0 %v904, 12
      %v969 = vpop.permute.xlu0 %968
      %970 = vrot.lane.b32.xlu0 %v905, 12
      %v971 = vpop.permute.xlu0 %970
      %972 = vrot.lane.b32.xlu0 %v906, 12
      %v973 = vpop.permute.xlu0 %972
      %974 = vrot.lane.b32.xlu0 %v907, 12
      %v975 = vpop.permute.xlu0 %974
      %976 = vrot.lane.b32.xlu0 %v908, 12
      %v977 = vpop.permute.xlu0 %976
      %978 = vrot.lane.b32.xlu0 %v909, 12
      %v979 = vpop.permute.xlu0 %978
      %980 = vrot.lane.b32.xlu0 %v910, 12
      %v981 = vpop.permute.xlu0 %980
      %982 = vrot.lane.b32.xlu0 %v911, 12
      %v983 = vpop.permute.xlu0 %982
      %984 = vrot.lane.b32.xlu0 %v912, 12
      %v985 = vpop.permute.xlu0 %984
      %986 = vrot.lane.b32.xlu0 %v913, 12
      %v987 = vpop.permute.xlu0 %986
      %988 = vrot.lane.b32.xlu0 %v914, 12
      %v989 = vpop.permute.xlu0 %988
      %990 = vrot.lane.b32.xlu0 %v915, 12
      %v991 = vpop.permute.xlu0 %990
      %992 = vrot.lane.b32.xlu0 %v916, 12
      %v993 = vpop.permute.xlu0 %992
      %994 = vrot.lane.b32.xlu0 %v917, 12
      %v995 = vpop.permute.xlu0 %994
      %996 = vrot.lane.b32.xlu0 %v918, 12
      %v997 = vpop.permute.xlu0 %996
      %998 = vrot.lane.b32.xlu0 %v919, 12
      %v999 = vpop.permute.xlu0 %998
      %1000 = vrot.lane.b32.xlu0 %v920, 12
      %v1001 = vpop.permute.xlu0 %1000
      %1002 = vrot.lane.b32.xlu0 %v921, 12
      %v1003 = vpop.permute.xlu0 %1002
      %1004 = vrot.lane.b32.xlu0 %v922, 12
      %v1005 = vpop.permute.xlu0 %1004
      %1006 = vrot.lane.b32.xlu0 %v923, 12
      %v1007 = vpop.permute.xlu0 %1006
      %vm1036 = vcmask 126048
      %1037 = vst.msk [vmem:[#allocation2] sm:$0xf] %vm1036, %v953
      %vm1038 = vcmask 125024
      %1039 = vst.msk [vmem:[#allocation2 + $0x4] sm:$0x7] %vm1038, %v955
      %1040 = vst.msk [vmem:[#allocation2 + $0x8] sm:$0xf] %vm1036, %v957
      %1041 = vst.msk [vmem:[#allocation2 + $0xc] sm:$0x7] %vm1038, %v959
      %1042 = vst.msk [vmem:[#allocation2 + $0x10] sm:$0xf] %vm1036, %v961
      %1043 = vst.msk [vmem:[#allocation2 + $0x14] sm:$0x7] %vm1038, %v963
      %1044 = vst.msk [vmem:[#allocation2 + $0x18] sm:$0xf] %vm1036, %v965
      %1045 = vst.msk [vmem:[#allocation2 + $0x1c] sm:$0x7] %vm1038, %v967
      %1046 = vst.msk [vmem:[#allocation2 + $0x20] sm:$0xf] %vm1036, %v969
      %1047 = vst.msk [vmem:[#allocation2 + $0x24] sm:$0x7] %vm1038, %v971
      %1048 = vst.msk [vmem:[#allocation2 + $0x28] sm:$0xf] %vm1036, %v973
      %1049 = vst.msk [vmem:[#allocation2 + $0x2c] sm:$0x7] %vm1038, %v975
      %1050 = vst.msk [vmem:[#allocation2 + $0x30] sm:$0xf] %vm1036, %v977
      %1051 = vst.msk [vmem:[#allocation2 + $0x34] sm:$0x7] %vm1038, %v979
      %1052 = vst.msk [vmem:[#allocation2 + $0x38] sm:$0xf] %vm1036, %v981
      %1053 = vst.msk [vmem:[#allocation2 + $0x3c] sm:$0x7] %vm1038, %v983
      %1054 = vst.msk [vmem:[#allocation2 + $0x40] sm:$0xf] %vm1036, %v985
      %1055 = vst.msk [vmem:[#allocation2 + $0x44] sm:$0x7] %vm1038, %v987
      %1056 = vst.msk [vmem:[#allocation2 + $0x48] sm:$0xf] %vm1036, %v989
      %1057 = vst.msk [vmem:[#allocation2 + $0x4c] sm:$0x7] %vm1038, %v991
      %1058 = vst.msk [vmem:[#allocation2 + $0x50] sm:$0xf] %vm1036, %v993
      %1059 = vst.msk [vmem:[#allocation2 + $0x54] sm:$0x7] %vm1038, %v995
      %1060 = vst.msk [vmem:[#allocation2 + $0x58] sm:$0xf] %vm1036, %v997
      %1061 = vst.msk [vmem:[#allocation2 + $0x5c] sm:$0x7] %vm1038, %v999
      %1062 = vst.msk [vmem:[#allocation2 + $0x60] sm:$0xf] %vm1036, %v1001
      %1063 = vst.msk [vmem:[#allocation2 + $0x64] sm:$0x7] %vm1038, %v1003
      %1064 = vst.msk [vmem:[#allocation2 + $0x68] sm:$0xf] %vm1036, %v1005
      %1065 = vst.msk [vmem:[#allocation2 + $0x6c] sm:$0x7] %vm1038, %v1007
      %v1066 = vld [vmem:[%s895] sm:$0xf]
      %v1067 = vld [vmem:[%s895 + $0x4] sm:$0xf]
      %v1068 = vld [vmem:[%s895 + $0x8] sm:$0xf]
      %v1069 = vld [vmem:[%s895 + $0xc] sm:$0xf]
      %v1070 = vld [vmem:[%s895 + $0x10] sm:$0xf]
      %v1071 = vld [vmem:[%s895 + $0x14] sm:$0xf]
      %v1072 = vld [vmem:[%s895 + $0x18] sm:$0xf]
      %v1073 = vld [vmem:[%s895 + $0x1c] sm:$0xf]
      %v1074 = vld [vmem:[%s895 + $0x20] sm:$0xf]
      %v1075 = vld [vmem:[%s895 + $0x24] sm:$0xf]
      %v1076 = vld [vmem:[%s895 + $0x28] sm:$0xf]
      %v1077 = vld [vmem:[%s895 + $0x2c] sm:$0xf]
      %v1078 = vld [vmem:[%s895 + $0x30] sm:$0xf]
      %v1079 = vld [vmem:[%s895 + $0x34] sm:$0xf]
      %v1080 = vld [vmem:[%s895 + $0x38] sm:$0xf]
      %v1081 = vld [vmem:[%s895 + $0x3c] sm:$0xf]
      %v1082 = vld [vmem:[%s895 + $0x40] sm:$0xf]
      %v1083 = vld [vmem:[%s895 + $0x44] sm:$0xf]
      %v1084 = vld [vmem:[%s895 + $0x48] sm:$0xf]
      %v1085 = vld [vmem:[%s895 + $0x4c] sm:$0xf]
      %v1086 = vld [vmem:[%s895 + $0x50] sm:$0xf]
      %v1087 = vld [vmem:[%s895 + $0x54] sm:$0xf]
      %v1088 = vld [vmem:[%s895 + $0x58] sm:$0xf]
      %v1089 = vld [vmem:[%s895 + $0x5c] sm:$0xf]
      %v1090 = vld [vmem:[%s895 + $0x60] sm:$0xf]
      %v1091 = vld [vmem:[%s895 + $0x64] sm:$0xf]
      %v1092 = vld [vmem:[%s895 + $0x68] sm:$0xf]
      %v1093 = vld [vmem:[%s895 + $0x6c] sm:$0xf]
      %v1095 = vshrl.u32 %v1066, 16
      %v1097 = vrot.slane %v1095, 4
      %v1098 = vshll.u32 %v1066, 16
      %v1100 = vrot.slane %v1098, 5
      %v1101 = vor.u32 %v1097, %v1100
      %v1102 = vrot.slane %v1101, 4
      %v1104 = vshll.u32 %v1067, 16
      %v1106 = vrot.slane %v1104, 5
      %v1107 = vsel %vm271, %v1102, %v1106
      %v1108 = vshrl.u32 %v1067, 16
      %v1110 = vrot.slane %v1108, 4
      %v1111 = vor.u32 %v1110, %v1106
      %v1112 = vrot.slane %v1111, 4
      %v1114 = vshrl.u32 %v1068, 16
      %v1116 = vrot.slane %v1114, 4
      %v1117 = vshll.u32 %v1068, 16
      %v1119 = vrot.slane %v1117, 5
      %v1120 = vor.u32 %v1116, %v1119
      %v1121 = vrot.slane %v1120, 4
      %v1123 = vshll.u32 %v1069, 16
      %v1125 = vrot.slane %v1123, 5
      %v1126 = vsel %vm271, %v1121, %v1125
      %v1127 = vshrl.u32 %v1069, 16
      %v1129 = vrot.slane %v1127, 4
      %v1130 = vor.u32 %v1129, %v1125
      %v1131 = vrot.slane %v1130, 4
      %v1133 = vshrl.u32 %v1070, 16
      %v1135 = vrot.slane %v1133, 4
      %v1136 = vshll.u32 %v1070, 16
      %v1138 = vrot.slane %v1136, 5
      %v1139 = vor.u32 %v1135, %v1138
      %v1140 = vrot.slane %v1139, 4
      %v1142 = vshll.u32 %v1071, 16
      %v1144 = vrot.slane %v1142, 5
      %v1145 = vsel %vm271, %v1140, %v1144
      %v1146 = vshrl.u32 %v1071, 16
      %v1148 = vrot.slane %v1146, 4
      %v1149 = vor.u32 %v1148, %v1144
      %v1150 = vrot.slane %v1149, 4
      %v1152 = vshrl.u32 %v1072, 16
      %v1154 = vrot.slane %v1152, 4
      %v1155 = vshll.u32 %v1072, 16
      %v1157 = vrot.slane %v1155, 5
      %v1158 = vor.u32 %v1154, %v1157
      %v1159 = vrot.slane %v1158, 4
      %v1161 = vshll.u32 %v1073, 16
      %v1163 = vrot.slane %v1161, 5
      %v1164 = vsel %vm271, %v1159, %v1163
      %v1165 = vshrl.u32 %v1073, 16
      %v1167 = vrot.slane %v1165, 4
      %v1168 = vor.u32 %v1167, %v1163
      %v1169 = vrot.slane %v1168, 4
      %v1171 = vshrl.u32 %v1074, 16
      %v1173 = vrot.slane %v1171, 4
      %v1174 = vshll.u32 %v1074, 16
      %v1176 = vrot.slane %v1174, 5
      %v1177 = vor.u32 %v1173, %v1176
      %v1178 = vrot.slane %v1177, 4
      %v1180 = vshll.u32 %v1075, 16
      %v1182 = vrot.slane %v1180, 5
      %v1183 = vsel %vm271, %v1178, %v1182
      %v1184 = vshrl.u32 %v1075, 16
      %v1186 = vrot.slane %v1184, 4
      %v1187 = vor.u32 %v1186, %v1182
      %v1188 = vrot.slane %v1187, 4
      %v1190 = vshrl.u32 %v1076, 16
      %v1192 = vrot.slane %v1190, 4
      %v1193 = vshll.u32 %v1076, 16
      %v1195 = vrot.slane %v1193, 5
      %v1196 = vor.u32 %v1192, %v1195
      %v1197 = vrot.slane %v1196, 4
      %v1199 = vshll.u32 %v1077, 16
      %v1201 = vrot.slane %v1199, 5
      %v1202 = vsel %vm271, %v1197, %v1201
      %v1203 = vshrl.u32 %v1077, 16
      %v1205 = vrot.slane %v1203, 4
      %v1206 = vor.u32 %v1205, %v1201
      %v1207 = vrot.slane %v1206, 4
      %v1209 = vshrl.u32 %v1078, 16
      %v1211 = vrot.slane %v1209, 4
      %v1212 = vshll.u32 %v1078, 16
      %v1214 = vrot.slane %v1212, 5
      %v1215 = vor.u32 %v1211, %v1214
      %v1216 = vrot.slane %v1215, 4
      %v1218 = vshll.u32 %v1079, 16
      %v1220 = vrot.slane %v1218, 5
      %v1221 = vsel %vm271, %v1216, %v1220
      %v1222 = vshrl.u32 %v1079, 16
      %v1224 = vrot.slane %v1222, 4
      %v1225 = vor.u32 %v1224, %v1220
      %v1226 = vrot.slane %v1225, 4
      %v1228 = vshrl.u32 %v1080, 16
      %v1230 = vrot.slane %v1228, 4
      %v1231 = vshll.u32 %v1080, 16
      %v1233 = vrot.slane %v1231, 5
      %v1234 = vor.u32 %v1230, %v1233
      %v1235 = vrot.slane %v1234, 4
      %v1237 = vshll.u32 %v1081, 16
      %v1239 = vrot.slane %v1237, 5
      %v1240 = vsel %vm271, %v1235, %v1239
      %v1241 = vshrl.u32 %v1081, 16
      %v1243 = vrot.slane %v1241, 4
      %v1244 = vor.u32 %v1243, %v1239
      %v1245 = vrot.slane %v1244, 4
      %v1247 = vshrl.u32 %v1082, 16
      %v1249 = vrot.slane %v1247, 4
      %v1250 = vshll.u32 %v1082, 16
      %v1252 = vrot.slane %v1250, 5
      %v1253 = vor.u32 %v1249, %v1252
      %v1254 = vrot.slane %v1253, 4
      %v1256 = vshll.u32 %v1083, 16
      %v1258 = vrot.slane %v1256, 5
      %v1259 = vsel %vm271, %v1254, %v1258
      %v1260 = vshrl.u32 %v1083, 16
      %v1262 = vrot.slane %v1260, 4
      %v1263 = vor.u32 %v1262, %v1258
      %v1264 = vrot.slane %v1263, 4
      %v1266 = vshrl.u32 %v1084, 16
      %v1268 = vrot.slane %v1266, 4
      %v1269 = vshll.u32 %v1084, 16
      %v1271 = vrot.slane %v1269, 5
      %v1272 = vor.u32 %v1268, %v1271
      %v1273 = vrot.slane %v1272, 4
      %v1275 = vshll.u32 %v1085, 16
      %v1277 = vrot.slane %v1275, 5
      %v1278 = vsel %vm271, %v1273, %v1277
      %v1279 = vshrl.u32 %v1085, 16
      %v1281 = vrot.slane %v1279, 4
      %v1282 = vor.u32 %v1281, %v1277
      %v1283 = vrot.slane %v1282, 4
      %v1285 = vshrl.u32 %v1086, 16
      %v1287 = vrot.slane %v1285, 4
      %v1288 = vshll.u32 %v1086, 16
      %v1290 = vrot.slane %v1288, 5
      %v1291 = vor.u32 %v1287, %v1290
      %v1292 = vrot.slane %v1291, 4
      %v1294 = vshll.u32 %v1087, 16
      %v1296 = vrot.slane %v1294, 5
      %v1297 = vsel %vm271, %v1292, %v1296
      %v1298 = vshrl.u32 %v1087, 16
      %v1300 = vrot.slane %v1298, 4
      %v1301 = vor.u32 %v1300, %v1296
      %v1302 = vrot.slane %v1301, 4
      %v1304 = vshrl.u32 %v1088, 16
      %v1306 = vrot.slane %v1304, 4
      %v1307 = vshll.u32 %v1088, 16
      %v1309 = vrot.slane %v1307, 5
      %v1310 = vor.u32 %v1306, %v1309
      %v1311 = vrot.slane %v1310, 4
      %v1313 = vshll.u32 %v1089, 16
      %v1315 = vrot.slane %v1313, 5
      %v1316 = vsel %vm271, %v1311, %v1315
      %v1317 = vshrl.u32 %v1089, 16
      %v1319 = vrot.slane %v1317, 4
      %v1320 = vor.u32 %v1319, %v1315
      %v1321 = vrot.slane %v1320, 4
      %v1323 = vshrl.u32 %v1090, 16
      %v1325 = vrot.slane %v1323, 4
      %v1326 = vshll.u32 %v1090, 16
      %v1328 = vrot.slane %v1326, 5
      %v1329 = vor.u32 %v1325, %v1328
      %v1330 = vrot.slane %v1329, 4
      %v1332 = vshll.u32 %v1091, 16
      %v1334 = vrot.slane %v1332, 5
      %v1335 = vsel %vm271, %v1330, %v1334
      %v1336 = vshrl.u32 %v1091, 16
      %v1338 = vrot.slane %v1336, 4
      %v1339 = vor.u32 %v1338, %v1334
      %v1340 = vrot.slane %v1339, 4
      %v1342 = vshrl.u32 %v1092, 16
      %v1344 = vrot.slane %v1342, 4
      %v1345 = vshll.u32 %v1092, 16
      %v1347 = vrot.slane %v1345, 5
      %v1348 = vor.u32 %v1344, %v1347
      %v1349 = vrot.slane %v1348, 4
      %v1351 = vshll.u32 %v1093, 16
      %v1353 = vrot.slane %v1351, 5
      %v1354 = vsel %vm271, %v1349, %v1353
      %v1355 = vshrl.u32 %v1093, 16
      %v1357 = vrot.slane %v1355, 4
      %v1358 = vor.u32 %v1357, %v1353
      %v1359 = vrot.slane %v1358, 4
      %1360 = vrot.lane.b32.xlu0 %v1107, 16
      %v1361 = vpop.permute.xlu0 %1360
      %1362 = vrot.lane.b32.xlu0 %v1112, 16
      %v1363 = vpop.permute.xlu0 %1362
      %1364 = vrot.lane.b32.xlu0 %v1126, 16
      %v1365 = vpop.permute.xlu0 %1364
      %1366 = vrot.lane.b32.xlu0 %v1131, 16
      %v1367 = vpop.permute.xlu0 %1366
      %1368 = vrot.lane.b32.xlu0 %v1145, 16
      %v1369 = vpop.permute.xlu0 %1368
      %1370 = vrot.lane.b32.xlu0 %v1150, 16
      %v1371 = vpop.permute.xlu0 %1370
      %1372 = vrot.lane.b32.xlu0 %v1164, 16
      %v1373 = vpop.permute.xlu0 %1372
      %1374 = vrot.lane.b32.xlu0 %v1169, 16
      %v1375 = vpop.permute.xlu0 %1374
      %1376 = vrot.lane.b32.xlu0 %v1183, 16
      %v1377 = vpop.permute.xlu0 %1376
      %1378 = vrot.lane.b32.xlu0 %v1188, 16
      %v1379 = vpop.permute.xlu0 %1378
      %1380 = vrot.lane.b32.xlu0 %v1202, 16
      %v1381 = vpop.permute.xlu0 %1380
      %1382 = vrot.lane.b32.xlu0 %v1207, 16
      %v1383 = vpop.permute.xlu0 %1382
      %1384 = vrot.lane.b32.xlu0 %v1221, 16
      %v1385 = vpop.permute.xlu0 %1384
      %1386 = vrot.lane.b32.xlu0 %v1226, 16
      %v1387 = vpop.permute.xlu0 %1386
      %1388 = vrot.lane.b32.xlu0 %v1240, 16
      %v1389 = vpop.permute.xlu0 %1388
      %1390 = vrot.lane.b32.xlu0 %v1245, 16
      %v1391 = vpop.permute.xlu0 %1390
      %1392 = vrot.lane.b32.xlu0 %v1259, 16
      %v1393 = vpop.permute.xlu0 %1392
      %1394 = vrot.lane.b32.xlu0 %v1264, 16
      %v1395 = vpop.permute.xlu0 %1394
      %1396 = vrot.lane.b32.xlu0 %v1278, 16
      %v1397 = vpop.permute.xlu0 %1396
      %1398 = vrot.lane.b32.xlu0 %v1283, 16
      %v1399 = vpop.permute.xlu0 %1398
      %1400 = vrot.lane.b32.xlu0 %v1297, 16
      %v1401 = vpop.permute.xlu0 %1400
      %1402 = vrot.lane.b32.xlu0 %v1302, 16
      %v1403 = vpop.permute.xlu0 %1402
      %1404 = vrot.lane.b32.xlu0 %v1316, 16
      %v1405 = vpop.permute.xlu0 %1404
      %1406 = vrot.lane.b32.xlu0 %v1321, 16
      %v1407 = vpop.permute.xlu0 %1406
      %1408 = vrot.lane.b32.xlu0 %v1335, 16
      %v1409 = vpop.permute.xlu0 %1408
      %1410 = vrot.lane.b32.xlu0 %v1340, 16
      %v1411 = vpop.permute.xlu0 %1410
      %1412 = vrot.lane.b32.xlu0 %v1354, 16
      %v1413 = vpop.permute.xlu0 %1412
      %1414 = vrot.lane.b32.xlu0 %v1359, 16
      %v1415 = vpop.permute.xlu0 %1414
      %vm1444 = vcmask 158848
      %1445 = vst.msk [vmem:[#allocation2] sm:$0xf] %vm1444, %v1361
      %vm1446 = vcmask 157824
      %1447 = vst.msk [vmem:[#allocation2 + $0x4] sm:$0x7] %vm1446, %v1363
      %1448 = vst.msk [vmem:[#allocation2 + $0x8] sm:$0xf] %vm1444, %v1365
      %1449 = vst.msk [vmem:[#allocation2 + $0xc] sm:$0x7] %vm1446, %v1367
      %1450 = vst.msk [vmem:[#allocation2 + $0x10] sm:$0xf] %vm1444, %v1369
      %1451 = vst.msk [vmem:[#allocation2 + $0x14] sm:$0x7] %vm1446, %v1371
      %1452 = vst.msk [vmem:[#allocation2 + $0x18] sm:$0xf] %vm1444, %v1373
      %1453 = vst.msk [vmem:[#allocation2 + $0x1c] sm:$0x7] %vm1446, %v1375
      %1454 = vst.msk [vmem:[#allocation2 + $0x20] sm:$0xf] %vm1444, %v1377
      %1455 = vst.msk [vmem:[#allocation2 + $0x24] sm:$0x7] %vm1446, %v1379
      %1456 = vst.msk [vmem:[#allocation2 + $0x28] sm:$0xf] %vm1444, %v1381
      %1457 = vst.msk [vmem:[#allocation2 + $0x2c] sm:$0x7] %vm1446, %v1383
      %1458 = vst.msk [vmem:[#allocation2 + $0x30] sm:$0xf] %vm1444, %v1385
      %1459 = vst.msk [vmem:[#allocation2 + $0x34] sm:$0x7] %vm1446, %v1387
      %1460 = vst.msk [vmem:[#allocation2 + $0x38] sm:$0xf] %vm1444, %v1389
      %1461 = vst.msk [vmem:[#allocation2 + $0x3c] sm:$0x7] %vm1446, %v1391
      %1462 = vst.msk [vmem:[#allocation2 + $0x40] sm:$0xf] %vm1444, %v1393
      %1463 = vst.msk [vmem:[#allocation2 + $0x44] sm:$0x7] %vm1446, %v1395
      %1464 = vst.msk [vmem:[#allocation2 + $0x48] sm:$0xf] %vm1444, %v1397
      %1465 = vst.msk [vmem:[#allocation2 + $0x4c] sm:$0x7] %vm1446, %v1399
      %1466 = vst.msk [vmem:[#allocation2 + $0x50] sm:$0xf] %vm1444, %v1401
      %1467 = vst.msk [vmem:[#allocation2 + $0x54] sm:$0x7] %vm1446, %v1403
      %1468 = vst.msk [vmem:[#allocation2 + $0x58] sm:$0xf] %vm1444, %v1405
      %1469 = vst.msk [vmem:[#allocation2 + $0x5c] sm:$0x7] %vm1446, %v1407
      %1470 = vst.msk [vmem:[#allocation2 + $0x60] sm:$0xf] %vm1444, %v1409
      %1471 = vst.msk [vmem:[#allocation2 + $0x64] sm:$0x7] %vm1446, %v1411
      %1472 = vst.msk [vmem:[#allocation2 + $0x68] sm:$0xf] %vm1444, %v1413
      %1473 = vst.msk [vmem:[#allocation2 + $0x6c] sm:$0x7] %vm1446, %v1415
      %v1474 = vld [vmem:[%s895] sm:$0xe]
      %v1475 = vld [vmem:[%s895 + $0x4] sm:$0xf]
      %v1476 = vld [vmem:[%s895 + $0x8] sm:$0xe]
      %v1477 = vld [vmem:[%s895 + $0xc] sm:$0xf]
      %v1478 = vld [vmem:[%s895 + $0x10] sm:$0xe]
      %v1479 = vld [vmem:[%s895 + $0x14] sm:$0xf]
      %v1480 = vld [vmem:[%s895 + $0x18] sm:$0xe]
      %v1481 = vld [vmem:[%s895 + $0x1c] sm:$0xf]
      %v1482 = vld [vmem:[%s895 + $0x20] sm:$0xe]
      %v1483 = vld [vmem:[%s895 + $0x24] sm:$0xf]
      %v1484 = vld [vmem:[%s895 + $0x28] sm:$0xe]
      %v1485 = vld [vmem:[%s895 + $0x2c] sm:$0xf]
      %v1486 = vld [vmem:[%s895 + $0x30] sm:$0xe]
      %v1487 = vld [vmem:[%s895 + $0x34] sm:$0xf]
      %v1488 = vld [vmem:[%s895 + $0x38] sm:$0xe]
      %v1489 = vld [vmem:[%s895 + $0x3c] sm:$0xf]
      %v1490 = vld [vmem:[%s895 + $0x40] sm:$0xe]
      %v1491 = vld [vmem:[%s895 + $0x44] sm:$0xf]
      %v1492 = vld [vmem:[%s895 + $0x48] sm:$0xe]
      %v1493 = vld [vmem:[%s895 + $0x4c] sm:$0xf]
      %v1494 = vld [vmem:[%s895 + $0x50] sm:$0xe]
      %v1495 = vld [vmem:[%s895 + $0x54] sm:$0xf]
      %v1496 = vld [vmem:[%s895 + $0x58] sm:$0xe]
      %v1497 = vld [vmem:[%s895 + $0x5c] sm:$0xf]
      %v1498 = vld [vmem:[%s895 + $0x60] sm:$0xe]
      %v1499 = vld [vmem:[%s895 + $0x64] sm:$0xf]
      %v1500 = vld [vmem:[%s895 + $0x68] sm:$0xe]
      %v1501 = vld [vmem:[%s895 + $0x6c] sm:$0xf]
      %v1530 = vrot.slane %v1474, 5
      %v1531 = vrot.slane %v1530, 4
      %v1532 = vrot.slane %v1475, 5
      %v1533 = vsel %vm710, %v1531, %v1532
      %v1534 = vrot.slane %v1532, 4
      %v1535 = vrot.slane %v1476, 5
      %v1536 = vrot.slane %v1535, 4
      %v1537 = vrot.slane %v1477, 5
      %v1538 = vsel %vm710, %v1536, %v1537
      %v1539 = vrot.slane %v1537, 4
      %v1540 = vrot.slane %v1478, 5
      %v1541 = vrot.slane %v1540, 4
      %v1542 = vrot.slane %v1479, 5
      %v1543 = vsel %vm710, %v1541, %v1542
      %v1544 = vrot.slane %v1542, 4
      %v1545 = vrot.slane %v1480, 5
      %v1546 = vrot.slane %v1545, 4
      %v1547 = vrot.slane %v1481, 5
      %v1548 = vsel %vm710, %v1546, %v1547
      %v1549 = vrot.slane %v1547, 4
      %v1550 = vrot.slane %v1482, 5
      %v1551 = vrot.slane %v1550, 4
      %v1552 = vrot.slane %v1483, 5
      %v1553 = vsel %vm710, %v1551, %v1552
      %v1554 = vrot.slane %v1552, 4
      %v1555 = vrot.slane %v1484, 5
      %v1556 = vrot.slane %v1555, 4
      %v1557 = vrot.slane %v1485, 5
      %v1558 = vsel %vm710, %v1556, %v1557
      %v1559 = vrot.slane %v1557, 4
      %v1560 = vrot.slane %v1486, 5
      %v1561 = vrot.slane %v1560, 4
      %v1562 = vrot.slane %v1487, 5
      %v1563 = vsel %vm710, %v1561, %v1562
      %v1564 = vrot.slane %v1562, 4
      %v1565 = vrot.slane %v1488, 5
      %v1566 = vrot.slane %v1565, 4
      %v1567 = vrot.slane %v1489, 5
      %v1568 = vsel %vm710, %v1566, %v1567
      %v1569 = vrot.slane %v1567, 4
      %v1570 = vrot.slane %v1490, 5
      %v1571 = vrot.slane %v1570, 4
      %v1572 = vrot.slane %v1491, 5
      %v1573 = vsel %vm710, %v1571, %v1572
      %v1574 = vrot.slane %v1572, 4
      %v1575 = vrot.slane %v1492, 5
      %v1576 = vrot.slane %v1575, 4
      %v1577 = vrot.slane %v1493, 5
      %v1578 = vsel %vm710, %v1576, %v1577
      %v1579 = vrot.slane %v1577, 4
      %v1580 = vrot.slane %v1494, 5
      %v1581 = vrot.slane %v1580, 4
      %v1582 = vrot.slane %v1495, 5
      %v1583 = vsel %vm710, %v1581, %v1582
      %v1584 = vrot.slane %v1582, 4
      %v1585 = vrot.slane %v1496, 5
      %v1586 = vrot.slane %v1585, 4
      %v1587 = vrot.slane %v1497, 5
      %v1588 = vsel %vm710, %v1586, %v1587
      %v1589 = vrot.slane %v1587, 4
      %v1590 = vrot.slane %v1498, 5
      %v1591 = vrot.slane %v1590, 4
      %v1592 = vrot.slane %v1499, 5
      %v1593 = vsel %vm710, %v1591, %v1592
      %v1594 = vrot.slane %v1592, 4
      %v1595 = vrot.slane %v1500, 5
      %v1596 = vrot.slane %v1595, 4
      %v1597 = vrot.slane %v1501, 5
      %v1598 = vsel %vm710, %v1596, %v1597
      %v1599 = vrot.slane %v1597, 4
      %1600 = vrot.lane.b32.xlu0 %v1533, 20
      %v1601 = vpop.permute.xlu0 %1600
      %1602 = vrot.lane.b32.xlu0 %v1534, 20
      %v1603 = vpop.permute.xlu0 %1602
      %1604 = vrot.lane.b32.xlu0 %v1538, 20
      %v1605 = vpop.permute.xlu0 %1604
      %1606 = vrot.lane.b32.xlu0 %v1539, 20
      %v1607 = vpop.permute.xlu0 %1606
      %1608 = vrot.lane.b32.xlu0 %v1543, 20
      %v1609 = vpop.permute.xlu0 %1608
      %1610 = vrot.lane.b32.xlu0 %v1544, 20
      %v1611 = vpop.permute.xlu0 %1610
      %1612 = vrot.lane.b32.xlu0 %v1548, 20
      %v1613 = vpop.permute.xlu0 %1612
      %1614 = vrot.lane.b32.xlu0 %v1549, 20
      %v1615 = vpop.permute.xlu0 %1614
      %1616 = vrot.lane.b32.xlu0 %v1553, 20
      %v1617 = vpop.permute.xlu0 %1616
      %1618 = vrot.lane.b32.xlu0 %v1554, 20
      %v1619 = vpop.permute.xlu0 %1618
      %1620 = vrot.lane.b32.xlu0 %v1558, 20
      %v1621 = vpop.permute.xlu0 %1620
      %1622 = vrot.lane.b32.xlu0 %v1559, 20
      %v1623 = vpop.permute.xlu0 %1622
      %1624 = vrot.lane.b32.xlu0 %v1563, 20
      %v1625 = vpop.permute.xlu0 %1624
      %1626 = vrot.lane.b32.xlu0 %v1564, 20
      %v1627 = vpop.permute.xlu0 %1626
      %1628 = vrot.lane.b32.xlu0 %v1568, 20
      %v1629 = vpop.permute.xlu0 %1628
      %1630 = vrot.lane.b32.xlu0 %v1569, 20
      %v1631 = vpop.permute.xlu0 %1630
      %1632 = vrot.lane.b32.xlu0 %v1573, 20
      %v1633 = vpop.permute.xlu0 %1632
      %1634 = vrot.lane.b32.xlu0 %v1574, 20
      %v1635 = vpop.permute.xlu0 %1634
      %1636 = vrot.lane.b32.xlu0 %v1578, 20
      %v1637 = vpop.permute.xlu0 %1636
      %1638 = vrot.lane.b32.xlu0 %v1579, 20
      %v1639 = vpop.permute.xlu0 %1638
      %1640 = vrot.lane.b32.xlu0 %v1583, 20
      %v1641 = vpop.permute.xlu0 %1640
      %1642 = vrot.lane.b32.xlu0 %v1584, 20
      %v1643 = vpop.permute.xlu0 %1642
      %1644 = vrot.lane.b32.xlu0 %v1588, 20
      %v1645 = vpop.permute.xlu0 %1644
      %1646 = vrot.lane.b32.xlu0 %v1589, 20
      %v1647 = vpop.permute.xlu0 %1646
      %1648 = vrot.lane.b32.xlu0 %v1593, 20
      %v1649 = vpop.permute.xlu0 %1648
      %1650 = vrot.lane.b32.xlu0 %v1594, 20
      %v1651 = vpop.permute.xlu0 %1650
      %1652 = vrot.lane.b32.xlu0 %v1598, 20
      %v1653 = vpop.permute.xlu0 %1652
      %1654 = vrot.lane.b32.xlu0 %v1599, 20
      %v1655 = vpop.permute.xlu0 %1654
      %vm1684 = vcmask 191648
      %1685 = vst.msk [vmem:[#allocation2] sm:$0xf] %vm1684, %v1601
      %vm1686 = vcmask 190624
      %1687 = vst.msk [vmem:[#allocation2 + $0x4] sm:$0x7] %vm1686, %v1603
      %1688 = vst.msk [vmem:[#allocation2 + $0x8] sm:$0xf] %vm1684, %v1605
      %1689 = vst.msk [vmem:[#allocation2 + $0xc] sm:$0x7] %vm1686, %v1607
      %1690 = vst.msk [vmem:[#allocation2 + $0x10] sm:$0xf] %vm1684, %v1609
      %1691 = vst.msk [vmem:[#allocation2 + $0x14] sm:$0x7] %vm1686, %v1611
      %1692 = vst.msk [vmem:[#allocation2 + $0x18] sm:$0xf] %vm1684, %v1613
      %1693 = vst.msk [vmem:[#allocation2 + $0x1c] sm:$0x7] %vm1686, %v1615
      %1694 = vst.msk [vmem:[#allocation2 + $0x20] sm:$0xf] %vm1684, %v1617
      %1695 = vst.msk [vmem:[#allocation2 + $0x24] sm:$0x7] %vm1686, %v1619
      %1696 = vst.msk [vmem:[#allocation2 + $0x28] sm:$0xf] %vm1684, %v1621
      %1697 = vst.msk [vmem:[#allocation2 + $0x2c] sm:$0x7] %vm1686, %v1623
      %1698 = vst.msk [vmem:[#allocation2 + $0x30] sm:$0xf] %vm1684, %v1625
      %1699 = vst.msk [vmem:[#allocation2 + $0x34] sm:$0x7] %vm1686, %v1627
      %1700 = vst.msk [vmem:[#allocation2 + $0x38] sm:$0xf] %vm1684, %v1629
      %1701 = vst.msk [vmem:[#allocation2 + $0x3c] sm:$0x7] %vm1686, %v1631
      %1702 = vst.msk [vmem:[#allocation2 + $0x40] sm:$0xf] %vm1684, %v1633
      %1703 = vst.msk [vmem:[#allocation2 + $0x44] sm:$0x7] %vm1686, %v1635
      %1704 = vst.msk [vmem:[#allocation2 + $0x48] sm:$0xf] %vm1684, %v1637
      %1705 = vst.msk [vmem:[#allocation2 + $0x4c] sm:$0x7] %vm1686, %v1639
      %1706 = vst.msk [vmem:[#allocation2 + $0x50] sm:$0xf] %vm1684, %v1641
      %1707 = vst.msk [vmem:[#allocation2 + $0x54] sm:$0x7] %vm1686, %v1643
      %1708 = vst.msk [vmem:[#allocation2 + $0x58] sm:$0xf] %vm1684, %v1645
      %1709 = vst.msk [vmem:[#allocation2 + $0x5c] sm:$0x7] %vm1686, %v1647
      %1710 = vst.msk [vmem:[#allocation2 + $0x60] sm:$0xf] %vm1684, %v1649
      %1711 = vst.msk [vmem:[#allocation2 + $0x64] sm:$0x7] %vm1686, %v1651
      %1712 = vst.msk [vmem:[#allocation2 + $0x68] sm:$0xf] %vm1684, %v1653
      %1713 = vst.msk [vmem:[#allocation2 + $0x6c] sm:$0x7] %vm1686, %v1655
      %s1714 = scalar_lea.vmem %s172, 16
      %v1715 = vld [vmem:[%s1714] sm:$0xf]
      %v1716 = vld [vmem:[%s1714 + $0x4] sm:$0x7]
      %v1717 = vld [vmem:[%s1714 + $0x8] sm:$0xf]
      %v1718 = vld [vmem:[%s1714 + $0xc] sm:$0x7]
      %v1719 = vld [vmem:[%s1714 + $0x10] sm:$0xf]
      %v1720 = vld [vmem:[%s1714 + $0x14] sm:$0x7]
      %v1721 = vld [vmem:[%s1714 + $0x18] sm:$0xf]
      %v1722 = vld [vmem:[%s1714 + $0x1c] sm:$0x7]
      %v1723 = vld [vmem:[%s1714 + $0x20] sm:$0xf]
      %v1724 = vld [vmem:[%s1714 + $0x24] sm:$0x7]
      %v1725 = vld [vmem:[%s1714 + $0x28] sm:$0xf]
      %v1726 = vld [vmem:[%s1714 + $0x2c] sm:$0x7]
      %v1727 = vld [vmem:[%s1714 + $0x30] sm:$0xf]
      %v1728 = vld [vmem:[%s1714 + $0x34] sm:$0x7]
      %v1729 = vld [vmem:[%s1714 + $0x38] sm:$0xf]
      %v1730 = vld [vmem:[%s1714 + $0x3c] sm:$0x7]
      %v1731 = vld [vmem:[%s1714 + $0x40] sm:$0xf]
      %v1732 = vld [vmem:[%s1714 + $0x44] sm:$0x7]
      %v1733 = vld [vmem:[%s1714 + $0x48] sm:$0xf]
      %v1734 = vld [vmem:[%s1714 + $0x4c] sm:$0x7]
      %v1735 = vld [vmem:[%s1714 + $0x50] sm:$0xf]
      %v1736 = vld [vmem:[%s1714 + $0x54] sm:$0x7]
      %v1737 = vld [vmem:[%s1714 + $0x58] sm:$0xf]
      %v1738 = vld [vmem:[%s1714 + $0x5c] sm:$0x7]
      %v1739 = vld [vmem:[%s1714 + $0x60] sm:$0xf]
      %v1740 = vld [vmem:[%s1714 + $0x64] sm:$0x7]
      %v1741 = vld [vmem:[%s1714 + $0x68] sm:$0xf]
      %v1742 = vld [vmem:[%s1714 + $0x6c] sm:$0x7]
      %1771 = vrot.lane.b32.xlu0 %v1715, 24
      %v1772 = vpop.permute.xlu0 %1771
      %1773 = vrot.lane.b32.xlu0 %v1716, 24
      %v1774 = vpop.permute.xlu0 %1773
      %1775 = vrot.lane.b32.xlu0 %v1717, 24
      %v1776 = vpop.permute.xlu0 %1775
      %1777 = vrot.lane.b32.xlu0 %v1718, 24
      %v1778 = vpop.permute.xlu0 %1777
      %1779 = vrot.lane.b32.xlu0 %v1719, 24
      %v1780 = vpop.permute.xlu0 %1779
      %1781 = vrot.lane.b32.xlu0 %v1720, 24
      %v1782 = vpop.permute.xlu0 %1781
      %1783 = vrot.lane.b32.xlu0 %v1721, 24
      %v1784 = vpop.permute.xlu0 %1783
      %1785 = vrot.lane.b32.xlu0 %v1722, 24
      %v1786 = vpop.permute.xlu0 %1785
      %1787 = vrot.lane.b32.xlu0 %v1723, 24
      %v1788 = vpop.permute.xlu0 %1787
      %1789 = vrot.lane.b32.xlu0 %v1724, 24
      %v1790 = vpop.permute.xlu0 %1789
      %1791 = vrot.lane.b32.xlu0 %v1725, 24
      %v1792 = vpop.permute.xlu0 %1791
      %1793 = vrot.lane.b32.xlu0 %v1726, 24
      %v1794 = vpop.permute.xlu0 %1793
      %1795 = vrot.lane.b32.xlu0 %v1727, 24
      %v1796 = vpop.permute.xlu0 %1795
      %1797 = vrot.lane.b32.xlu0 %v1728, 24
      %v1798 = vpop.permute.xlu0 %1797
      %1799 = vrot.lane.b32.xlu0 %v1729, 24
      %v1800 = vpop.permute.xlu0 %1799
      %1801 = vrot.lane.b32.xlu0 %v1730, 24
      %v1802 = vpop.permute.xlu0 %1801
      %1803 = vrot.lane.b32.xlu0 %v1731, 24
      %v1804 = vpop.permute.xlu0 %1803
      %1805 = vrot.lane.b32.xlu0 %v1732, 24
      %v1806 = vpop.permute.xlu0 %1805
      %1807 = vrot.lane.b32.xlu0 %v1733, 24
      %v1808 = vpop.permute.xlu0 %1807
      %1809 = vrot.lane.b32.xlu0 %v1734, 24
      %v1810 = vpop.permute.xlu0 %1809
      %1811 = vrot.lane.b32.xlu0 %v1735, 24
      %v1812 = vpop.permute.xlu0 %1811
      %1813 = vrot.lane.b32.xlu0 %v1736, 24
      %v1814 = vpop.permute.xlu0 %1813
      %1815 = vrot.lane.b32.xlu0 %v1737, 24
      %v1816 = vpop.permute.xlu0 %1815
      %1817 = vrot.lane.b32.xlu0 %v1738, 24
      %v1818 = vpop.permute.xlu0 %1817
      %1819 = vrot.lane.b32.xlu0 %v1739, 24
      %v1820 = vpop.permute.xlu0 %1819
      %1821 = vrot.lane.b32.xlu0 %v1740, 24
      %v1822 = vpop.permute.xlu0 %1821
      %1823 = vrot.lane.b32.xlu0 %v1741, 24
      %v1824 = vpop.permute.xlu0 %1823
      %1825 = vrot.lane.b32.xlu0 %v1742, 24
      %v1826 = vpop.permute.xlu0 %1825
      %vm1855 = vcmask 224448
      %1856 = vst.msk [vmem:[#allocation2] sm:$0xf] %vm1855, %v1772
      %vm1857 = vcmask 223424
      %1858 = vst.msk [vmem:[#allocation2 + $0x4] sm:$0x7] %vm1857, %v1774
      %1859 = vst.msk [vmem:[#allocation2 + $0x8] sm:$0xf] %vm1855, %v1776
      %1860 = vst.msk [vmem:[#allocation2 + $0xc] sm:$0x7] %vm1857, %v1778
      %1861 = vst.msk [vmem:[#allocation2 + $0x10] sm:$0xf] %vm1855, %v1780
      %1862 = vst.msk [vmem:[#allocation2 + $0x14] sm:$0x7] %vm1857, %v1782
      %1863 = vst.msk [vmem:[#allocation2 + $0x18] sm:$0xf] %vm1855, %v1784
      %1864 = vst.msk [vmem:[#allocation2 + $0x1c] sm:$0x7] %vm1857, %v1786
      %1865 = vst.msk [vmem:[#allocation2 + $0x20] sm:$0xf] %vm1855, %v1788
      %1866 = vst.msk [vmem:[#allocation2 + $0x24] sm:$0x7] %vm1857, %v1790
      %1867 = vst.msk [vmem:[#allocation2 + $0x28] sm:$0xf] %vm1855, %v1792
      %1868 = vst.msk [vmem:[#allocation2 + $0x2c] sm:$0x7] %vm1857, %v1794
      %1869 = vst.msk [vmem:[#allocation2 + $0x30] sm:$0xf] %vm1855, %v1796
      %1870 = vst.msk [vmem:[#allocation2 + $0x34] sm:$0x7] %vm1857, %v1798
      %1871 = vst.msk [vmem:[#allocation2 + $0x38] sm:$0xf] %vm1855, %v1800
      %1872 = vst.msk [vmem:[#allocation2 + $0x3c] sm:$0x7] %vm1857, %v1802
      %1873 = vst.msk [vmem:[#allocation2 + $0x40] sm:$0xf] %vm1855, %v1804
      %1874 = vst.msk [vmem:[#allocation2 + $0x44] sm:$0x7] %vm1857, %v1806
      %1875 = vst.msk [vmem:[#allocation2 + $0x48] sm:$0xf] %vm1855, %v1808
      %1876 = vst.msk [vmem:[#allocation2 + $0x4c] sm:$0x7] %vm1857, %v1810
      %1877 = vst.msk [vmem:[#allocation2 + $0x50] sm:$0xf] %vm1855, %v1812
      %1878 = vst.msk [vmem:[#allocation2 + $0x54] sm:$0x7] %vm1857, %v1814
      %1879 = vst.msk [vmem:[#allocation2 + $0x58] sm:$0xf] %vm1855, %v1816
      %1880 = vst.msk [vmem:[#allocation2 + $0x5c] sm:$0x7] %vm1857, %v1818
      %1881 = vst.msk [vmem:[#allocation2 + $0x60] sm:$0xf] %vm1855, %v1820
      %1882 = vst.msk [vmem:[#allocation2 + $0x64] sm:$0x7] %vm1857, %v1822
      %1883 = vst.msk [vmem:[#allocation2 + $0x68] sm:$0xf] %vm1855, %v1824
      %1884 = vst.msk [vmem:[#allocation2 + $0x6c] sm:$0x7] %vm1857, %v1826
      %v1885 = vld [vmem:[%s1714] sm:$0xf]
      %v1886 = vld [vmem:[%s1714 + $0x4] sm:$0xf]
      %v1887 = vld [vmem:[%s1714 + $0x8] sm:$0xf]
      %v1888 = vld [vmem:[%s1714 + $0xc] sm:$0xf]
      %v1889 = vld [vmem:[%s1714 + $0x10] sm:$0xf]
      %v1890 = vld [vmem:[%s1714 + $0x14] sm:$0xf]
      %v1891 = vld [vmem:[%s1714 + $0x18] sm:$0xf]
      %v1892 = vld [vmem:[%s1714 + $0x1c] sm:$0xf]
      %v1893 = vld [vmem:[%s1714 + $0x20] sm:$0xf]
      %v1894 = vld [vmem:[%s1714 + $0x24] sm:$0xf]
      %v1895 = vld [vmem:[%s1714 + $0x28] sm:$0xf]
      %v1896 = vld [vmem:[%s1714 + $0x2c] sm:$0xf]
      %v1897 = vld [vmem:[%s1714 + $0x30] sm:$0xf]
      %v1898 = vld [vmem:[%s1714 + $0x34] sm:$0xf]
      %v1899 = vld [vmem:[%s1714 + $0x38] sm:$0xf]
      %v1900 = vld [vmem:[%s1714 + $0x3c] sm:$0xf]
      %v1901 = vld [vmem:[%s1714 + $0x40] sm:$0xf]
      %v1902 = vld [vmem:[%s1714 + $0x44] sm:$0xf]
      %v1903 = vld [vmem:[%s1714 + $0x48] sm:$0xf]
      %v1904 = vld [vmem:[%s1714 + $0x4c] sm:$0xf]
      %v1905 = vld [vmem:[%s1714 + $0x50] sm:$0xf]
      %v1906 = vld [vmem:[%s1714 + $0x54] sm:$0xf]
      %v1907 = vld [vmem:[%s1714 + $0x58] sm:$0xf]
      %v1908 = vld [vmem:[%s1714 + $0x5c] sm:$0xf]
      %v1909 = vld [vmem:[%s1714 + $0x60] sm:$0xf]
      %v1910 = vld [vmem:[%s1714 + $0x64] sm:$0xf]
      %v1911 = vld [vmem:[%s1714 + $0x68] sm:$0xf]
      %v1912 = vld [vmem:[%s1714 + $0x6c] sm:$0xf]
      %v1914 = vshrl.u32 %v1885, 16
      %v1916 = vrot.slane %v1914, 4
      %v1917 = vshll.u32 %v1885, 16
      %v1919 = vrot.slane %v1917, 5
      %v1920 = vor.u32 %v1916, %v1919
      %v1921 = vrot.slane %v1920, 4
      %v1923 = vshll.u32 %v1886, 16
      %v1925 = vrot.slane %v1923, 5
      %v1926 = vsel %vm271, %v1921, %v1925
      %v1927 = vshrl.u32 %v1886, 16
      %v1929 = vrot.slane %v1927, 4
      %v1930 = vor.u32 %v1929, %v1925
      %v1931 = vrot.slane %v1930, 4
      %v1933 = vshrl.u32 %v1887, 16
      %v1935 = vrot.slane %v1933, 4
      %v1936 = vshll.u32 %v1887, 16
      %v1938 = vrot.slane %v1936, 5
      %v1939 = vor.u32 %v1935, %v1938
      %v1940 = vrot.slane %v1939, 4
      %v1942 = vshll.u32 %v1888, 16
      %v1944 = vrot.slane %v1942, 5
      %v1945 = vsel %vm271, %v1940, %v1944
      %v1946 = vshrl.u32 %v1888, 16
      %v1948 = vrot.slane %v1946, 4
      %v1949 = vor.u32 %v1948, %v1944
      %v1950 = vrot.slane %v1949, 4
      %v1952 = vshrl.u32 %v1889, 16
      %v1954 = vrot.slane %v1952, 4
      %v1955 = vshll.u32 %v1889, 16
      %v1957 = vrot.slane %v1955, 5
      %v1958 = vor.u32 %v1954, %v1957
      %v1959 = vrot.slane %v1958, 4
      %v1961 = vshll.u32 %v1890, 16
      %v1963 = vrot.slane %v1961, 5
      %v1964 = vsel %vm271, %v1959, %v1963
      %v1965 = vshrl.u32 %v1890, 16
      %v1967 = vrot.slane %v1965, 4
      %v1968 = vor.u32 %v1967, %v1963
      %v1969 = vrot.slane %v1968, 4
      %v1971 = vshrl.u32 %v1891, 16
      %v1973 = vrot.slane %v1971, 4
      %v1974 = vshll.u32 %v1891, 16
      %v1976 = vrot.slane %v1974, 5
      %v1977 = vor.u32 %v1973, %v1976
      %v1978 = vrot.slane %v1977, 4
      %v1980 = vshll.u32 %v1892, 16
      %v1982 = vrot.slane %v1980, 5
      %v1983 = vsel %vm271, %v1978, %v1982
      %v1984 = vshrl.u32 %v1892, 16
      %v1986 = vrot.slane %v1984, 4
      %v1987 = vor.u32 %v1986, %v1982
      %v1988 = vrot.slane %v1987, 4
      %v1990 = vshrl.u32 %v1893, 16
      %v1992 = vrot.slane %v1990, 4
      %v1993 = vshll.u32 %v1893, 16
      %v1995 = vrot.slane %v1993, 5
      %v1996 = vor.u32 %v1992, %v1995
      %v1997 = vrot.slane %v1996, 4
      %v1999 = vshll.u32 %v1894, 16
      %v2001 = vrot.slane %v1999, 5
      %v2002 = vsel %vm271, %v1997, %v2001
      %v2003 = vshrl.u32 %v1894, 16
      %v2005 = vrot.slane %v2003, 4
      %v2006 = vor.u32 %v2005, %v2001
      %v2007 = vrot.slane %v2006, 4
      %v2009 = vshrl.u32 %v1895, 16
      %v2011 = vrot.slane %v2009, 4
      %v2012 = vshll.u32 %v1895, 16
      %v2014 = vrot.slane %v2012, 5
      %v2015 = vor.u32 %v2011, %v2014
      %v2016 = vrot.slane %v2015, 4
      %v2018 = vshll.u32 %v1896, 16
      %v2020 = vrot.slane %v2018, 5
      %v2021 = vsel %vm271, %v2016, %v2020
      %v2022 = vshrl.u32 %v1896, 16
      %v2024 = vrot.slane %v2022, 4
      %v2025 = vor.u32 %v2024, %v2020
      %v2026 = vrot.slane %v2025, 4
      %v2028 = vshrl.u32 %v1897, 16
      %v2030 = vrot.slane %v2028, 4
      %v2031 = vshll.u32 %v1897, 16
      %v2033 = vrot.slane %v2031, 5
      %v2034 = vor.u32 %v2030, %v2033
      %v2035 = vrot.slane %v2034, 4
      %v2037 = vshll.u32 %v1898, 16
      %v2039 = vrot.slane %v2037, 5
      %v2040 = vsel %vm271, %v2035, %v2039
      %v2041 = vshrl.u32 %v1898, 16
      %v2043 = vrot.slane %v2041, 4
      %v2044 = vor.u32 %v2043, %v2039
      %v2045 = vrot.slane %v2044, 4
      %v2047 = vshrl.u32 %v1899, 16
      %v2049 = vrot.slane %v2047, 4
      %v2050 = vshll.u32 %v1899, 16
      %v2052 = vrot.slane %v2050, 5
      %v2053 = vor.u32 %v2049, %v2052
      %v2054 = vrot.slane %v2053, 4
      %v2056 = vshll.u32 %v1900, 16
      %v2058 = vrot.slane %v2056, 5
      %v2059 = vsel %vm271, %v2054, %v2058
      %v2060 = vshrl.u32 %v1900, 16
      %v2062 = vrot.slane %v2060, 4
      %v2063 = vor.u32 %v2062, %v2058
      %v2064 = vrot.slane %v2063, 4
      %v2066 = vshrl.u32 %v1901, 16
      %v2068 = vrot.slane %v2066, 4
      %v2069 = vshll.u32 %v1901, 16
      %v2071 = vrot.slane %v2069, 5
      %v2072 = vor.u32 %v2068, %v2071
      %v2073 = vrot.slane %v2072, 4
      %v2075 = vshll.u32 %v1902, 16
      %v2077 = vrot.slane %v2075, 5
      %v2078 = vsel %vm271, %v2073, %v2077
      %v2079 = vshrl.u32 %v1902, 16
      %v2081 = vrot.slane %v2079, 4
      %v2082 = vor.u32 %v2081, %v2077
      %v2083 = vrot.slane %v2082, 4
      %v2085 = vshrl.u32 %v1903, 16
      %v2087 = vrot.slane %v2085, 4
      %v2088 = vshll.u32 %v1903, 16
      %v2090 = vrot.slane %v2088, 5
      %v2091 = vor.u32 %v2087, %v2090
      %v2092 = vrot.slane %v2091, 4
      %v2094 = vshll.u32 %v1904, 16
      %v2096 = vrot.slane %v2094, 5
      %v2097 = vsel %vm271, %v2092, %v2096
      %v2098 = vshrl.u32 %v1904, 16
      %v2100 = vrot.slane %v2098, 4
      %v2101 = vor.u32 %v2100, %v2096
      %v2102 = vrot.slane %v2101, 4
      %v2104 = vshrl.u32 %v1905, 16
      %v2106 = vrot.slane %v2104, 4
      %v2107 = vshll.u32 %v1905, 16
      %v2109 = vrot.slane %v2107, 5
      %v2110 = vor.u32 %v2106, %v2109
      %v2111 = vrot.slane %v2110, 4
      %v2113 = vshll.u32 %v1906, 16
      %v2115 = vrot.slane %v2113, 5
      %v2116 = vsel %vm271, %v2111, %v2115
      %v2117 = vshrl.u32 %v1906, 16
      %v2119 = vrot.slane %v2117, 4
      %v2120 = vor.u32 %v2119, %v2115
      %v2121 = vrot.slane %v2120, 4
      %v2123 = vshrl.u32 %v1907, 16
      %v2125 = vrot.slane %v2123, 4
      %v2126 = vshll.u32 %v1907, 16
      %v2128 = vrot.slane %v2126, 5
      %v2129 = vor.u32 %v2125, %v2128
      %v2130 = vrot.slane %v2129, 4
      %v2132 = vshll.u32 %v1908, 16
      %v2134 = vrot.slane %v2132, 5
      %v2135 = vsel %vm271, %v2130, %v2134
      %v2136 = vshrl.u32 %v1908, 16
      %v2138 = vrot.slane %v2136, 4
      %v2139 = vor.u32 %v2138, %v2134
      %v2140 = vrot.slane %v2139, 4
      %v2142 = vshrl.u32 %v1909, 16
      %v2144 = vrot.slane %v2142, 4
      %v2145 = vshll.u32 %v1909, 16
      %v2147 = vrot.slane %v2145, 5
      %v2148 = vor.u32 %v2144, %v2147
      %v2149 = vrot.slane %v2148, 4
      %v2151 = vshll.u32 %v1910, 16
      %v2153 = vrot.slane %v2151, 5
      %v2154 = vsel %vm271, %v2149, %v2153
      %v2155 = vshrl.u32 %v1910, 16
      %v2157 = vrot.slane %v2155, 4
      %v2158 = vor.u32 %v2157, %v2153
      %v2159 = vrot.slane %v2158, 4
      %v2161 = vshrl.u32 %v1911, 16
      %v2163 = vrot.slane %v2161, 4
      %v2164 = vshll.u32 %v1911, 16
      %v2166 = vrot.slane %v2164, 5
      %v2167 = vor.u32 %v2163, %v2166
      %v2168 = vrot.slane %v2167, 4
      %v2170 = vshll.u32 %v1912, 16
      %v2172 = vrot.slane %v2170, 5
      %v2173 = vsel %vm271, %v2168, %v2172
      %v2174 = vshrl.u32 %v1912, 16
      %v2176 = vrot.slane %v2174, 4
      %v2177 = vor.u32 %v2176, %v2172
      %v2178 = vrot.slane %v2177, 4
      %2179 = vrot.lane.b32.xlu0 %v1926, 28
      %v2180 = vpop.permute.xlu0 %2179
      %2181 = vrot.lane.b32.xlu0 %v1931, 28
      %v2182 = vpop.permute.xlu0 %2181
      %2183 = vrot.lane.b32.xlu0 %v1945, 28
      %v2184 = vpop.permute.xlu0 %2183
      %2185 = vrot.lane.b32.xlu0 %v1950, 28
      %v2186 = vpop.permute.xlu0 %2185
      %2187 = vrot.lane.b32.xlu0 %v1964, 28
      %v2188 = vpop.permute.xlu0 %2187
      %2189 = vrot.lane.b32.xlu0 %v1969, 28
      %v2190 = vpop.permute.xlu0 %2189
      %2191 = vrot.lane.b32.xlu0 %v1983, 28
      %v2192 = vpop.permute.xlu0 %2191
      %2193 = vrot.lane.b32.xlu0 %v1988, 28
      %v2194 = vpop.permute.xlu0 %2193
      %2195 = vrot.lane.b32.xlu0 %v2002, 28
      %v2196 = vpop.permute.xlu0 %2195
      %2197 = vrot.lane.b32.xlu0 %v2007, 28
      %v2198 = vpop.permute.xlu0 %2197
      %2199 = vrot.lane.b32.xlu0 %v2021, 28
      %v2200 = vpop.permute.xlu0 %2199
      %2201 = vrot.lane.b32.xlu0 %v2026, 28
      %v2202 = vpop.permute.xlu0 %2201
      %2203 = vrot.lane.b32.xlu0 %v2040, 28
      %v2204 = vpop.permute.xlu0 %2203
      %2205 = vrot.lane.b32.xlu0 %v2045, 28
      %v2206 = vpop.permute.xlu0 %2205
      %2207 = vrot.lane.b32.xlu0 %v2059, 28
      %v2208 = vpop.permute.xlu0 %2207
      %2209 = vrot.lane.b32.xlu0 %v2064, 28
      %v2210 = vpop.permute.xlu0 %2209
      %2211 = vrot.lane.b32.xlu0 %v2078, 28
      %v2212 = vpop.permute.xlu0 %2211
      %2213 = vrot.lane.b32.xlu0 %v2083, 28
      %v2214 = vpop.permute.xlu0 %2213
      %2215 = vrot.lane.b32.xlu0 %v2097, 28
      %v2216 = vpop.permute.xlu0 %2215
      %2217 = vrot.lane.b32.xlu0 %v2102, 28
      %v2218 = vpop.permute.xlu0 %2217
      %2219 = vrot.lane.b32.xlu0 %v2116, 28
      %v2220 = vpop.permute.xlu0 %2219
      %2221 = vrot.lane.b32.xlu0 %v2121, 28
      %v2222 = vpop.permute.xlu0 %2221
      %2223 = vrot.lane.b32.xlu0 %v2135, 28
      %v2224 = vpop.permute.xlu0 %2223
      %2225 = vrot.lane.b32.xlu0 %v2140, 28
      %v2226 = vpop.permute.xlu0 %2225
      %2227 = vrot.lane.b32.xlu0 %v2154, 28
      %v2228 = vpop.permute.xlu0 %2227
      %2229 = vrot.lane.b32.xlu0 %v2159, 28
      %v2230 = vpop.permute.xlu0 %2229
      %2231 = vrot.lane.b32.xlu0 %v2173, 28
      %v2232 = vpop.permute.xlu0 %2231
      %2233 = vrot.lane.b32.xlu0 %v2178, 28
      %v2234 = vpop.permute.xlu0 %2233
      %vm2263 = vcmask 257248
      %2264 = vst.msk [vmem:[#allocation2] sm:$0xf] %vm2263, %v2180
      %vm2265 = vcmask 256224
      %2266 = vst.msk [vmem:[#allocation2 + $0x4] sm:$0x7] %vm2265, %v2182
      %2267 = vst.msk [vmem:[#allocation2 + $0x8] sm:$0xf] %vm2263, %v2184
      %2268 = vst.msk [vmem:[#allocation2 + $0xc] sm:$0x7] %vm2265, %v2186
      %2269 = vst.msk [vmem:[#allocation2 + $0x10] sm:$0xf] %vm2263, %v2188
      %2270 = vst.msk [vmem:[#allocation2 + $0x14] sm:$0x7] %vm2265, %v2190
      %2271 = vst.msk [vmem:[#allocation2 + $0x18] sm:$0xf] %vm2263, %v2192
      %2272 = vst.msk [vmem:[#allocation2 + $0x1c] sm:$0x7] %vm2265, %v2194
      %2273 = vst.msk [vmem:[#allocation2 + $0x20] sm:$0xf] %vm2263, %v2196
      %2274 = vst.msk [vmem:[#allocation2 + $0x24] sm:$0x7] %vm2265, %v2198
      %2275 = vst.msk [vmem:[#allocation2 + $0x28] sm:$0xf] %vm2263, %v2200
      %2276 = vst.msk [vmem:[#allocation2 + $0x2c] sm:$0x7] %vm2265, %v2202
      %2277 = vst.msk [vmem:[#allocation2 + $0x30] sm:$0xf] %vm2263, %v2204
      %2278 = vst.msk [vmem:[#allocation2 + $0x34] sm:$0x7] %vm2265, %v2206
      %2279 = vst.msk [vmem:[#allocation2 + $0x38] sm:$0xf] %vm2263, %v2208
      %2280 = vst.msk [vmem:[#allocation2 + $0x3c] sm:$0x7] %vm2265, %v2210
      %2281 = vst.msk [vmem:[#allocation2 + $0x40] sm:$0xf] %vm2263, %v2212
      %2282 = vst.msk [vmem:[#allocation2 + $0x44] sm:$0x7] %vm2265, %v2214
      %2283 = vst.msk [vmem:[#allocation2 + $0x48] sm:$0xf] %vm2263, %v2216
      %2284 = vst.msk [vmem:[#allocation2 + $0x4c] sm:$0x7] %vm2265, %v2218
      %2285 = vst.msk [vmem:[#allocation2 + $0x50] sm:$0xf] %vm2263, %v2220
      %2286 = vst.msk [vmem:[#allocation2 + $0x54] sm:$0x7] %vm2265, %v2222
      %2287 = vst.msk [vmem:[#allocation2 + $0x58] sm:$0xf] %vm2263, %v2224
      %2288 = vst.msk [vmem:[#allocation2 + $0x5c] sm:$0x7] %vm2265, %v2226
      %2289 = vst.msk [vmem:[#allocation2 + $0x60] sm:$0xf] %vm2263, %v2228
      %2290 = vst.msk [vmem:[#allocation2 + $0x64] sm:$0x7] %vm2265, %v2230
      %2291 = vst.msk [vmem:[#allocation2 + $0x68] sm:$0xf] %vm2263, %v2232
      %2292 = vst.msk [vmem:[#allocation2 + $0x6c] sm:$0x7] %vm2265, %v2234
      %v2293 = vld [vmem:[%s1714] sm:$0xe]
      %v2294 = vld [vmem:[%s1714 + $0x4] sm:$0xf]
      %v2295 = vld [vmem:[%s1714 + $0x8] sm:$0xe]
      %v2296 = vld [vmem:[%s1714 + $0xc] sm:$0xf]
      %v2297 = vld [vmem:[%s1714 + $0x10] sm:$0xe]
      %v2298 = vld [vmem:[%s1714 + $0x14] sm:$0xf]
      %v2299 = vld [vmem:[%s1714 + $0x18] sm:$0xe]
      %v2300 = vld [vmem:[%s1714 + $0x1c] sm:$0xf]
      %v2301 = vld [vmem:[%s1714 + $0x20] sm:$0xe]
      %v2302 = vld [vmem:[%s1714 + $0x24] sm:$0xf]
      %v2303 = vld [vmem:[%s1714 + $0x28] sm:$0xe]
      %v2304 = vld [vmem:[%s1714 + $0x2c] sm:$0xf]
      %v2305 = vld [vmem:[%s1714 + $0x30] sm:$0xe]
      %v2306 = vld [vmem:[%s1714 + $0x34] sm:$0xf]
      %v2307 = vld [vmem:[%s1714 + $0x38] sm:$0xe]
      %v2308 = vld [vmem:[%s1714 + $0x3c] sm:$0xf]
      %v2309 = vld [vmem:[%s1714 + $0x40] sm:$0xe]
      %v2310 = vld [vmem:[%s1714 + $0x44] sm:$0xf]
      %v2311 = vld [vmem:[%s1714 + $0x48] sm:$0xe]
      %v2312 = vld [vmem:[%s1714 + $0x4c] sm:$0xf]
      %v2313 = vld [vmem:[%s1714 + $0x50] sm:$0xe]
      %v2314 = vld [vmem:[%s1714 + $0x54] sm:$0xf]
      %v2315 = vld [vmem:[%s1714 + $0x58] sm:$0xe]
      %v2316 = vld [vmem:[%s1714 + $0x5c] sm:$0xf]
      %v2317 = vld [vmem:[%s1714 + $0x60] sm:$0xe]
      %v2318 = vld [vmem:[%s1714 + $0x64] sm:$0xf]
      %v2319 = vld [vmem:[%s1714 + $0x68] sm:$0xe]
      %v2320 = vld [vmem:[%s1714 + $0x6c] sm:$0xf]
      %v2349 = vrot.slane %v2293, 5
      %v2350 = vrot.slane %v2349, 4
      %v2351 = vrot.slane %v2294, 5
      %v2352 = vsel %vm710, %v2350, %v2351
      %v2353 = vrot.slane %v2351, 4
      %v2354 = vrot.slane %v2295, 5
      %v2355 = vrot.slane %v2354, 4
      %v2356 = vrot.slane %v2296, 5
      %v2357 = vsel %vm710, %v2355, %v2356
      %v2358 = vrot.slane %v2356, 4
      %v2359 = vrot.slane %v2297, 5
      %v2360 = vrot.slane %v2359, 4
      %v2361 = vrot.slane %v2298, 5
      %v2362 = vsel %vm710, %v2360, %v2361
      %v2363 = vrot.slane %v2361, 4
      %v2364 = vrot.slane %v2299, 5
      %v2365 = vrot.slane %v2364, 4
      %v2366 = vrot.slane %v2300, 5
      %v2367 = vsel %vm710, %v2365, %v2366
      %v2368 = vrot.slane %v2366, 4
      %v2369 = vrot.slane %v2301, 5
      %v2370 = vrot.slane %v2369, 4
      %v2371 = vrot.slane %v2302, 5
      %v2372 = vsel %vm710, %v2370, %v2371
      %v2373 = vrot.slane %v2371, 4
      %v2374 = vrot.slane %v2303, 5
      %v2375 = vrot.slane %v2374, 4
      %v2376 = vrot.slane %v2304, 5
      %v2377 = vsel %vm710, %v2375, %v2376
      %v2378 = vrot.slane %v2376, 4
      %v2379 = vrot.slane %v2305, 5
      %v2380 = vrot.slane %v2379, 4
      %v2381 = vrot.slane %v2306, 5
      %v2382 = vsel %vm710, %v2380, %v2381
      %v2383 = vrot.slane %v2381, 4
      %v2384 = vrot.slane %v2307, 5
      %v2385 = vrot.slane %v2384, 4
      %v2386 = vrot.slane %v2308, 5
      %v2387 = vsel %vm710, %v2385, %v2386
      %v2388 = vrot.slane %v2386, 4
      %v2389 = vrot.slane %v2309, 5
      %v2390 = vrot.slane %v2389, 4
      %v2391 = vrot.slane %v2310, 5
      %v2392 = vsel %vm710, %v2390, %v2391
      %v2393 = vrot.slane %v2391, 4
      %v2394 = vrot.slane %v2311, 5
      %v2395 = vrot.slane %v2394, 4
      %v2396 = vrot.slane %v2312, 5
      %v2397 = vsel %vm710, %v2395, %v2396
      %v2398 = vrot.slane %v2396, 4
      %v2399 = vrot.slane %v2313, 5
      %v2400 = vrot.slane %v2399, 4
      %v2401 = vrot.slane %v2314, 5
      %v2402 = vsel %vm710, %v2400, %v2401
      %v2403 = vrot.slane %v2401, 4
      %v2404 = vrot.slane %v2315, 5
      %v2405 = vrot.slane %v2404, 4
      %v2406 = vrot.slane %v2316, 5
      %v2407 = vsel %vm710, %v2405, %v2406
      %v2408 = vrot.slane %v2406, 4
      %v2409 = vrot.slane %v2317, 5
      %v2410 = vrot.slane %v2409, 4
      %v2411 = vrot.slane %v2318, 5
      %v2412 = vsel %vm710, %v2410, %v2411
      %v2413 = vrot.slane %v2411, 4
      %v2414 = vrot.slane %v2319, 5
      %v2415 = vrot.slane %v2414, 4
      %v2416 = vrot.slane %v2320, 5
      %v2417 = vsel %vm710, %v2415, %v2416
      %v2418 = vrot.slane %v2416, 4
      %2419 = vrot.lane.b32.xlu0 %v2352, 32
      %v2420 = vpop.permute.xlu0 %2419
      %2421 = vrot.lane.b32.xlu0 %v2353, 32
      %v2422 = vpop.permute.xlu0 %2421
      %2423 = vrot.lane.b32.xlu0 %v2357, 32
      %v2424 = vpop.permute.xlu0 %2423
      %2425 = vrot.lane.b32.xlu0 %v2358, 32
      %v2426 = vpop.permute.xlu0 %2425
      %2427 = vrot.lane.b32.xlu0 %v2362, 32
      %v2428 = vpop.permute.xlu0 %2427
      %2429 = vrot.lane.b32.xlu0 %v2363, 32
      %v2430 = vpop.permute.xlu0 %2429
      %2431 = vrot.lane.b32.xlu0 %v2367, 32
      %v2432 = vpop.permute.xlu0 %2431
      %2433 = vrot.lane.b32.xlu0 %v2368, 32
      %v2434 = vpop.permute.xlu0 %2433
      %2435 = vrot.lane.b32.xlu0 %v2372, 32
      %v2436 = vpop.permute.xlu0 %2435
      %2437 = vrot.lane.b32.xlu0 %v2373, 32
      %v2438 = vpop.permute.xlu0 %2437
      %2439 = vrot.lane.b32.xlu0 %v2377, 32
      %v2440 = vpop.permute.xlu0 %2439
      %2441 = vrot.lane.b32.xlu0 %v2378, 32
      %v2442 = vpop.permute.xlu0 %2441
      %2443 = vrot.lane.b32.xlu0 %v2382, 32
      %v2444 = vpop.permute.xlu0 %2443
      %2445 = vrot.lane.b32.xlu0 %v2383, 32
      %v2446 = vpop.permute.xlu0 %2445
      %2447 = vrot.lane.b32.xlu0 %v2387, 32
      %v2448 = vpop.permute.xlu0 %2447
      %2449 = vrot.lane.b32.xlu0 %v2388, 32
      %v2450 = vpop.permute.xlu0 %2449
      %2451 = vrot.lane.b32.xlu0 %v2392, 32
      %v2452 = vpop.permute.xlu0 %2451
      %2453 = vrot.lane.b32.xlu0 %v2393, 32
      %v2454 = vpop.permute.xlu0 %2453
      %2455 = vrot.lane.b32.xlu0 %v2397, 32
      %v2456 = vpop.permute.xlu0 %2455
      %2457 = vrot.lane.b32.xlu0 %v2398, 32
      %v2458 = vpop.permute.xlu0 %2457
      %2459 = vrot.lane.b32.xlu0 %v2402, 32
      %v2460 = vpop.permute.xlu0 %2459
      %2461 = vrot.lane.b32.xlu0 %v2403, 32
      %v2462 = vpop.permute.xlu0 %2461
      %2463 = vrot.lane.b32.xlu0 %v2407, 32
      %v2464 = vpop.permute.xlu0 %2463
      %2465 = vrot.lane.b32.xlu0 %v2408, 32
      %v2466 = vpop.permute.xlu0 %2465
      %2467 = vrot.lane.b32.xlu0 %v2412, 32
      %v2468 = vpop.permute.xlu0 %2467
      %2469 = vrot.lane.b32.xlu0 %v2413, 32
      %v2470 = vpop.permute.xlu0 %2469
      %2471 = vrot.lane.b32.xlu0 %v2417, 32
      %v2472 = vpop.permute.xlu0 %2471
      %2473 = vrot.lane.b32.xlu0 %v2418, 32
      %v2474 = vpop.permute.xlu0 %2473
      %vm2503 = vcmask 290048
      %2504 = vst.msk [vmem:[#allocation2] sm:$0xf] %vm2503, %v2420
      %vm2505 = vcmask 289024
      %2506 = vst.msk [vmem:[#allocation2 + $0x4] sm:$0x7] %vm2505, %v2422
      %2507 = vst.msk [vmem:[#allocation2 + $0x8] sm:$0xf] %vm2503, %v2424
      %2508 = vst.msk [vmem:[#allocation2 + $0xc] sm:$0x7] %vm2505, %v2426
      %2509 = vst.msk [vmem:[#allocation2 + $0x10] sm:$0xf] %vm2503, %v2428
      %2510 = vst.msk [vmem:[#allocation2 + $0x14] sm:$0x7] %vm2505, %v2430
      %2511 = vst.msk [vmem:[#allocation2 + $0x18] sm:$0xf] %vm2503, %v2432
      %2512 = vst.msk [vmem:[#allocation2 + $0x1c] sm:$0x7] %vm2505, %v2434
      %2513 = vst.msk [vmem:[#allocation2 + $0x20] sm:$0xf] %vm2503, %v2436
      %2514 = vst.msk [vmem:[#allocation2 + $0x24] sm:$0x7] %vm2505, %v2438
      %2515 = vst.msk [vmem:[#allocation2 + $0x28] sm:$0xf] %vm2503, %v2440
      %2516 = vst.msk [vmem:[#allocation2 + $0x2c] sm:$0x7] %vm2505, %v2442
      %2517 = vst.msk [vmem:[#allocation2 + $0x30] sm:$0xf] %vm2503, %v2444
      %2518 = vst.msk [vmem:[#allocation2 + $0x34] sm:$0x7] %vm2505, %v2446
      %2519 = vst.msk [vmem:[#allocation2 + $0x38] sm:$0xf] %vm2503, %v2448
      %2520 = vst.msk [vmem:[#allocation2 + $0x3c] sm:$0x7] %vm2505, %v2450
      %2521 = vst.msk [vmem:[#allocation2 + $0x40] sm:$0xf] %vm2503, %v2452
      %2522 = vst.msk [vmem:[#allocation2 + $0x44] sm:$0x7] %vm2505, %v2454
      %2523 = vst.msk [vmem:[#allocation2 + $0x48] sm:$0xf] %vm2503, %v2456
      %2524 = vst.msk [vmem:[#allocation2 + $0x4c] sm:$0x7] %vm2505, %v2458
      %2525 = vst.msk [vmem:[#allocation2 + $0x50] sm:$0xf] %vm2503, %v2460
      %2526 = vst.msk [vmem:[#allocation2 + $0x54] sm:$0x7] %vm2505, %v2462
      %2527 = vst.msk [vmem:[#allocation2 + $0x58] sm:$0xf] %vm2503, %v2464
      %2528 = vst.msk [vmem:[#allocation2 + $0x5c] sm:$0x7] %vm2505, %v2466
      %2529 = vst.msk [vmem:[#allocation2 + $0x60] sm:$0xf] %vm2503, %v2468
      %2530 = vst.msk [vmem:[#allocation2 + $0x64] sm:$0x7] %vm2505, %v2470
      %2531 = vst.msk [vmem:[#allocation2 + $0x68] sm:$0xf] %vm2503, %v2472
      %2532 = vst.msk [vmem:[#allocation2 + $0x6c] sm:$0x7] %vm2505, %v2474
      %v2533 = vld [vmem:[%s1] sm:$0xf]
      %v2534 = vld [vmem:[%s1 + $0x4] sm:$0xf]
      %v2535 = vld [vmem:[%s1 + $0x8] sm:$0xf]
      %v2536 = vld [vmem:[%s1 + $0xc] sm:$0xf]
      %v2537 = vld [vmem:[%s1 + $0x10] sm:$0x3]
      %v2538 = vld [vmem:[#allocation2] sm:$0xf]
      %v2539 = vld [vmem:[#allocation2 + $0x4] sm:$0x7]
      %v2542 = vunpack.c.l.b16 %v2538
      %v2543 = vunpack.c.l.b16 %v2539
      %v2544 = vpack.c.b16 %v2543, %v2542
      %v2550 = vunpack.c.l.b16 %v2533
      %v2551 = vunpack.c.l.b16 %v2534
      %v2552 = vunpack.c.l.b16 %v2535
      %v2553 = vunpack.c.l.b16 %v2536
      %v2554 = vunpack.c.l.b16 %v2537
      %v2555 = vpack.c.b16 %v2551, %v2550
      %v2556 = vpack.c.b16 %v2553, %v2552
      %v2557 = vpack.c.b16 %v2554, %v2554
      %vm2560 = vcmask 293888
      %v2562 = vsel %vm2560, %v2544, 0
      %vm2564 = vcmask 1041408
      %v2566 = vsel %vm2564, %v2557, 0
      %2568 = vmatprep.subr.bf16.mxu0 0
      %2569 = vmatpush1.bf16.msra.mxu0 %v2555
      %2570 = vmatprep.subr.bf16.mxu0 0
      %2571 = vmatpush1.bf16.msra.mxu0 %v2556
      %2572 = vmatprep.subr.bf16.mxu0 0
      %2573 = vmatpush1.bf16.msra.mxu0 %v2566
      %2574 = vmatprep.subr.bf16.mxu0 0
      %2575 = vmatpush1.bf16.msra.mxu0 0
      %2576 = vmatprep.subr.bf16.mxu0 0
      %2577 = vmatpush1.bf16.msra.mxu0 0
      %2578 = vmatprep.subr.bf16.mxu0 0
      %2579 = vmatpush1.bf16.msra.mxu0 0
      %2580 = vmatprep.subr.bf16.mxu0 0
      %2581 = vmatpush1.bf16.msra.mxu0 0
      %2582 = vmatprep.subr.bf16.mxu0 0
      %2583 = vmatpush1.bf16.msra.mxu0 0
      %2584 = vmatprep.subr.bf16.mxu0 0
      %2585 = vmatpush1.bf16.msra.mxu0 0
      %2586 = vmatprep.subr.bf16.mxu0 0
      %2587 = vmatpush1.bf16.msra.mxu0 0
      %2588 = vmatprep.subr.bf16.mxu0 0
      %2589 = vmatpush1.bf16.msra.mxu0 0
      %2590 = vmatprep.subr.bf16.mxu0 0
      %2591 = vmatpush1.bf16.msra.mxu0 0
      %2592 = vmatprep.subr.bf16.mxu0 0
      %2593 = vmatpush1.bf16.msra.mxu0 0
      %2594 = vmatprep.subr.bf16.mxu0 0
      %2595 = vmatpush1.bf16.msra.mxu0 0
      %2596 = vmatprep.subr.bf16.mxu0 0
      %2597 = vmatpush1.bf16.msra.mxu0 0
      %2598 = vmatprep.subr.bf16.mxu0 0
      %2599 = vmatpush1.bf16.msra.mxu0 0
      %2600 = vmatprep.mubr.bf16.mxu0 0
      %2601 = vmatmul.mubr.bf16.gmra.mrb[0].mxu0 %v2562
      %v2602 = vpop.f32.mrb[0].mxu0
      %v2603 = vadd.f32 0.0, %v2602
      %v2604 = vpop.f32.mrb[0].mxu0
      %v2605 = vpop.f32.mrb[0].mxu0
      %v2606 = vadd.f32 0.0, %v2605
      %v2607 = vpop.f32.mrb[0].mxu0
      %2608 = vdwg.mxu0
      %v2609 = vpack.c.bf16 %v2606, %v2603
      %v2611 = vunpack.c.l.b16 %v2609
      %v2612 = vunpack.c.h.b16 %v2609
      %v2613 = vpack.c.b16 %v2611, %v2611
      %v2614 = vpack.c.b16 %v2612, %v2612
      %2617 = vst [vmem:[%s177] sm:$0xf] %v2613
      %2618 = vst [vmem:[%s177 + $0x4] sm:$0x7] %v2614
      %v2619 = vadd.f32 %v2603, 0.0
      %v2620 = vadd.f32 %v2606, 0.0
      %v2621 = vmul.f32 %v2603, %v2603
      %v2622 = vmul.f32 %v2606, %v2606
      %v2623 = vadd.f32 %v2621, 0.0
      %v2624 = vadd.f32 %v2622, 0.0
      %s2625 = scalar_lea.vmem [#allocation2], 8
      %v2626 = vld [vmem:[%s2625] sm:$0xf]
      %v2627 = vld [vmem:[%s2625 + $0x4] sm:$0x7]
      %v2630 = vunpack.c.l.b16 %v2626
      %v2631 = vunpack.c.l.b16 %v2627
      %v2632 = vpack.c.b16 %v2631, %v2630
      %v2634 = vsel %vm2560, %v2632, 0
      %2636 = vmatprep.subr.bf16.mxu0 0
      %2637 = vmatpush1.bf16.msra.mxu0 %v2555
      %2638 = vmatprep.subr.bf16.mxu0 0
      %2639 = vmatpush1.bf16.msra.mxu0 %v2556
      %2640 = vmatprep.subr.bf16.mxu0 0
      %2641 = vmatpush1.bf16.msra.mxu0 %v2566
      %2642 = vmatprep.subr.bf16.mxu0 0
      %2643 = vmatpush1.bf16.msra.mxu0 0
      %2644 = vmatprep.subr.bf16.mxu0 0
      %2645 = vmatpush1.bf16.msra.mxu0 0
      %2646 = vmatprep.subr.bf16.mxu0 0
      %2647 = vmatpush1.bf16.msra.mxu0 0
      %2648 = vmatprep.subr.bf16.mxu0 0
      %2649 = vmatpush1.bf16.msra.mxu0 0
      %2650 = vmatprep.subr.bf16.mxu0 0
      %2651 = vmatpush1.bf16.msra.mxu0 0
      %2652 = vmatprep.subr.bf16.mxu0 0
      %2653 = vmatpush1.bf16.msra.mxu0 0
      %2654 = vmatprep.subr.bf16.mxu0 0
      %2655 = vmatpush1.bf16.msra.mxu0 0
      %2656 = vmatprep.subr.bf16.mxu0 0
      %2657 = vmatpush1.bf16.msra.mxu0 0
      %2658 = vmatprep.subr.bf16.mxu0 0
      %2659 = vmatpush1.bf16.msra.mxu0 0
      %2660 = vmatprep.subr.bf16.mxu0 0
      %2661 = vmatpush1.bf16.msra.mxu0 0
      %2662 = vmatprep.subr.bf16.mxu0 0
      %2663 = vmatpush1.bf16.msra.mxu0 0
      %2664 = vmatprep.subr.bf16.mxu0 0
      %2665 = vmatpush1.bf16.msra.mxu0 0
      %2666 = vmatprep.subr.bf16.mxu0 0
      %2667 = vmatpush1.bf16.msra.mxu0 0
      %2668 = vmatprep.mubr.bf16.mxu0 0
      %2669 = vmatmul.mubr.bf16.gmra.mrb[0].mxu0 %v2634
      %v2670 = vpop.f32.mrb[0].mxu0
      %v2671 = vadd.f32 0.0, %v2670
      %v2672 = vpop.f32.mrb[0].mxu0
      %v2673 = vpop.f32.mrb[0].mxu0
      %v2674 = vadd.f32 0.0, %v2673
      %v2675 = vpop.f32.mrb[0].mxu0
      %2676 = vdwg.mxu0
      %v2677 = vpack.c.bf16 %v2674, %v2671
      %v2679 = vunpack.c.l.b16 %v2677
      %v2680 = vunpack.c.h.b16 %v2677
      %v2681 = vpack.c.b16 %v2679, %v2679
      %v2682 = vpack.c.b16 %v2680, %v2680
      %v2683 = vrot.slane %v2681, 5
      %v2684 = vrot.slane %v2683, 4
      %v2685 = vrot.slane %v2682, 5
      %v2686 = vsel %vm710, %v2684, %v2685
      %v2687 = vrot.slane %v2685, 4
      %2691 = vst [vmem:[%s177 + $0x4] sm:$0x8] %v2683
      %2692 = vst [vmem:[%s177 + $0x8] sm:$0xf] %v2686
      %2693 = vst [vmem:[%s177 + $0xc] sm:$0x3] %v2687
      %v2694 = vadd.f32 %v2619, %v2671
      %v2695 = vadd.f32 %v2620, %v2674
      %v2696 = vmul.f32 %v2671, %v2671
      %v2697 = vmul.f32 %v2674, %v2674
      %v2698 = vadd.f32 %v2623, %v2696
      %v2699 = vadd.f32 %v2624, %v2697
      %s2700 = scalar_lea.vmem [#allocation2], 16
      %v2701 = vld [vmem:[%s2700] sm:$0xf]
      %v2702 = vld [vmem:[%s2700 + $0x4] sm:$0x7]
      %v2705 = vunpack.c.l.b16 %v2701
      %v2706 = vunpack.c.l.b16 %v2702
      %v2707 = vpack.c.b16 %v2706, %v2705
      %v2709 = vsel %vm2560, %v2707, 0
      %2711 = vmatprep.subr.bf16.mxu0 0
      %2712 = vmatpush1.bf16.msra.mxu0 %v2555
      %2713 = vmatprep.subr.bf16.mxu0 0
      %2714 = vmatpush1.bf16.msra.mxu0 %v2556
      %2715 = vmatprep.subr.bf16.mxu0 0
      %2716 = vmatpush1.bf16.msra.mxu0 %v2566
      %2717 = vmatprep.subr.bf16.mxu0 0
      %2718 = vmatpush1.bf16.msra.mxu0 0
      %2719 = vmatprep.subr.bf16.mxu0 0
      %2720 = vmatpush1.bf16.msra.mxu0 0
      %2721 = vmatprep.subr.bf16.mxu0 0
      %2722 = vmatpush1.bf16.msra.mxu0 0
      %2723 = vmatprep.subr.bf16.mxu0 0
      %2724 = vmatpush1.bf16.msra.mxu0 0
      %2725 = vmatprep.subr.bf16.mxu0 0
      %2726 = vmatpush1.bf16.msra.mxu0 0
      %2727 = vmatprep.subr.bf16.mxu0 0
      %2728 = vmatpush1.bf16.msra.mxu0 0
      %2729 = vmatprep.subr.bf16.mxu0 0
      %2730 = vmatpush1.bf16.msra.mxu0 0
      %2731 = vmatprep.subr.bf16.mxu0 0
      %2732 = vmatpush1.bf16.msra.mxu0 0
      %2733 = vmatprep.subr.bf16.mxu0 0
      %2734 = vmatpush1.bf16.msra.mxu0 0
      %2735 = vmatprep.subr.bf16.mxu0 0
      %2736 = vmatpush1.bf16.msra.mxu0 0
      %2737 = vmatprep.subr.bf16.mxu0 0
      %2738 = vmatpush1.bf16.msra.mxu0 0
      %2739 = vmatprep.subr.bf16.mxu0 0
      %2740 = vmatpush1.bf16.msra.mxu0 0
      %2741 = vmatprep.subr.bf16.mxu0 0
      %2742 = vmatpush1.bf16.msra.mxu0 0
      %2743 = vmatprep.mubr.bf16.mxu0 0
      %2744 = vmatmul.mubr.bf16.gmra.mrb[0].mxu0 %v2709
      %v2745 = vpop.f32.mrb[0].mxu0
      %v2746 = vadd.f32 0.0, %v2745
      %v2747 = vpop.f32.mrb[0].mxu0
      %v2748 = vpop.f32.mrb[0].mxu0
      %v2749 = vadd.f32 0.0, %v2748
      %v2750 = vpop.f32.mrb[0].mxu0
      %2751 = vdwg.mxu0
      %v2752 = vpack.c.bf16 %v2749, %v2746
      %v2754 = vunpack.c.l.b16 %v2752
      %v2755 = vunpack.c.h.b16 %v2752
      %v2756 = vpack.c.b16 %v2754, %v2754
      %v2757 = vpack.c.b16 %v2755, %v2755
      %vm2758 = vcmask 1041408
      %vm2759 = vcmask 1045508
      %vm2760 = vmor %vm2758, %vm2759
      %v2761 = vrot.slane %v2756, 6
      %v2762 = vrot.slane %v2761, 4
      %v2763 = vrot.slane %v2757, 6
      %v2764 = vsel %vm2760, %v2762, %v2763
      %v2765 = vrot.slane %v2763, 4
      %2769 = vst [vmem:[%s177 + $0xc] sm:$0xc] %v2761
      %2770 = vst [vmem:[%s177 + $0x10] sm:$0xf] %v2764
      %2771 = vst [vmem:[%s177 + $0x14] sm:$0x1] %v2765
      %v2772 = vadd.f32 %v2694, %v2746
      %v2773 = vadd.f32 %v2695, %v2749
      %v2774 = vmul.f32 %v2746, %v2746
      %v2775 = vmul.f32 %v2749, %v2749
      %v2776 = vadd.f32 %v2698, %v2774
      %v2777 = vadd.f32 %v2699, %v2775
      %s2778 = scalar_lea.vmem [#allocation2], 24
      %v2779 = vld [vmem:[%s2778] sm:$0xf]
      %v2780 = vld [vmem:[%s2778 + $0x4] sm:$0x7]
      %v2783 = vunpack.c.l.b16 %v2779
      %v2784 = vunpack.c.l.b16 %v2780
      %v2785 = vpack.c.b16 %v2784, %v2783
      %v2787 = vsel %vm2560, %v2785, 0
      %2789 = vmatprep.subr.bf16.mxu0 0
      %2790 = vmatpush1.bf16.msra.mxu0 %v2555
      %2791 = vmatprep.subr.bf16.mxu0 0
      %2792 = vmatpush1.bf16.msra.mxu0 %v2556
      %2793 = vmatprep.subr.bf16.mxu0 0
      %2794 = vmatpush1.bf16.msra.mxu0 %v2566
      %2795 = vmatprep.subr.bf16.mxu0 0
      %2796 = vmatpush1.bf16.msra.mxu0 0
      %2797 = vmatprep.subr.bf16.mxu0 0
      %2798 = vmatpush1.bf16.msra.mxu0 0
      %2799 = vmatprep.subr.bf16.mxu0 0
      %2800 = vmatpush1.bf16.msra.mxu0 0
      %2801 = vmatprep.subr.bf16.mxu0 0
      %2802 = vmatpush1.bf16.msra.mxu0 0
      %2803 = vmatprep.subr.bf16.mxu0 0
      %2804 = vmatpush1.bf16.msra.mxu0 0
      %2805 = vmatprep.subr.bf16.mxu0 0
      %2806 = vmatpush1.bf16.msra.mxu0 0
      %2807 = vmatprep.subr.bf16.mxu0 0
      %2808 = vmatpush1.bf16.msra.mxu0 0
      %2809 = vmatprep.subr.bf16.mxu0 0
      %2810 = vmatpush1.bf16.msra.mxu0 0
      %2811 = vmatprep.subr.bf16.mxu0 0
      %2812 = vmatpush1.bf16.msra.mxu0 0
      %2813 = vmatprep.subr.bf16.mxu0 0
      %2814 = vmatpush1.bf16.msra.mxu0 0
      %2815 = vmatprep.subr.bf16.mxu0 0
      %2816 = vmatpush1.bf16.msra.mxu0 0
      %2817 = vmatprep.subr.bf16.mxu0 0
      %2818 = vmatpush1.bf16.msra.mxu0 0
      %2819 = vmatprep.subr.bf16.mxu0 0
      %2820 = vmatpush1.bf16.msra.mxu0 0
      %2821 = vmatprep.mubr.bf16.mxu0 0
      %2822 = vmatmul.mubr.bf16.gmra.mrb[0].mxu0 %v2787
      %v2823 = vpop.f32.mrb[0].mxu0
      %v2824 = vadd.f32 0.0, %v2823
      %v2825 = vpop.f32.mrb[0].mxu0
      %v2826 = vpop.f32.mrb[0].mxu0
      %v2827 = vadd.f32 0.0, %v2826
      %v2828 = vpop.f32.mrb[0].mxu0
      %2829 = vdwg.mxu0
      %v2830 = vpack.c.bf16 %v2827, %v2824
      %v2832 = vunpack.c.l.b16 %v2830
      %v2833 = vunpack.c.h.b16 %v2830
      %v2834 = vpack.c.b16 %v2832, %v2832
      %v2835 = vpack.c.b16 %v2833, %v2833
      %vm2836 = vcmask 1040384
      %vm2837 = vcmask 1044484
      %vm2838 = vmor %vm2836, %vm2837
      %v2839 = vrot.slane %v2834, 7
      %v2840 = vrot.slane %v2839, 4
      %v2841 = vrot.slane %v2835, 7
      %v2842 = vsel %vm2838, %v2840, %v2841
      %2845 = vst [vmem:[%s177 + $0x14] sm:$0xe] %v2839
      %2846 = vst [vmem:[%s177 + $0x18] sm:$0xf] %v2842
      %v2847 = vadd.f32 %v2772, %v2824
      %v2848 = vadd.f32 %v2773, %v2827
      %v2849 = vmul.f32 %v2824, %v2824
      %v2850 = vmul.f32 %v2827, %v2827
      %v2851 = vadd.f32 %v2776, %v2849
      %v2852 = vadd.f32 %v2777, %v2850
      %s2853 = scalar_lea.vmem [#allocation2], 32
      %v2854 = vld [vmem:[%s2853] sm:$0xf]
      %v2855 = vld [vmem:[%s2853 + $0x4] sm:$0x7]
      %v2858 = vunpack.c.l.b16 %v2854
      %v2859 = vunpack.c.l.b16 %v2855
      %v2860 = vpack.c.b16 %v2859, %v2858
      %v2862 = vsel %vm2560, %v2860, 0
      %2864 = vmatprep.subr.bf16.mxu0 0
      %2865 = vmatpush1.bf16.msra.mxu0 %v2555
      %2866 = vmatprep.subr.bf16.mxu0 0
      %2867 = vmatpush1.bf16.msra.mxu0 %v2556
      %2868 = vmatprep.subr.bf16.mxu0 0
      %2869 = vmatpush1.bf16.msra.mxu0 %v2566
      %2870 = vmatprep.subr.bf16.mxu0 0
      %2871 = vmatpush1.bf16.msra.mxu0 0
      %2872 = vmatprep.subr.bf16.mxu0 0
      %2873 = vmatpush1.bf16.msra.mxu0 0
      %2874 = vmatprep.subr.bf16.mxu0 0
      %2875 = vmatpush1.bf16.msra.mxu0 0
      %2876 = vmatprep.subr.bf16.mxu0 0
      %2877 = vmatpush1.bf16.msra.mxu0 0
      %2878 = vmatprep.subr.bf16.mxu0 0
      %2879 = vmatpush1.bf16.msra.mxu0 0
      %2880 = vmatprep.subr.bf16.mxu0 0
      %2881 = vmatpush1.bf16.msra.mxu0 0
      %2882 = vmatprep.subr.bf16.mxu0 0
      %2883 = vmatpush1.bf16.msra.mxu0 0
      %2884 = vmatprep.subr.bf16.mxu0 0
      %2885 = vmatpush1.bf16.msra.mxu0 0
      %2886 = vmatprep.subr.bf16.mxu0 0
      %2887 = vmatpush1.bf16.msra.mxu0 0
      %2888 = vmatprep.subr.bf16.mxu0 0
      %2889 = vmatpush1.bf16.msra.mxu0 0
      %2890 = vmatprep.subr.bf16.mxu0 0
      %2891 = vmatpush1.bf16.msra.mxu0 0
      %2892 = vmatprep.subr.bf16.mxu0 0
      %2893 = vmatpush1.bf16.msra.mxu0 0
      %2894 = vmatprep.subr.bf16.mxu0 0
      %2895 = vmatpush1.bf16.msra.mxu0 0
      %2896 = vmatprep.mubr.bf16.mxu0 0
      %2897 = vmatmul.mubr.bf16.gmra.mrb[0].mxu0 %v2862
      %v2898 = vpop.f32.mrb[0].mxu0
      %v2899 = vadd.f32 0.0, %v2898
      %v2900 = vpop.f32.mrb[0].mxu0
      %v2901 = vpop.f32.mrb[0].mxu0
      %v2902 = vadd.f32 0.0, %v2901
      %v2903 = vpop.f32.mrb[0].mxu0
      %2904 = vdwg.mxu0
      %v2905 = vpack.c.bf16 %v2902, %v2899
      %v2907 = vunpack.c.l.b16 %v2905
      %v2908 = vunpack.c.h.b16 %v2905
      %v2909 = vpack.c.b16 %v2907, %v2907
      %v2910 = vpack.c.b16 %v2908, %v2908
      %2913 = vst [vmem:[%s177 + $0x1c] sm:$0xf] %v2909
      %2914 = vst [vmem:[%s177 + $0x20] sm:$0x7] %v2910
      %v2915 = vadd.f32 %v2847, %v2899
      %v2916 = vadd.f32 %v2848, %v2902
      %v2917 = vmul.f32 %v2899, %v2899
      %v2918 = vmul.f32 %v2902, %v2902
      %v2919 = vadd.f32 %v2851, %v2917
      %v2920 = vadd.f32 %v2852, %v2918
      %s2921 = scalar_lea.vmem [#allocation2], 40
      %v2922 = vld [vmem:[%s2921] sm:$0xf]
      %v2923 = vld [vmem:[%s2921 + $0x4] sm:$0x7]
      %v2926 = vunpack.c.l.b16 %v2922
      %v2927 = vunpack.c.l.b16 %v2923
      %v2928 = vpack.c.b16 %v2927, %v2926
      %v2930 = vsel %vm2560, %v2928, 0
      %2932 = vmatprep.subr.bf16.mxu0 0
      %2933 = vmatpush1.bf16.msra.mxu0 %v2555
      %2934 = vmatprep.subr.bf16.mxu0 0
      %2935 = vmatpush1.bf16.msra.mxu0 %v2556
      %2936 = vmatprep.subr.bf16.mxu0 0
      %2937 = vmatpush1.bf16.msra.mxu0 %v2566
      %2938 = vmatprep.subr.bf16.mxu0 0
      %2939 = vmatpush1.bf16.msra.mxu0 0
      %2940 = vmatprep.subr.bf16.mxu0 0
      %2941 = vmatpush1.bf16.msra.mxu0 0
      %2942 = vmatprep.subr.bf16.mxu0 0
      %2943 = vmatpush1.bf16.msra.mxu0 0
      %2944 = vmatprep.subr.bf16.mxu0 0
      %2945 = vmatpush1.bf16.msra.mxu0 0
      %2946 = vmatprep.subr.bf16.mxu0 0
      %2947 = vmatpush1.bf16.msra.mxu0 0
      %2948 = vmatprep.subr.bf16.mxu0 0
      %2949 = vmatpush1.bf16.msra.mxu0 0
      %2950 = vmatprep.subr.bf16.mxu0 0
      %2951 = vmatpush1.bf16.msra.mxu0 0
      %2952 = vmatprep.subr.bf16.mxu0 0
      %2953 = vmatpush1.bf16.msra.mxu0 0
      %2954 = vmatprep.subr.bf16.mxu0 0
      %2955 = vmatpush1.bf16.msra.mxu0 0
      %2956 = vmatprep.subr.bf16.mxu0 0
      %2957 = vmatpush1.bf16.msra.mxu0 0
      %2958 = vmatprep.subr.bf16.mxu0 0
      %2959 = vmatpush1.bf16.msra.mxu0 0
      %2960 = vmatprep.subr.bf16.mxu0 0
      %2961 = vmatpush1.bf16.msra.mxu0 0
      %2962 = vmatprep.subr.bf16.mxu0 0
      %2963 = vmatpush1.bf16.msra.mxu0 0
      %2964 = vmatprep.mubr.bf16.mxu0 0
      %2965 = vmatmul.mubr.bf16.gmra.mrb[0].mxu0 %v2930
      %v2966 = vpop.f32.mrb[0].mxu0
      %v2967 = vadd.f32 0.0, %v2966
      %v2968 = vpop.f32.mrb[0].mxu0
      %v2969 = vpop.f32.mrb[0].mxu0
      %v2970 = vadd.f32 0.0, %v2969
      %v2971 = vpop.f32.mrb[0].mxu0
      %2972 = vdwg.mxu0
      %v2973 = vpack.c.bf16 %v2970, %v2967
      %v2975 = vunpack.c.l.b16 %v2973
      %v2976 = vunpack.c.h.b16 %v2973
      %v2977 = vpack.c.b16 %v2975, %v2975
      %v2978 = vpack.c.b16 %v2976, %v2976
      %v2979 = vrot.slane %v2977, 5
      %v2980 = vrot.slane %v2979, 4
      %v2981 = vrot.slane %v2978, 5
      %v2982 = vsel %vm710, %v2980, %v2981
      %v2983 = vrot.slane %v2981, 4
      %2987 = vst [vmem:[%s177 + $0x20] sm:$0x8] %v2979
      %2988 = vst [vmem:[%s177 + $0x24] sm:$0xf] %v2982
      %2989 = vst [vmem:[%s177 + $0x28] sm:$0x3] %v2983
      %v2990 = vadd.f32 %v2915, %v2967
      %v2991 = vadd.f32 %v2916, %v2970
      %v2992 = vmul.f32 %v2967, %v2967
      %v2993 = vmul.f32 %v2970, %v2970
      %v2994 = vadd.f32 %v2919, %v2992
      %v2995 = vadd.f32 %v2920, %v2993
      %s2996 = scalar_lea.vmem [#allocation2], 48
      %v2997 = vld [vmem:[%s2996] sm:$0xf]
      %v2998 = vld [vmem:[%s2996 + $0x4] sm:$0x7]
      %v3001 = vunpack.c.l.b16 %v2997
      %v3002 = vunpack.c.l.b16 %v2998
      %v3003 = vpack.c.b16 %v3002, %v3001
      %v3005 = vsel %vm2560, %v3003, 0
      %3007 = vmatprep.subr.bf16.mxu0 0
      %3008 = vmatpush1.bf16.msra.mxu0 %v2555
      %3009 = vmatprep.subr.bf16.mxu0 0
      %3010 = vmatpush1.bf16.msra.mxu0 %v2556
      %3011 = vmatprep.subr.bf16.mxu0 0
      %3012 = vmatpush1.bf16.msra.mxu0 %v2566
      %3013 = vmatprep.subr.bf16.mxu0 0
      %3014 = vmatpush1.bf16.msra.mxu0 0
      %3015 = vmatprep.subr.bf16.mxu0 0
      %3016 = vmatpush1.bf16.msra.mxu0 0
      %3017 = vmatprep.subr.bf16.mxu0 0
      %3018 = vmatpush1.bf16.msra.mxu0 0
      %3019 = vmatprep.subr.bf16.mxu0 0
      %3020 = vmatpush1.bf16.msra.mxu0 0
      %3021 = vmatprep.subr.bf16.mxu0 0
      %3022 = vmatpush1.bf16.msra.mxu0 0
      %3023 = vmatprep.subr.bf16.mxu0 0
      %3024 = vmatpush1.bf16.msra.mxu0 0
      %3025 = vmatprep.subr.bf16.mxu0 0
      %3026 = vmatpush1.bf16.msra.mxu0 0
      %3027 = vmatprep.subr.bf16.mxu0 0
      %3028 = vmatpush1.bf16.msra.mxu0 0
      %3029 = vmatprep.subr.bf16.mxu0 0
      %3030 = vmatpush1.bf16.msra.mxu0 0
      %3031 = vmatprep.subr.bf16.mxu0 0
      %3032 = vmatpush1.bf16.msra.mxu0 0
      %3033 = vmatprep.subr.bf16.mxu0 0
      %3034 = vmatpush1.bf16.msra.mxu0 0
      %3035 = vmatprep.subr.bf16.mxu0 0
      %3036 = vmatpush1.bf16.msra.mxu0 0
      %3037 = vmatprep.subr.bf16.mxu0 0
      %3038 = vmatpush1.bf16.msra.mxu0 0
      %3039 = vmatprep.mubr.bf16.mxu0 0
      %3040 = vmatmul.mubr.bf16.gmra.mrb[0].mxu0 %v3005
      %v3041 = vpop.f32.mrb[0].mxu0
      %v3042 = vadd.f32 0.0, %v3041
      %v3043 = vpop.f32.mrb[0].mxu0
      %v3044 = vpop.f32.mrb[0].mxu0
      %v3045 = vadd.f32 0.0, %v3044
      %v3046 = vpop.f32.mrb[0].mxu0
      %3047 = vdwg.mxu0
      %v3048 = vpack.c.bf16 %v3045, %v3042
      %v3050 = vunpack.c.l.b16 %v3048
      %v3051 = vunpack.c.h.b16 %v3048
      %v3052 = vpack.c.b16 %v3050, %v3050
      %v3053 = vpack.c.b16 %v3051, %v3051
      %v3054 = vrot.slane %v3052, 6
      %v3055 = vrot.slane %v3054, 4
      %v3056 = vrot.slane %v3053, 6
      %v3057 = vsel %vm2760, %v3055, %v3056
      %v3058 = vrot.slane %v3056, 4
      %3062 = vst [vmem:[%s177 + $0x28] sm:$0xc] %v3054
      %3063 = vst [vmem:[%s177 + $0x2c] sm:$0xf] %v3057
      %3064 = vst [vmem:[%s177 + $0x30] sm:$0x1] %v3058
      %v3065 = vadd.f32 %v2990, %v3042
      %v3066 = vadd.f32 %v2991, %v3045
      %v3067 = vmul.f32 %v3042, %v3042
      %v3068 = vmul.f32 %v3045, %v3045
      %v3069 = vadd.f32 %v2994, %v3067
      %v3070 = vadd.f32 %v2995, %v3068
      %s3071 = scalar_lea.vmem [#allocation2], 56
      %v3072 = vld [vmem:[%s3071] sm:$0xf]
      %v3073 = vld [vmem:[%s3071 + $0x4] sm:$0x7]
      %v3076 = vunpack.c.l.b16 %v3072
      %v3077 = vunpack.c.l.b16 %v3073
      %v3078 = vpack.c.b16 %v3077, %v3076
      %v3080 = vsel %vm2560, %v3078, 0
      %3082 = vmatprep.subr.bf16.mxu0 0
      %3083 = vmatpush1.bf16.msra.mxu0 %v2555
      %3084 = vmatprep.subr.bf16.mxu0 0
      %3085 = vmatpush1.bf16.msra.mxu0 %v2556
      %3086 = vmatprep.subr.bf16.mxu0 0
      %3087 = vmatpush1.bf16.msra.mxu0 %v2566
      %3088 = vmatprep.subr.bf16.mxu0 0
      %3089 = vmatpush1.bf16.msra.mxu0 0
      %3090 = vmatprep.subr.bf16.mxu0 0
      %3091 = vmatpush1.bf16.msra.mxu0 0
      %3092 = vmatprep.subr.bf16.mxu0 0
      %3093 = vmatpush1.bf16.msra.mxu0 0
      %3094 = vmatprep.subr.bf16.mxu0 0
      %3095 = vmatpush1.bf16.msra.mxu0 0
      %3096 = vmatprep.subr.bf16.mxu0 0
      %3097 = vmatpush1.bf16.msra.mxu0 0
      %3098 = vmatprep.subr.bf16.mxu0 0
      %3099 = vmatpush1.bf16.msra.mxu0 0
      %3100 = vmatprep.subr.bf16.mxu0 0
      %3101 = vmatpush1.bf16.msra.mxu0 0
      %3102 = vmatprep.subr.bf16.mxu0 0
      %3103 = vmatpush1.bf16.msra.mxu0 0
      %3104 = vmatprep.subr.bf16.mxu0 0
      %3105 = vmatpush1.bf16.msra.mxu0 0
      %3106 = vmatprep.subr.bf16.mxu0 0
      %3107 = vmatpush1.bf16.msra.mxu0 0
      %3108 = vmatprep.subr.bf16.mxu0 0
      %3109 = vmatpush1.bf16.msra.mxu0 0
      %3110 = vmatprep.subr.bf16.mxu0 0
      %3111 = vmatpush1.bf16.msra.mxu0 0
      %3112 = vmatprep.subr.bf16.mxu0 0
      %3113 = vmatpush1.bf16.msra.mxu0 0
      %3114 = vmatprep.mubr.bf16.mxu0 0
      %3115 = vmatmul.mubr.bf16.gmra.mrb[0].mxu0 %v3080
      %v3116 = vpop.f32.mrb[0].mxu0
      %v3117 = vadd.f32 0.0, %v3116
      %v3118 = vpop.f32.mrb[0].mxu0
      %v3119 = vpop.f32.mrb[0].mxu0
      %v3120 = vadd.f32 0.0, %v3119
      %v3121 = vpop.f32.mrb[0].mxu0
      %3122 = vdwg.mxu0
      %v3123 = vpack.c.bf16 %v3120, %v3117
      %v3125 = vunpack.c.l.b16 %v3123
      %v3126 = vunpack.c.h.b16 %v3123
      %v3127 = vpack.c.b16 %v3125, %v3125
      %v3128 = vpack.c.b16 %v3126, %v3126
      %v3129 = vrot.slane %v3127, 7
      %v3130 = vrot.slane %v3129, 4
      %v3131 = vrot.slane %v3128, 7
      %v3132 = vsel %vm2838, %v3130, %v3131
      %3135 = vst [vmem:[%s177 + $0x30] sm:$0xe] %v3129
      %3136 = vst [vmem:[%s177 + $0x34] sm:$0xf] %v3132
      %v3137 = vadd.f32 %v3065, %v3117
      %v3138 = vadd.f32 %v3066, %v3120
      %v3139 = vmul.f32 %v3117, %v3117
      %v3140 = vmul.f32 %v3120, %v3120
      %v3141 = vadd.f32 %v3069, %v3139
      %v3142 = vadd.f32 %v3070, %v3140
      %s3143 = scalar_lea.vmem [#allocation2], 64
      %v3144 = vld [vmem:[%s3143] sm:$0xf]
      %v3145 = vld [vmem:[%s3143 + $0x4] sm:$0x7]
      %v3148 = vunpack.c.l.b16 %v3144
      %v3149 = vunpack.c.l.b16 %v3145
      %v3150 = vpack.c.b16 %v3149, %v3148
      %v3152 = vsel %vm2560, %v3150, 0
      %3154 = vmatprep.subr.bf16.mxu0 0
      %3155 = vmatpush1.bf16.msra.mxu0 %v2555
      %3156 = vmatprep.subr.bf16.mxu0 0
      %3157 = vmatpush1.bf16.msra.mxu0 %v2556
      %3158 = vmatprep.subr.bf16.mxu0 0
      %3159 = vmatpush1.bf16.msra.mxu0 %v2566
      %3160 = vmatprep.subr.bf16.mxu0 0
      %3161 = vmatpush1.bf16.msra.mxu0 0
      %3162 = vmatprep.subr.bf16.mxu0 0
      %3163 = vmatpush1.bf16.msra.mxu0 0
      %3164 = vmatprep.subr.bf16.mxu0 0
      %3165 = vmatpush1.bf16.msra.mxu0 0
      %3166 = vmatprep.subr.bf16.mxu0 0
      %3167 = vmatpush1.bf16.msra.mxu0 0
      %3168 = vmatprep.subr.bf16.mxu0 0
      %3169 = vmatpush1.bf16.msra.mxu0 0
      %3170 = vmatprep.subr.bf16.mxu0 0
      %3171 = vmatpush1.bf16.msra.mxu0 0
      %3172 = vmatprep.subr.bf16.mxu0 0
      %3173 = vmatpush1.bf16.msra.mxu0 0
      %3174 = vmatprep.subr.bf16.mxu0 0
      %3175 = vmatpush1.bf16.msra.mxu0 0
      %3176 = vmatprep.subr.bf16.mxu0 0
      %3177 = vmatpush1.bf16.msra.mxu0 0
      %3178 = vmatprep.subr.bf16.mxu0 0
      %3179 = vmatpush1.bf16.msra.mxu0 0
      %3180 = vmatprep.subr.bf16.mxu0 0
      %3181 = vmatpush1.bf16.msra.mxu0 0
      %3182 = vmatprep.subr.bf16.mxu0 0
      %3183 = vmatpush1.bf16.msra.mxu0 0
      %3184 = vmatprep.subr.bf16.mxu0 0
      %3185 = vmatpush1.bf16.msra.mxu0 0
      %3186 = vmatprep.mubr.bf16.mxu0 0
      %3187 = vmatmul.mubr.bf16.gmra.mrb[0].mxu0 %v3152
      %v3188 = vpop.f32.mrb[0].mxu0
      %v3189 = vadd.f32 0.0, %v3188
      %v3190 = vpop.f32.mrb[0].mxu0
      %v3191 = vpop.f32.mrb[0].mxu0
      %v3192 = vadd.f32 0.0, %v3191
      %v3193 = vpop.f32.mrb[0].mxu0
      %3194 = vdwg.mxu0
      %v3195 = vpack.c.bf16 %v3192, %v3189
      %v3197 = vunpack.c.l.b16 %v3195
      %v3198 = vunpack.c.h.b16 %v3195
      %v3199 = vpack.c.b16 %v3197, %v3197
      %v3200 = vpack.c.b16 %v3198, %v3198
      %3203 = vst [vmem:[%s177 + $0x38] sm:$0xf] %v3199
      %3204 = vst [vmem:[%s177 + $0x3c] sm:$0x7] %v3200
      %v3205 = vadd.f32 %v3137, %v3189
      %v3206 = vadd.f32 %v3138, %v3192
      %v3207 = vmul.f32 %v3189, %v3189
      %v3208 = vmul.f32 %v3192, %v3192
      %v3209 = vadd.f32 %v3141, %v3207
      %v3210 = vadd.f32 %v3142, %v3208
      %s3211 = scalar_lea.vmem [#allocation2], 72
      %v3212 = vld [vmem:[%s3211] sm:$0xf]
      %v3213 = vld [vmem:[%s3211 + $0x4] sm:$0x7]
      %v3216 = vunpack.c.l.b16 %v3212
      %v3217 = vunpack.c.l.b16 %v3213
      %v3218 = vpack.c.b16 %v3217, %v3216
      %v3220 = vsel %vm2560, %v3218, 0
      %3222 = vmatprep.subr.bf16.mxu0 0
      %3223 = vmatpush1.bf16.msra.mxu0 %v2555
      %3224 = vmatprep.subr.bf16.mxu0 0
      %3225 = vmatpush1.bf16.msra.mxu0 %v2556
      %3226 = vmatprep.subr.bf16.mxu0 0
      %3227 = vmatpush1.bf16.msra.mxu0 %v2566
      %3228 = vmatprep.subr.bf16.mxu0 0
      %3229 = vmatpush1.bf16.msra.mxu0 0
      %3230 = vmatprep.subr.bf16.mxu0 0
      %3231 = vmatpush1.bf16.msra.mxu0 0
      %3232 = vmatprep.subr.bf16.mxu0 0
      %3233 = vmatpush1.bf16.msra.mxu0 0
      %3234 = vmatprep.subr.bf16.mxu0 0
      %3235 = vmatpush1.bf16.msra.mxu0 0
      %3236 = vmatprep.subr.bf16.mxu0 0
      %3237 = vmatpush1.bf16.msra.mxu0 0
      %3238 = vmatprep.subr.bf16.mxu0 0
      %3239 = vmatpush1.bf16.msra.mxu0 0
      %3240 = vmatprep.subr.bf16.mxu0 0
      %3241 = vmatpush1.bf16.msra.mxu0 0
      %3242 = vmatprep.subr.bf16.mxu0 0
      %3243 = vmatpush1.bf16.msra.mxu0 0
      %3244 = vmatprep.subr.bf16.mxu0 0
      %3245 = vmatpush1.bf16.msra.mxu0 0
      %3246 = vmatprep.subr.bf16.mxu0 0
      %3247 = vmatpush1.bf16.msra.mxu0 0
      %3248 = vmatprep.subr.bf16.mxu0 0
      %3249 = vmatpush1.bf16.msra.mxu0 0
      %3250 = vmatprep.subr.bf16.mxu0 0
      %3251 = vmatpush1.bf16.msra.mxu0 0
      %3252 = vmatprep.subr.bf16.mxu0 0
      %3253 = vmatpush1.bf16.msra.mxu0 0
      %3254 = vmatprep.mubr.bf16.mxu0 0
      %3255 = vmatmul.mubr.bf16.gmra.mrb[0].mxu0 %v3220
      %v3256 = vpop.f32.mrb[0].mxu0
      %v3257 = vadd.f32 0.0, %v3256
      %v3258 = vpop.f32.mrb[0].mxu0
      %v3259 = vpop.f32.mrb[0].mxu0
      %v3260 = vadd.f32 0.0, %v3259
      %v3261 = vpop.f32.mrb[0].mxu0
      %3262 = vdwg.mxu0
      %v3263 = vpack.c.bf16 %v3260, %v3257
      %v3265 = vunpack.c.l.b16 %v3263
      %v3266 = vunpack.c.h.b16 %v3263
      %v3267 = vpack.c.b16 %v3265, %v3265
      %v3268 = vpack.c.b16 %v3266, %v3266
      %v3269 = vrot.slane %v3267, 5
      %v3270 = vrot.slane %v3269, 4
      %v3271 = vrot.slane %v3268, 5
      %v3272 = vsel %vm710, %v3270, %v3271
      %v3273 = vrot.slane %v3271, 4
      %3277 = vst [vmem:[%s177 + $0x3c] sm:$0x8] %v3269
      %3278 = vst [vmem:[%s177 + $0x40] sm:$0xf] %v3272
      %3279 = vst [vmem:[%s177 + $0x44] sm:$0x3] %v3273
      %v3280 = vadd.f32 %v3205, %v3257
      %v3281 = vadd.f32 %v3206, %v3260
      %v3282 = vmul.f32 %v3257, %v3257
      %v3283 = vmul.f32 %v3260, %v3260
      %v3284 = vadd.f32 %v3209, %v3282
      %v3285 = vadd.f32 %v3210, %v3283
      %s3286 = scalar_lea.vmem [#allocation2], 80
      %v3287 = vld [vmem:[%s3286] sm:$0xf]
      %v3288 = vld [vmem:[%s3286 + $0x4] sm:$0x7]
      %v3291 = vunpack.c.l.b16 %v3287
      %v3292 = vunpack.c.l.b16 %v3288
      %v3293 = vpack.c.b16 %v3292, %v3291
      %v3295 = vsel %vm2560, %v3293, 0
      %3297 = vmatprep.subr.bf16.mxu0 0
      %3298 = vmatpush1.bf16.msra.mxu0 %v2555
      %3299 = vmatprep.subr.bf16.mxu0 0
      %3300 = vmatpush1.bf16.msra.mxu0 %v2556
      %3301 = vmatprep.subr.bf16.mxu0 0
      %3302 = vmatpush1.bf16.msra.mxu0 %v2566
      %3303 = vmatprep.subr.bf16.mxu0 0
      %3304 = vmatpush1.bf16.msra.mxu0 0
      %3305 = vmatprep.subr.bf16.mxu0 0
      %3306 = vmatpush1.bf16.msra.mxu0 0
      %3307 = vmatprep.subr.bf16.mxu0 0
      %3308 = vmatpush1.bf16.msra.mxu0 0
      %3309 = vmatprep.subr.bf16.mxu0 0
      %3310 = vmatpush1.bf16.msra.mxu0 0
      %3311 = vmatprep.subr.bf16.mxu0 0
      %3312 = vmatpush1.bf16.msra.mxu0 0
      %3313 = vmatprep.subr.bf16.mxu0 0
      %3314 = vmatpush1.bf16.msra.mxu0 0
      %3315 = vmatprep.subr.bf16.mxu0 0
      %3316 = vmatpush1.bf16.msra.mxu0 0
      %3317 = vmatprep.subr.bf16.mxu0 0
      %3318 = vmatpush1.bf16.msra.mxu0 0
      %3319 = vmatprep.subr.bf16.mxu0 0
      %3320 = vmatpush1.bf16.msra.mxu0 0
      %3321 = vmatprep.subr.bf16.mxu0 0
      %3322 = vmatpush1.bf16.msra.mxu0 0
      %3323 = vmatprep.subr.bf16.mxu0 0
      %3324 = vmatpush1.bf16.msra.mxu0 0
      %3325 = vmatprep.subr.bf16.mxu0 0
      %3326 = vmatpush1.bf16.msra.mxu0 0
      %3327 = vmatprep.subr.bf16.mxu0 0
      %3328 = vmatpush1.bf16.msra.mxu0 0
      %3329 = vmatprep.mubr.bf16.mxu0 0
      %3330 = vmatmul.mubr.bf16.gmra.mrb[0].mxu0 %v3295
      %v3331 = vpop.f32.mrb[0].mxu0
      %v3332 = vadd.f32 0.0, %v3331
      %v3333 = vpop.f32.mrb[0].mxu0
      %v3334 = vpop.f32.mrb[0].mxu0
      %v3335 = vadd.f32 0.0, %v3334
      %v3336 = vpop.f32.mrb[0].mxu0
      %3337 = vdwg.mxu0
      %v3338 = vpack.c.bf16 %v3335, %v3332
      %v3340 = vunpack.c.l.b16 %v3338
      %v3341 = vunpack.c.h.b16 %v3338
      %v3342 = vpack.c.b16 %v3340, %v3340
      %v3343 = vpack.c.b16 %v3341, %v3341
      %v3344 = vrot.slane %v3342, 6
      %v3345 = vrot.slane %v3344, 4
      %v3346 = vrot.slane %v3343, 6
      %v3347 = vsel %vm2760, %v3345, %v3346
      %v3348 = vrot.slane %v3346, 4
      %3352 = vst [vmem:[%s177 + $0x44] sm:$0xc] %v3344
      %3353 = vst [vmem:[%s177 + $0x48] sm:$0xf] %v3347
      %3354 = vst [vmem:[%s177 + $0x4c] sm:$0x1] %v3348
      %v3355 = vadd.f32 %v3280, %v3332
      %v3356 = vadd.f32 %v3281, %v3335
      %v3357 = vmul.f32 %v3332, %v3332
      %v3358 = vmul.f32 %v3335, %v3335
      %v3359 = vadd.f32 %v3284, %v3357
      %v3360 = vadd.f32 %v3285, %v3358
      %s3361 = scalar_lea.vmem [#allocation2], 88
      %v3362 = vld [vmem:[%s3361] sm:$0xf]
      %v3363 = vld [vmem:[%s3361 + $0x4] sm:$0x7]
      %v3366 = vunpack.c.l.b16 %v3362
      %v3367 = vunpack.c.l.b16 %v3363
      %v3368 = vpack.c.b16 %v3367, %v3366
      %v3370 = vsel %vm2560, %v3368, 0
      %3372 = vmatprep.subr.bf16.mxu0 0
      %3373 = vmatpush1.bf16.msra.mxu0 %v2555
      %3374 = vmatprep.subr.bf16.mxu0 0
      %3375 = vmatpush1.bf16.msra.mxu0 %v2556
      %3376 = vmatprep.subr.bf16.mxu0 0
      %3377 = vmatpush1.bf16.msra.mxu0 %v2566
      %3378 = vmatprep.subr.bf16.mxu0 0
      %3379 = vmatpush1.bf16.msra.mxu0 0
      %3380 = vmatprep.subr.bf16.mxu0 0
      %3381 = vmatpush1.bf16.msra.mxu0 0
      %3382 = vmatprep.subr.bf16.mxu0 0
      %3383 = vmatpush1.bf16.msra.mxu0 0
      %3384 = vmatprep.subr.bf16.mxu0 0
      %3385 = vmatpush1.bf16.msra.mxu0 0
      %3386 = vmatprep.subr.bf16.mxu0 0
      %3387 = vmatpush1.bf16.msra.mxu0 0
      %3388 = vmatprep.subr.bf16.mxu0 0
      %3389 = vmatpush1.bf16.msra.mxu0 0
      %3390 = vmatprep.subr.bf16.mxu0 0
      %3391 = vmatpush1.bf16.msra.mxu0 0
      %3392 = vmatprep.subr.bf16.mxu0 0
      %3393 = vmatpush1.bf16.msra.mxu0 0
      %3394 = vmatprep.subr.bf16.mxu0 0
      %3395 = vmatpush1.bf16.msra.mxu0 0
      %3396 = vmatprep.subr.bf16.mxu0 0
      %3397 = vmatpush1.bf16.msra.mxu0 0
      %3398 = vmatprep.subr.bf16.mxu0 0
      %3399 = vmatpush1.bf16.msra.mxu0 0
      %3400 = vmatprep.subr.bf16.mxu0 0
      %3401 = vmatpush1.bf16.msra.mxu0 0
      %3402 = vmatprep.subr.bf16.mxu0 0
      %3403 = vmatpush1.bf16.msra.mxu0 0
      %3404 = vmatprep.mubr.bf16.mxu0 0
      %3405 = vmatmul.mubr.bf16.gmra.mrb[0].mxu0 %v3370
      %v3406 = vpop.f32.mrb[0].mxu0
      %v3407 = vadd.f32 0.0, %v3406
      %v3408 = vpop.f32.mrb[0].mxu0
      %v3409 = vpop.f32.mrb[0].mxu0
      %v3410 = vadd.f32 0.0, %v3409
      %v3411 = vpop.f32.mrb[0].mxu0
      %3412 = vdwg.mxu0
      %v3413 = vpack.c.bf16 %v3410, %v3407
      %v3415 = vunpack.c.l.b16 %v3413
      %v3416 = vunpack.c.h.b16 %v3413
      %v3417 = vpack.c.b16 %v3415, %v3415
      %v3418 = vpack.c.b16 %v3416, %v3416
      %v3419 = vrot.slane %v3417, 7
      %v3420 = vrot.slane %v3419, 4
      %v3421 = vrot.slane %v3418, 7
      %v3422 = vsel %vm2838, %v3420, %v3421
      %3425 = vst [vmem:[%s177 + $0x4c] sm:$0xe] %v3419
      %3426 = vst [vmem:[%s177 + $0x50] sm:$0xf] %v3422
      %v3427 = vadd.f32 %v3355, %v3407
      %v3428 = vadd.f32 %v3356, %v3410
      %v3429 = vmul.f32 %v3407, %v3407
      %v3430 = vmul.f32 %v3410, %v3410
      %v3431 = vadd.f32 %v3359, %v3429
      %v3432 = vadd.f32 %v3360, %v3430
      %s3433 = scalar_lea.vmem [#allocation2], 96
      %v3434 = vld [vmem:[%s3433] sm:$0xf]
      %v3435 = vld [vmem:[%s3433 + $0x4] sm:$0x7]
      %v3438 = vunpack.c.l.b16 %v3434
      %v3439 = vunpack.c.l.b16 %v3435
      %v3440 = vpack.c.b16 %v3439, %v3438
      %v3442 = vsel %vm2560, %v3440, 0
      %3444 = vmatprep.subr.bf16.mxu0 0
      %3445 = vmatpush1.bf16.msra.mxu0 %v2555
      %3446 = vmatprep.subr.bf16.mxu0 0
      %3447 = vmatpush1.bf16.msra.mxu0 %v2556
      %3448 = vmatprep.subr.bf16.mxu0 0
      %3449 = vmatpush1.bf16.msra.mxu0 %v2566
      %3450 = vmatprep.subr.bf16.mxu0 0
      %3451 = vmatpush1.bf16.msra.mxu0 0
      %3452 = vmatprep.subr.bf16.mxu0 0
      %3453 = vmatpush1.bf16.msra.mxu0 0
      %3454 = vmatprep.subr.bf16.mxu0 0
      %3455 = vmatpush1.bf16.msra.mxu0 0
      %3456 = vmatprep.subr.bf16.mxu0 0
      %3457 = vmatpush1.bf16.msra.mxu0 0
      %3458 = vmatprep.subr.bf16.mxu0 0
      %3459 = vmatpush1.bf16.msra.mxu0 0
      %3460 = vmatprep.subr.bf16.mxu0 0
      %3461 = vmatpush1.bf16.msra.mxu0 0
      %3462 = vmatprep.subr.bf16.mxu0 0
      %3463 = vmatpush1.bf16.msra.mxu0 0
      %3464 = vmatprep.subr.bf16.mxu0 0
      %3465 = vmatpush1.bf16.msra.mxu0 0
      %3466 = vmatprep.subr.bf16.mxu0 0
      %3467 = vmatpush1.bf16.msra.mxu0 0
      %3468 = vmatprep.subr.bf16.mxu0 0
      %3469 = vmatpush1.bf16.msra.mxu0 0
      %3470 = vmatprep.subr.bf16.mxu0 0
      %3471 = vmatpush1.bf16.msra.mxu0 0
      %3472 = vmatprep.subr.bf16.mxu0 0
      %3473 = vmatpush1.bf16.msra.mxu0 0
      %3474 = vmatprep.subr.bf16.mxu0 0
      %3475 = vmatpush1.bf16.msra.mxu0 0
      %3476 = vmatprep.mubr.bf16.mxu0 0
      %3477 = vmatmul.mubr.bf16.gmra.mrb[0].mxu0 %v3442
      %v3478 = vpop.f32.mrb[0].mxu0
      %v3479 = vadd.f32 0.0, %v3478
      %v3480 = vpop.f32.mrb[0].mxu0
      %v3481 = vpop.f32.mrb[0].mxu0
      %v3482 = vadd.f32 0.0, %v3481
      %v3483 = vpop.f32.mrb[0].mxu0
      %3484 = vdwg.mxu0
      %v3485 = vpack.c.bf16 %v3482, %v3479
      %v3487 = vunpack.c.l.b16 %v3485
      %v3488 = vunpack.c.h.b16 %v3485
      %v3489 = vpack.c.b16 %v3487, %v3487
      %v3490 = vpack.c.b16 %v3488, %v3488
      %3493 = vst [vmem:[%s177 + $0x54] sm:$0xf] %v3489
      %3494 = vst [vmem:[%s177 + $0x58] sm:$0x7] %v3490
      %v3495 = vadd.f32 %v3427, %v3479
      %v3496 = vadd.f32 %v3428, %v3482
      %v3497 = vmul.f32 %v3479, %v3479
      %v3498 = vmul.f32 %v3482, %v3482
      %v3499 = vadd.f32 %v3431, %v3497
      %v3500 = vadd.f32 %v3432, %v3498
      %s3501 = scalar_lea.vmem [#allocation2], 104
      %v3502 = vld [vmem:[%s3501] sm:$0xf]
      %v3503 = vld [vmem:[%s3501 + $0x4] sm:$0x7]
      %v3506 = vunpack.c.l.b16 %v3502
      %v3507 = vunpack.c.l.b16 %v3503
      %v3508 = vpack.c.b16 %v3507, %v3506
      %v3510 = vsel %vm2560, %v3508, 0
      %3512 = vmatprep.subr.bf16.mxu0 0
      %3513 = vmatpush1.bf16.msra.mxu0 %v2555
      %3514 = vmatprep.subr.bf16.mxu0 0
      %3515 = vmatpush1.bf16.msra.mxu0 %v2556
      %3516 = vmatprep.subr.bf16.mxu0 0
      %3517 = vmatpush1.bf16.msra.mxu0 %v2566
      %3518 = vmatprep.subr.bf16.mxu0 0
      %3519 = vmatpush1.bf16.msra.mxu0 0
      %3520 = vmatprep.subr.bf16.mxu0 0
      %3521 = vmatpush1.bf16.msra.mxu0 0
      %3522 = vmatprep.subr.bf16.mxu0 0
      %3523 = vmatpush1.bf16.msra.mxu0 0
      %3524 = vmatprep.subr.bf16.mxu0 0
      %3525 = vmatpush1.bf16.msra.mxu0 0
      %3526 = vmatprep.subr.bf16.mxu0 0
      %3527 = vmatpush1.bf16.msra.mxu0 0
      %3528 = vmatprep.subr.bf16.mxu0 0
      %3529 = vmatpush1.bf16.msra.mxu0 0
      %3530 = vmatprep.subr.bf16.mxu0 0
      %3531 = vmatpush1.bf16.msra.mxu0 0
      %3532 = vmatprep.subr.bf16.mxu0 0
      %3533 = vmatpush1.bf16.msra.mxu0 0
      %3534 = vmatprep.subr.bf16.mxu0 0
      %3535 = vmatpush1.bf16.msra.mxu0 0
      %3536 = vmatprep.subr.bf16.mxu0 0
      %3537 = vmatpush1.bf16.msra.mxu0 0
      %3538 = vmatprep.subr.bf16.mxu0 0
      %3539 = vmatpush1.bf16.msra.mxu0 0
      %3540 = vmatprep.subr.bf16.mxu0 0
      %3541 = vmatpush1.bf16.msra.mxu0 0
      %3542 = vmatprep.subr.bf16.mxu0 0
      %3543 = vmatpush1.bf16.msra.mxu0 0
      %3544 = vmatprep.mubr.bf16.mxu0 0
      %3545 = vmatmul.mubr.bf16.gmra.mrb[0].mxu0 %v3510
      %v3546 = vpop.f32.mrb[0].mxu0
      %v3547 = vadd.f32 0.0, %v3546
      %v3548 = vpop.f32.mrb[0].mxu0
      %v3549 = vpop.f32.mrb[0].mxu0
      %v3550 = vadd.f32 0.0, %v3549
      %v3551 = vpop.f32.mrb[0].mxu0
      %3552 = vdwg.mxu0
      %v3553 = vpack.c.bf16 %v3550, %v3547
      %v3555 = vunpack.c.l.b16 %v3553
      %v3556 = vunpack.c.h.b16 %v3553
      %v3557 = vpack.c.b16 %v3555, %v3555
      %v3558 = vpack.c.b16 %v3556, %v3556
      %v3559 = vrot.slane %v3557, 5
      %v3560 = vrot.slane %v3559, 4
      %v3561 = vrot.slane %v3558, 5
      %v3562 = vsel %vm710, %v3560, %v3561
      %v3563 = vrot.slane %v3561, 4
      %3567 = vst [vmem:[%s177 + $0x58] sm:$0x8] %v3559
      %3568 = vst [vmem:[%s177 + $0x5c] sm:$0xf] %v3562
      %3569 = vst [vmem:[%s177 + $0x60] sm:$0x3] %v3563
      %v3570 = vadd.f32 %v3495, %v3547
      %v3571 = vadd.f32 %v3496, %v3550
      %v3572 = vmul.f32 %v3547, %v3547
      %v3573 = vmul.f32 %v3550, %v3550
      %v3574 = vadd.f32 %v3499, %v3572
      %v3575 = vadd.f32 %v3500, %v3573
      %3576 = vst [vmem:[%s177 + $0x60] sm:$0xc] 0
      %vm3577 = vcmask 1045504
      %v3578 = vsel %vm3577, %v3571, 0.0
      %v3579 = vadd.f32 %v3570, %v3578
      %v3580 = vrot.slane %v3579, 4
      %v3581 = vadd.f32 %v3579, %v3580
      %v3582 = vrot.slane %v3581, 2
      %v3583 = vadd.f32 %v3581, %v3582
      %v3584 = vrot.slane %v3583, 1
      %v3585 = vadd.f32 %v3583, %v3584
      %v3586 = vsel %vm3577, %v3575, 0.0
      %v3587 = vadd.f32 %v3574, %v3586
      %v3588 = vrot.slane %v3587, 4
      %v3589 = vadd.f32 %v3587, %v3588
      %v3590 = vrot.slane %v3589, 2
      %v3591 = vadd.f32 %v3589, %v3590
      %v3592 = vrot.slane %v3591, 1
      %v3593 = vadd.f32 %v3591, %v3592
      %vm3594 = vcmask 1040384
      %v3595 = vsel %vm3594, %v3585, %v3593
      %3596 = vst [vmem:[%s181] sm:$0x3] %v3595
      %p3597 = scmp.lt.s32.totalorder %s15, 1
      %s3598 = scalar_select %p3597, %s15, 1
      %s3599 = smul.addr %s3598, 25
      %s3600 = smul.addr %s3599, 4
      %s3601 = scalar_lea.vmem %s2, %s3600
      %p3602 = scmp.lt.s32.totalorder %s15, 1
      %s3603 = scalar_select %p3602, %s15, 1
      %s3604 = smul.addr %s3603, 2
      %s3605 = scalar_lea.vmem %s3, %s3604
      // Predicated region
      $region29: #{down_conv_block.2} parent=27 // pred_check
        %p3606 = pneg %p80
      $region30: #{down_conv_block.2} parent=27 // pred_check_branch
        %3608 = sbr.rel (%p3606) target = $region32
      $region31: #{down_conv_block.2} parent=27 // pred_region
        _
      $region32: #{down_conv_block.2} parent=27 // pred_fallthru
        _
      // Predicated region
      $region33: #{down_conv_block.2} parent=27 // pred_check
        %p3609 = pneg %p106
      $region34: #{down_conv_block.2} parent=27 // pred_check_branch
        %3611 = sbr.rel (%p3609) target = $region36
      $region35: #{down_conv_block.2} parent=27 // pred_region
        _
      $region36: #{down_conv_block.2} parent=27 // pred_fallthru
        _
    $region28: #{down_conv_block.2} parent=5 // pred_fallthru
      _
    %p3612 = scmp.le.s32.totalorder 2, %s10
    // Predicated region
    $region37: #{down_conv_block.2} parent=5 // pred_check
      %p3613 = pneg %p3612
    $region38: #{down_conv_block.2} parent=5 // pred_check_branch
      %3615 = sbr.rel (%p3613) target = $region40
    $region39: #{down_conv_block.2} parent=5 // pred_region
      %s3616 = ssub.s32 %s10, 2
      // Predicated region
      $region41: #{down_conv_block.2} parent=39 // pred_check
        %p3617 = pneg %p86
      $region42: #{down_conv_block.2} parent=39 // pred_check_branch
        %3619 = sbr.rel (%p3617) target = $region44
      $region43: #{down_conv_block.2} parent=39 // pred_region
        %p3620 = scmp.lt.s32.totalorder %s16, 1
        %s3621 = scalar_select %p3620, %s16, 1
        %s3622 = smul.addr %s3621, 25
        %s3623 = smul.addr %s3622, 4
        %s3624 = scalar_lea.vmem %s2, %s3623
      $region44: #{down_conv_block.2} parent=39 // pred_fallthru
        _
      // Predicated region
      $region45: #{down_conv_block.2} parent=39 // pred_check
        %p3625 = pneg %p112
      $region46: #{down_conv_block.2} parent=39 // pred_check_branch
        %3627 = sbr.rel (%p3625) target = $region48
      $region47: #{down_conv_block.2} parent=39 // pred_region
        %p3628 = scmp.lt.s32.totalorder %s16, 1
        %s3629 = scalar_select %p3628, %s16, 1
        %s3630 = smul.addr %s3629, 2
        %s3631 = scalar_lea.vmem %s3, %s3630
      $region48: #{down_conv_block.2} parent=39 // pred_fallthru
        _
    $region40: #{down_conv_block.2} parent=5 // pred_fallthru
      _
  $region6: #{down_conv_block.2} parent=0 // loop_footer
    %s14 = sadd.s32 1, %s10
  $region7: #{down_conv_block.2} parent=0 // loop_footer_branch
    %9 = sbr.rel target = $region3
  $region8: #{down_conv_block.2} parent=0 // loop_exit
    _

</llo_original>
